<compile_context>
chip_gen: v5e
topology: v5e:2x2
jax: 0.10.0
libtpu: 0.0.40
codegen_flags: <defaults>
</compile_context>

<pallas_src>
import functools

import jax
import jax.numpy as jnp
from jax.experimental import pallas as pl
from jax.experimental.pallas import tpu as pltpu


N_ANCHOR = 9
N_CLASS = 5          # 4 fg classes + background
FEAT_CH = 32
MID_CH = 32
ROI_SIZE = 7
HIDDEN = 64
N_POST = 32

_LANE = 128


def _round_up(x, m):
    return (x + m - 1) // m * m


def _pick_tm(m):
    """Row tile.  Single block for small M (no per-grid-step overhead — the right call
    on 1-TC v5e/v6e); otherwise blocks of <=512 rows (measured ~85% HBM efficiency vs
    ~29% at 128) with an EVEN block count so v7x's two TensorCores split the grid
    evenly.  The extra step this costs on single-TC chips is one ~0.35us overhead."""
    m8 = _round_up(m, 8)
    if m8 <= 256:
        return m8
    nb = pl.cdiv(m8, 512)
    nb += nb % 2                     # even number of row blocks for v7x megacore
    return _round_up(pl.cdiv(m8, nb), 8)


# ----------------------------------------------------------------------------
# Pallas kernel: fused N-layer MLP  (matmul + bias [+ ReLU] per layer).
#
# - K of every layer is the full reduction: no k grid axis, no accumulator
#   scratch, no init/finalize branches, bias read exactly once per tile.
# - Operands are bf16 (MXU-native on v5e/v6e/v7x), accumulation is f32.
# - All intermediate activations stay in VMEM / vregs for the whole stack.
# ----------------------------------------------------------------------------
def _mlp_kernel(*refs, activations):
    x_ref = refs[0]
    o_ref = refs[-1]
    h = x_ref[...]                                    # bf16 input tile
    for l, act in enumerate(activations):
        w = refs[1 + 2 * l][...]                      # bf16 (K_l, Np_l)
        b = refs[2 + 2 * l][...]                      # f32  (1,   Np_l)
        h = jnp.dot(h.astype(w.dtype), w, preferred_element_type=jnp.float32) + b
        if act == "relu":
            h = jnp.maximum(h, 0.0)
    o_ref[...] = h.astype(o_ref.dtype)


def pallas_mlp(x, layers, activations, n_out, out_dtype=jnp.float32):
    """y = mlp(x), layers = [(w_padded_bf16, b_padded_f32), ...].

    x: (M, K) float (cast to bf16 here; callers already pass bf16).
    Weights are (K_l, Np_l) with Np_l a multiple of 128 (lane-dense stores) and
    K_{l+1} == Np_l, with exact zeros in all padded lanes so the padding never
    changes the result.  First-layer K is the raw K of x (full-dim block), so no
    activation padding is needed.  Returns (M, n_out) in out_dtype.
    """
    assert len(layers) == len(activations)
    m, k = x.shape
    kp = layers[0][0].shape[0]
    assert k <= kp
    for (w_a, _), (w_b, _) in zip(layers[:-1], layers[1:]):
        assert w_a.shape[1] == w_b.shape[0]
    np_out = layers[-1][0].shape[1]

    tm = _pick_tm(m)
    mp = _round_up(m, tm)

    xb = x.astype(jnp.bfloat16)
    if (mp, kp) != (m, k):
        # Only for ragged shapes; every call in this model is already aligned,
        # so no extra HBM pad pass happens in practice.
        xb = jnp.pad(xb, ((0, mp - m), (0, kp - k)))

    in_specs = [pl.BlockSpec((tm, kp), lambda i: (i, 0))]
    args = [xb]
    for w, b in layers:
        kl, nl = w.shape
        in_specs.append(pl.BlockSpec((kl, nl), lambda i: (0, 0)))   # constant block
        in_specs.append(pl.BlockSpec((1, nl), lambda i: (0, 0)))
        args.extend([w, b])

    kernel = functools.partial(_mlp_kernel, activations=tuple(activations))
    out = pl.pallas_call(
        kernel,
        out_shape=jax.ShapeDtypeStruct((mp, np_out), out_dtype),
        grid_spec=pltpu.PrefetchScalarGridSpec(
            num_scalar_prefetch=0,
            grid=(mp // tm,),
            in_specs=in_specs,
            out_specs=pl.BlockSpec((tm, np_out), lambda i: (i, 0)),
        ),
        compiler_params=pltpu.CompilerParams(
            dimension_semantics=("parallel",),
        ),
    )(*args)
    return out[:m, :n_out]


def _prep_layer(w2d, b, k_pad=None):
    """Pad a (K, N) weight + (N,) bias once: N to 128 for lane-dense output stores;
    K only when it must match a previous layer's padded N (zero rows, exact)."""
    k, n = w2d.shape
    kp = k if k_pad is None else k_pad
    np_ = _round_up(n, _LANE)
    wp = jnp.pad(w2d.astype(jnp.bfloat16), ((0, kp - k), (0, np_ - n)))
    bp = jnp.pad(b.astype(jnp.float32), (0, np_ - n)).reshape(1, np_)
    return wp, bp


# ----------------------------------------------------------------------------
# Conv glue: im2col (patch matrix), consumed by the Pallas MLP kernel.
# ----------------------------------------------------------------------------
def _im2col(x, kh, kw, stride, pad):
    # TODO(synk): at real image sizes this materializes a kh*kw-larger patch
    #             matrix in HBM; fold the taps into the kernel's reduction
    #             (halo'd BlockSpecs / in-kernel pltpu.roll shifts) to avoid the
    #             9x read amplification.  Negligible at this toy 16x16 size.
    n, h, w, c = x.shape
    xp = jnp.pad(x, ((0, 0), (pad, pad), (pad, pad), (0, 0)))
    ho = (h + 2 * pad - kh) // stride + 1
    wo = (w + 2 * pad - kw) // stride + 1
    cols = []
    for i in range(kh):
        for j in range(kw):
            cols.append(
                xp[:, i : i + stride * ho : stride, j : j + stride * wo : stride, :]
            )
    patches = jnp.concatenate(cols, axis=-1)          # (N, Ho, Wo, kh*kw*C), input dtype
    return patches.reshape(n * ho * wo, kh * kw * c), n, ho, wo


# ----------------------------------------------------------------------------
# RPN glue (anchor generation, box decoding, proposal selection)
# ----------------------------------------------------------------------------
def generate_anchors(h, w, feat_stride=1, scales=(2.0, 4.0, 8.0), ratios=(0.5, 1.0, 2.0)):
    base = []
    for r in ratios:
        for s in scales:
            bh = feat_stride * s * (r ** 0.5)
            bw = feat_stride * s * ((1.0 / r) ** 0.5)
            base.append([-bh / 2.0, -bw / 2.0, bh / 2.0, bw / 2.0])
    base = jnp.asarray(base, dtype=jnp.float32)       # (A, 4)
    sy, sx = jnp.meshgrid(
        jnp.arange(h, dtype=jnp.float32) * feat_stride,
        jnp.arange(w, dtype=jnp.float32) * feat_stride,
        indexing="ij",
    )
    shifts = jnp.stack([sy.ravel(), sx.ravel(), sy.ravel(), sx.ravel()], axis=1)
    anchors = shifts[:, None, :] + base[None, :, :]
    return anchors.reshape(-1, 4)                      # (H*W*A, 4)


def loc2bbox(anchor, loc):
    h = anchor[:, 2] - anchor[:, 0]
    w = anchor[:, 3] - anchor[:, 1]
    cy = anchor[:, 0] + 0.5 * h
    cx = anchor[:, 1] + 0.5 * w
    dy, dx, dh, dw = loc[:, 0], loc[:, 1], loc[:, 2], loc[:, 3]
    ncy = cy + dy * h
    ncx = cx + dx * w
    nh = h * jnp.exp(dh)
    nw = w * jnp.exp(dw)
    return jnp.stack(
        [ncy - 0.5 * nh, ncx - 0.5 * nw, ncy + 0.5 * nh, ncx + 0.5 * nw], axis=1
    )


def propose(rpn_loc, rpn_score, anchor, img_size, n_post):
    # TODO(synk): ProposalCreator's NMS and min-size filter are not implemented;
    #             proposals are the top-k anchors by fg score after decoding/clipping.
    boxes = loc2bbox(anchor, rpn_loc)
    boxes = jnp.stack(
        [
            jnp.clip(boxes[:, 0], 0.0, float(img_size[0])),
            jnp.clip(boxes[:, 1], 0.0, float(img_size[1])),
            jnp.clip(boxes[:, 2], 0.0, float(img_size[0])),
            jnp.clip(boxes[:, 3], 0.0, float(img_size[1])),
        ],
        axis=1,
    )
    fg = jax.nn.softmax(rpn_score, axis=-1)[:, 1]
    _, idx = jax.lax.top_k(fg, n_post)
    return boxes[idx]


# ----------------------------------------------------------------------------
# RoI pooling: exact row gather of nearest features at bin centers, flattened
# in PyTorch's (C, bin_y, bin_x) order.  Tiny at this size; the head FC stack
# (one fused pallas call) consumes the result directly.
# ----------------------------------------------------------------------------
def roi_pool_gather(feat, rois, roi_indices, out_size=ROI_SIZE, spatial_scale=1.0):
    # TODO(synk): true RoIPooling max-pools each bin; here the nearest feature at
    #             each bin center is sampled (RoIAlign-lite).
    # TODO(synk): at production feature-map sizes fold this gather into the head
    #             kernel (scalar-prefetched indices + dynamic-row VMEM loads) so
    #             the feature map stays resident in VMEM.
    n, h, w, c = feat.shape
    r = rois.shape[0]
    grid = (jnp.arange(out_size, dtype=jnp.float32) + 0.5) / out_size
    ys = (rois[:, 0:1] + (rois[:, 2:3] - rois[:, 0:1]) * grid[None, :]) * spatial_scale
    xs = (rois[:, 1:2] + (rois[:, 3:4] - rois[:, 1:2]) * grid[None, :]) * spatial_scale
    yi = jnp.clip(jnp.floor(ys).astype(jnp.int32), 0, h - 1)           # (R, S)
    xi = jnp.clip(jnp.floor(xs).astype(jnp.int32), 0, w - 1)           # (R, S)
    bidx = roi_indices.astype(jnp.int32)[:, None, None]                # (R, 1, 1)
    flat_idx = bidx * (h * w) + yi[:, :, None] * w + xi[:, None, :]    # (R, S, S)
    pooled = feat.reshape(n * h * w, c)[flat_idx.reshape(r, out_size * out_size)]
    pooled = pooled.reshape(r, out_size, out_size, c)                  # (R, S, S, C)
    pooled = jnp.transpose(pooled, (0, 3, 1, 2))                       # (R, C, S, S): torch flatten order
    return pooled.reshape(r, c * out_size * out_size)                  # (R, C*S*S), bf16


# ----------------------------------------------------------------------------
# Parameters
# ----------------------------------------------------------------------------
def init_params(key):
    ks = jax.random.split(key, 12)
    s = 0.05

    def w(k, shape):
        return jax.random.normal(k, shape, jnp.float32) * s

    return {
        # extractor: 3x3 conv, 4 -> FEAT_CH, ReLU
        "ext_w": w(ks[0], (3, 3, 4, FEAT_CH)),
        "ext_b": jnp.zeros((FEAT_CH,), jnp.float32),
        # rpn mid conv 3x3 FEAT_CH -> MID_CH, ReLU
        "rpn_w": w(ks[1], (3, 3, FEAT_CH, MID_CH)),
        "rpn_b": jnp.zeros((MID_CH,), jnp.float32),
        # rpn loc head 1x1 -> n_anchor*4
        "loc_w": w(ks[2], (1, 1, MID_CH, N_ANCHOR * 4)),
        "loc_b": jnp.zeros((N_ANCHOR * 4,), jnp.float32),
        # rpn score head 1x1 -> n_anchor*2
        "sco_w": w(ks[3], (1, 1, MID_CH, N_ANCHOR * 2)),
        "sco_b": jnp.zeros((N_ANCHOR * 2,), jnp.float32),
        # head FCs (fc1 K axis is in (C, bin_y, bin_x) order, like torch's NCHW flatten)
        "fc1_w": w(ks[4], (ROI_SIZE * ROI_SIZE * FEAT_CH, HIDDEN)),
        "fc1_b": jnp.zeros((HIDDEN,), jnp.float32),
        "fc2_w": w(ks[5], (HIDDEN, HIDDEN)),
        "fc2_b": jnp.zeros((HIDDEN,), jnp.float32),
        "cls_loc_w": w(ks[6], (HIDDEN, N_CLASS * 4)),
        "cls_loc_b": jnp.zeros((N_CLASS * 4,), jnp.float32),
        "cls_sco_w": w(ks[7], (HIDDEN, N_CLASS)),
        "cls_sco_b": jnp.zeros((N_CLASS,), jnp.float32),
    }


def prepare_params(params):
    """Fuse the paired RPN loc/score heads and the cls_loc/cls_score FC heads,
    reshape conv weights to matmul form, and pad/cast to bf16 — once."""
    rpn_head_w = jnp.concatenate(
        [params["loc_w"].reshape(MID_CH, N_ANCHOR * 4),
         params["sco_w"].reshape(MID_CH, N_ANCHOR * 2)], axis=1)          # (32, 54)
    rpn_head_b = jnp.concatenate([params["loc_b"], params["sco_b"]])
    cls_w = jnp.concatenate([params["cls_loc_w"], params["cls_sco_w"]], axis=1)  # (64, 25)
    cls_b = jnp.concatenate([params["cls_loc_b"], params["cls_sco_b"]])
    return {
        # first layer of each fused stack keeps its raw K (full-dim block, no x padding)
        "ext": _prep_layer(params["ext_w"].reshape(3 * 3 * 4, FEAT_CH), params["ext_b"]),
        "rpn_mid": _prep_layer(params["rpn_w"].reshape(3 * 3 * FEAT_CH, MID_CH), params["rpn_b"]),
        "rpn_head": _prep_layer(rpn_head_w, rpn_head_b, k_pad=_round_up(MID_CH, _LANE)),
        "fc1": _prep_layer(params["fc1_w"], params["fc1_b"]),
        "fc2": _prep_layer(params["fc2_w"], params["fc2_b"], k_pad=_round_up(HIDDEN, _LANE)),
        "cls": _prep_layer(cls_w, cls_b, k_pad=_round_up(HIDDEN, _LANE)),
    }


# ----------------------------------------------------------------------------
# FasterRCNN forward
# ----------------------------------------------------------------------------
def faster_rcnn_forward(prepared, x_nchw, scale=(1.0, 1.0)):
    # TODO(synk): `scale` only drives ProposalCreator's min-size filter in the
    #             reference; that filter is not implemented here.
    img_size = x_nchw.shape[2:]
    x = jnp.transpose(x_nchw, (0, 2, 3, 1)).astype(jnp.bfloat16)  # NCHW -> NHWC, bf16
    n = x.shape[0]

    # ---- extractor: 3x3 conv + ReLU (pallas call 1, bf16 output) ----
    cols, _, hh, ww = _im2col(x, 3, 3, 1, 1)                      # (N*H*W, 36) bf16
    h = pallas_mlp(cols, [prepared["ext"]], ("relu",), FEAT_CH, out_dtype=jnp.bfloat16)
    h = h.reshape(n, hh, ww, FEAT_CH)                             # bf16 feature map

    # ---- RPN: mid conv + fused loc/score heads (pallas call 2; mid stays in VMEM) ----
    rcols, _, _, _ = _im2col(h, 3, 3, 1, 1)                       # (N*H*W, 288) bf16
    rpn_out = pallas_mlp(rcols, [prepared["rpn_mid"], prepared["rpn_head"]],
                         ("relu", None), N_ANCHOR * 6)            # (N*H*W, 36+18) f32
    rpn_locs = rpn_out[:, : N_ANCHOR * 4].reshape(n, hh * ww * N_ANCHOR, 4)
    rpn_scores = rpn_out[:, N_ANCHOR * 4:].reshape(n, hh * ww * N_ANCHOR, 2)

    anchor = generate_anchors(hh, ww, feat_stride=1)

    # ---- proposals: vmapped over the batch (no per-image Python unroll) ----
    rois = jax.vmap(
        lambda loc, sco: propose(loc, sco, anchor, img_size, N_POST)
    )(rpn_locs, rpn_scores)                                       # (N, N_POST, 4)
    rois = rois.reshape(-1, 4)                                    # (N*N_POST, 4)
    roi_indices = jnp.repeat(jnp.arange(n, dtype=jnp.int32), N_POST)

    # ---- head: exact RoI gather (wrapper) + fused fc1/fc2/cls heads (pallas call 3) ----
    flat = roi_pool_gather(h, rois, roi_indices, ROI_SIZE, 1.0)   # (R, C*7*7) bf16
    head_out = pallas_mlp(flat, [prepared["fc1"], prepared["fc2"], prepared["cls"]],
                          ("relu", "relu", None), N_CLASS * 5)    # (R, 20+5) f32
    roi_cls_locs = head_out[:, : N_CLASS * 4]
    roi_scores = head_out[:, N_CLASS * 4:]

    return roi_cls_locs, roi_scores, rois, roi_indices


if __name__ == "__main__":
    key = jax.random.PRNGKey(0)
    pkey, xkey = jax.random.split(key)
    params = init_params(pkey)
    prepared = prepare_params(params)          # fuse/pad/bf16-cast weights once
    x = jax.random.normal(xkey, (2, 4, 16, 16), jnp.float32)  # NCHW, like torch

    fwd = jax.jit(faster_rcnn_forward)
    roi_cls_locs, roi_scores, rois, roi_indices = fwd(prepared, x)
    jax.block_until_ready((roi_cls_locs, roi_scores, rois, roi_indices))

    assert roi_cls_locs.shape == (2 * N_POST, N_CLASS * 4)
    assert roi_scores.shape == (2 * N_POST, N_CLASS)
    assert rois.shape == (2 * N_POST, 4)
    assert roi_indices.shape == (2 * N_POST,)
    print("KERNEL_OK")
</pallas_src>

<mosaic_0001>
module attributes {stable_mosaic.version = 11 : i64} {
  func.func @_mlp_kernel(%arg0: i32, %arg1: memref<256x36xbf16, #tpu.memory_space<vmem>>, %arg2: memref<36x128xbf16, #tpu.memory_space<vmem>>, %arg3: memref<1x128xf32, #tpu.memory_space<vmem>>, %arg4: memref<256x128xbf16, #tpu.memory_space<vmem>>) attributes {dimension_semantics = [#tpu.dimension_semantics<parallel>], iteration_bounds = array<i64: 2>, scalar_prefetch = 0 : i64, scratch_operands = 0 : i64, tpu.core_type = #tpu.core_type<tc>, window_params = [{transform_indices = @transform_0, window_bounds = array<i64: 256, 36>}, {pipeline_mode = #tpu.pipeline_mode<synchronous>, transform_indices = @transform_1, window_bounds = array<i64: 36, 128>}, {pipeline_mode = #tpu.pipeline_mode<synchronous>, transform_indices = @transform_2, window_bounds = array<i64: 1, 128>}, {transform_indices = @transform_3, window_bounds = array<i64: 256, 128>}]} {
    %c0 = arith.constant 0 : index
    %c0_0 = arith.constant 0 : index
    %0 = vector.load %arg1[%c0, %c0_0] : memref<256x36xbf16, #tpu.memory_space<vmem>>, vector<256x36xbf16>
    %c0_1 = arith.constant 0 : index
    %c0_2 = arith.constant 0 : index
    %1 = vector.load %arg2[%c0_1, %c0_2] : memref<36x128xbf16, #tpu.memory_space<vmem>>, vector<36x128xbf16>
    %c0_3 = arith.constant 0 : index
    %c0_4 = arith.constant 0 : index
    %2 = vector.load %arg3[%c0_3, %c0_4] : memref<1x128xf32, #tpu.memory_space<vmem>>, vector<1x128xf32>
    %cst = arith.constant dense<0.000000e+00> : vector<256x128xf32>
    %3 = tpu.matmul %0, %1, %cst {dimension_numbers = #tpu.dot_dimension_numbers<[1], [0], [0], [1], [0, 0, 1, 1], [], []>} : vector<256x36xbf16>, vector<36x128xbf16>, vector<256x128xf32> -> vector<256x128xf32>
    %4 = vector.broadcast %2 : vector<1x128xf32> to vector<256x128xf32>
    %5 = arith.addf %3, %4 : vector<256x128xf32>
    %cst_5 = arith.constant 0.000000e+00 : f32
    %6 = vector.broadcast %cst_5 : f32 to vector<256x128xf32>
    %7 = arith.maximumf %5, %6 : vector<256x128xf32>
    %8 = arith.truncf %7 : vector<256x128xf32> to vector<256x128xbf16>
    %c0_6 = arith.constant 0 : index
    %c0_7 = arith.constant 0 : index
    %9 = vector.load %arg4[%c0_6, %c0_7] : memref<256x128xbf16, #tpu.memory_space<vmem>>, vector<256x128xbf16>
    tpu.vector_store %arg4[%c0_6, %c0_7], %8 {strides = array<i32>} : memref<256x128xbf16, #tpu.memory_space<vmem>>, vector<256x128xbf16>,
    return
  }
  func.func @transform_0(%arg0: i32) -> (i32, i32) {
    %c0_i32 = arith.constant 0 : i32
    %c0_i32_0 = arith.constant 0 : i32
    return %arg0, %c0_i32 : i32, i32
  }
  func.func @transform_1(%arg0: i32) -> (i32, i32) {
    %c0_i32 = arith.constant 0 : i32
    %c0_i32_0 = arith.constant 0 : i32
    %c0_i32_1 = arith.constant 0 : i32
    return %c0_i32, %c0_i32_0 : i32, i32
  }
  func.func @transform_2(%arg0: i32) -> (i32, i32) {
    %c0_i32 = arith.constant 0 : i32
    %c0_i32_0 = arith.constant 0 : i32
    %c0_i32_1 = arith.constant 0 : i32
    return %c0_i32, %c0_i32_0 : i32, i32
  }
  func.func @transform_3(%arg0: i32) -> (i32, i32) {
    %c0_i32 = arith.constant 0 : i32
    %c0_i32_0 = arith.constant 0 : i32
    return %arg0, %c0_i32 : i32, i32
  }
}

module attributes {stable_mosaic.version = 11 : i64} {
  func.func @_mlp_kernel(%arg0: i32, %arg1: memref<256x288xbf16, #tpu.memory_space<vmem>>, %arg2: memref<288x128xbf16, #tpu.memory_space<vmem>>, %arg3: memref<1x128xf32, #tpu.memory_space<vmem>>, %arg4: memref<128x128xbf16, #tpu.memory_space<vmem>>, %arg5: memref<1x128xf32, #tpu.memory_space<vmem>>, %arg6: memref<256x128xf32, #tpu.memory_space<vmem>>) attributes {dimension_semantics = [#tpu.dimension_semantics<parallel>], iteration_bounds = array<i64: 2>, scalar_prefetch = 0 : i64, scratch_operands = 0 : i64, tpu.core_type = #tpu.core_type<tc>, window_params = [{transform_indices = @transform_0, window_bounds = array<i64: 256, 288>}, {pipeline_mode = #tpu.pipeline_mode<synchronous>, transform_indices = @transform_1, window_bounds = array<i64: 288, 128>}, {pipeline_mode = #tpu.pipeline_mode<synchronous>, transform_indices = @transform_2, window_bounds = array<i64: 1, 128>}, {pipeline_mode = #tpu.pipeline_mode<synchronous>, transform_indices = @transform_3, window_bounds = array<i64: 128, 128>}, {pipeline_mode = #tpu.pipeline_mode<synchronous>, transform_indices = @transform_4, window_bounds = array<i64: 1, 128>}, {transform_indices = @transform_5, window_bounds = array<i64: 256, 128>}]} {
    %c0 = arith.constant 0 : index
    %c0_0 = arith.constant 0 : index
    %0 = vector.load %arg1[%c0, %c0_0] : memref<256x288xbf16, #tpu.memory_space<vmem>>, vector<256x288xbf16>
    %c0_1 = arith.constant 0 : index
    %c0_2 = arith.constant 0 : index
    %1 = vector.load %arg2[%c0_1, %c0_2] : memref<288x128xbf16, #tpu.memory_space<vmem>>, vector<288x128xbf16>
    %c0_3 = arith.constant 0 : index
    %c0_4 = arith.constant 0 : index
    %2 = vector.load %arg3[%c0_3, %c0_4] : memref<1x128xf32, #tpu.memory_space<vmem>>, vector<1x128xf32>
    %cst = arith.constant dense<0.000000e+00> : vector<256x128xf32>
    %3 = tpu.matmul %0, %1, %cst {dimension_numbers = #tpu.dot_dimension_numbers<[1], [0], [0], [1], [0, 0, 1, 1], [], []>} : vector<256x288xbf16>, vector<288x128xbf16>, vector<256x128xf32> -> vector<256x128xf32>
    %4 = vector.broadcast %2 : vector<1x128xf32> to vector<256x128xf32>
    %5 = arith.addf %3, %4 : vector<256x128xf32>
    %cst_5 = arith.constant 0.000000e+00 : f32
    %6 = vector.broadcast %cst_5 : f32 to vector<256x128xf32>
    %7 = arith.maximumf %5, %6 : vector<256x128xf32>
    %c0_6 = arith.constant 0 : index
    %c0_7 = arith.constant 0 : index
    %8 = vector.load %arg4[%c0_6, %c0_7] : memref<128x128xbf16, #tpu.memory_space<vmem>>, vector<128x128xbf16>
    %c0_8 = arith.constant 0 : index
    %c0_9 = arith.constant 0 : index
    %9 = vector.load %arg5[%c0_8, %c0_9] : memref<1x128xf32, #tpu.memory_space<vmem>>, vector<1x128xf32>
    %10 = arith.truncf %7 : vector<256x128xf32> to vector<256x128xbf16>
    %cst_10 = arith.constant dense<0.000000e+00> : vector<256x128xf32>
    %11 = tpu.matmul %10, %8, %cst_10 {dimension_numbers = #tpu.dot_dimension_numbers<[1], [0], [0], [1], [0, 0, 1, 1], [], []>} : vector<256x128xbf16>, vector<128x128xbf16>, vector<256x128xf32> -> vector<256x128xf32>
    %12 = vector.broadcast %9 : vector<1x128xf32> to vector<256x128xf32>
    %13 = arith.addf %11, %12 : vector<256x128xf32>
    %c0_11 = arith.constant 0 : index
    %c0_12 = arith.constant 0 : index
    %14 = vector.load %arg6[%c0_11, %c0_12] : memref<256x128xf32, #tpu.memory_space<vmem>>, vector<256x128xf32>
    tpu.vector_store %arg6[%c0_11, %c0_12], %13 {strides = array<i32>} : memref<256x128xf32, #tpu.memory_space<vmem>>, vector<256x128xf32>,
    return
  }
  func.func @transform_0(%arg0: i32) -> (i32, i32) {
    %c0_i32 = arith.constant 0 : i32
    %c0_i32_0 = arith.constant 0 : i32
    return %arg0, %c0_i32 : i32, i32
  }
  func.func @transform_1(%arg0: i32) -> (i32, i32) {
    %c0_i32 = arith.constant 0 : i32
    %c0_i32_0 = arith.constant 0 : i32
    %c0_i32_1 = arith.constant 0 : i32
    return %c0_i32, %c0_i32_0 : i32, i32
  }
  func.func @transform_2(%arg0: i32) -> (i32, i32) {
    %c0_i32 = arith.constant 0 : i32
    %c0_i32_0 = arith.constant 0 : i32
    %c0_i32_1 = arith.constant 0 : i32
    return %c0_i32, %c0_i32_0 : i32, i32
  }
  func.func @transform_3(%arg0: i32) -> (i32, i32) {
    %c0_i32 = arith.constant 0 : i32
    %c0_i32_0 = arith.constant 0 : i32
    %c0_i32_1 = arith.constant 0 : i32
    return %c0_i32, %c0_i32_0 : i32, i32
  }
  func.func @transform_4(%arg0: i32) -> (i32, i32) {
    %c0_i32 = arith.constant 0 : i32
    %c0_i32_0 = arith.constant 0 : i32
    %c0_i32_1 = arith.constant 0 : i32
    return %c0_i32, %c0_i32_0 : i32, i32
  }
  func.func @transform_5(%arg0: i32) -> (i32, i32) {
    %c0_i32 = arith.constant 0 : i32
    %c0_i32_0 = arith.constant 0 : i32
    return %arg0, %c0_i32 : i32, i32
  }
}

module attributes {stable_mosaic.version = 11 : i64} {
  func.func @_mlp_kernel(%arg0: i32, %arg1: memref<64x1568xbf16, #tpu.memory_space<vmem>>, %arg2: memref<1568x128xbf16, #tpu.memory_space<vmem>>, %arg3: memref<1x128xf32, #tpu.memory_space<vmem>>, %arg4: memref<128x128xbf16, #tpu.memory_space<vmem>>, %arg5: memref<1x128xf32, #tpu.memory_space<vmem>>, %arg6: memref<128x128xbf16, #tpu.memory_space<vmem>>, %arg7: memref<1x128xf32, #tpu.memory_space<vmem>>, %arg8: memref<64x128xf32, #tpu.memory_space<vmem>>) attributes {dimension_semantics = [#tpu.dimension_semantics<parallel>], iteration_bounds = array<i64: 1>, scalar_prefetch = 0 : i64, scratch_operands = 0 : i64, tpu.core_type = #tpu.core_type<tc>, window_params = [{transform_indices = @transform_0, window_bounds = array<i64: 64, 1568>}, {pipeline_mode = #tpu.pipeline_mode<synchronous>, transform_indices = @transform_1, window_bounds = array<i64: 1568, 128>}, {pipeline_mode = #tpu.pipeline_mode<synchronous>, transform_indices = @transform_2, window_bounds = array<i64: 1, 128>}, {pipeline_mode = #tpu.pipeline_mode<synchronous>, transform_indices = @transform_3, window_bounds = array<i64: 128, 128>}, {pipeline_mode = #tpu.pipeline_mode<synchronous>, transform_indices = @transform_4, window_bounds = array<i64: 1, 128>}, {pipeline_mode = #tpu.pipeline_mode<synchronous>, transform_indices = @transform_5, window_bounds = array<i64: 128, 128>}, {pipeline_mode = #tpu.pipeline_mode<synchronous>, transform_indices = @transform_6, window_bounds = array<i64: 1, 128>}, {transform_indices = @transform_7, window_bounds = array<i64: 64, 128>}]} {
    %c0 = arith.constant 0 : index
    %c0_0 = arith.constant 0 : index
    %0 = vector.load %arg1[%c0, %c0_0] : memref<64x1568xbf16, #tpu.memory_space<vmem>>, vector<64x1568xbf16>
    %c0_1 = arith.constant 0 : index
    %c0_2 = arith.constant 0 : index
    %1 = vector.load %arg2[%c0_1, %c0_2] : memref<1568x128xbf16, #tpu.memory_space<vmem>>, vector<1568x128xbf16>
    %c0_3 = arith.constant 0 : index
    %c0_4 = arith.constant 0 : index
    %2 = vector.load %arg3[%c0_3, %c0_4] : memref<1x128xf32, #tpu.memory_space<vmem>>, vector<1x128xf32>
    %cst = arith.constant dense<0.000000e+00> : vector<64x128xf32>
    %3 = tpu.matmul %0, %1, %cst {dimension_numbers = #tpu.dot_dimension_numbers<[1], [0], [0], [1], [0, 0, 1, 1], [], []>} : vector<64x1568xbf16>, vector<1568x128xbf16>, vector<64x128xf32> -> vector<64x128xf32>
    %4 = vector.broadcast %2 : vector<1x128xf32> to vector<64x128xf32>
    %5 = arith.addf %3, %4 : vector<64x128xf32>
    %cst_5 = arith.constant 0.000000e+00 : f32
    %6 = vector.broadcast %cst_5 : f32 to vector<64x128xf32>
    %7 = arith.maximumf %5, %6 : vector<64x128xf32>
    %c0_6 = arith.constant 0 : index
    %c0_7 = arith.constant 0 : index
    %8 = vector.load %arg4[%c0_6, %c0_7] : memref<128x128xbf16, #tpu.memory_space<vmem>>, vector<128x128xbf16>
    %c0_8 = arith.constant 0 : index
    %c0_9 = arith.constant 0 : index
    %9 = vector.load %arg5[%c0_8, %c0_9] : memref<1x128xf32, #tpu.memory_space<vmem>>, vector<1x128xf32>
    %10 = arith.truncf %7 : vector<64x128xf32> to vector<64x128xbf16>
    %cst_10 = arith.constant dense<0.000000e+00> : vector<64x128xf32>
    %11 = tpu.matmul %10, %8, %cst_10 {dimension_numbers = #tpu.dot_dimension_numbers<[1], [0], [0], [1], [0, 0, 1, 1], [], []>} : vector<64x128xbf16>, vector<128x128xbf16>, vector<64x128xf32> -> vector<64x128xf32>
    %12 = vector.broadcast %9 : vector<1x128xf32> to vector<64x128xf32>
    %13 = arith.addf %11, %12 : vector<64x128xf32>
    %cst_11 = arith.constant 0.000000e+00 : f32
    %14 = vector.broadcast %cst_11 : f32 to vector<64x128xf32>
    %15 = arith.maximumf %13, %14 : vector<64x128xf32>
    %c0_12 = arith.constant 0 : index
    %c0_13 = arith.constant 0 : index
    %16 = vector.load %arg6[%c0_12, %c0_13] : memref<128x128xbf16, #tpu.memory_space<vmem>>, vector<128x128xbf16>
    %c0_14 = arith.constant 0 : index
    %c0_15 = arith.constant 0 : index
    %17 = vector.load %arg7[%c0_14, %c0_15] : memref<1x128xf32, #tpu.memory_space<vmem>>, vector<1x128xf32>
    %18 = arith.truncf %15 : vector<64x128xf32> to vector<64x128xbf16>
    %cst_16 = arith.constant dense<0.000000e+00> : vector<64x128xf32>
    %19 = tpu.matmul %18, %16, %cst_16 {dimension_numbers = #tpu.dot_dimension_numbers<[1], [0], [0], [1], [0, 0, 1, 1], [], []>} : vector<64x128xbf16>, vector<128x128xbf16>, vector<64x128xf32> -> vector<64x128xf32>
    %20 = vector.broadcast %17 : vector<1x128xf32> to vector<64x128xf32>
    %21 = arith.addf %19, %20 : vector<64x128xf32>
    %c0_17 = arith.constant 0 : index
    %c0_18 = arith.constant 0 : index
    %22 = vector.load %arg8[%c0_17, %c0_18] : memref<64x128xf32, #tpu.memory_space<vmem>>, vector<64x128xf32>
    tpu.vector_store %arg8[%c0_17, %c0_18], %21 {strides = array<i32>} : memref<64x128xf32, #tpu.memory_space<vmem>>, vector<64x128xf32>,
    return
  }
  func.func @transform_0(%arg0: i32) -> (i32, i32) {
    %c0_i32 = arith.constant 0 : i32
    %c0_i32_0 = arith.constant 0 : i32
    return %arg0, %c0_i32 : i32, i32
  }
  func.func @transform_1(%arg0: i32) -> (i32, i32) {
    %c0_i32 = arith.constant 0 : i32
    %c0_i32_0 = arith.constant 0 : i32
    %c0_i32_1 = arith.constant 0 : i32
    return %c0_i32, %c0_i32_0 : i32, i32
  }
  func.func @transform_2(%arg0: i32) -> (i32, i32) {
    %c0_i32 = arith.constant 0 : i32
    %c0_i32_0 = arith.constant 0 : i32
    %c0_i32_1 = arith.constant 0 : i32
    return %c0_i32, %c0_i32_0 : i32, i32
  }
  func.func @transform_3(%arg0: i32) -> (i32, i32) {
    %c0_i32 = arith.constant 0 : i32
    %c0_i32_0 = arith.constant 0 : i32
    %c0_i32_1 = arith.constant 0 : i32
    return %c0_i32, %c0_i32_0 : i32, i32
  }
  func.func @transform_4(%arg0: i32) -> (i32, i32) {
    %c0_i32 = arith.constant 0 : i32
    %c0_i32_0 = arith.constant 0 : i32
    %c0_i32_1 = arith.constant 0 : i32
    return %c0_i32, %c0_i32_0 : i32, i32
  }
  func.func @transform_5(%arg0: i32) -> (i32, i32) {
    %c0_i32 = arith.constant 0 : i32
    %c0_i32_0 = arith.constant 0 : i32
    %c0_i32_1 = arith.constant 0 : i32
    return %c0_i32, %c0_i32_0 : i32, i32
  }
  func.func @transform_6(%arg0: i32) -> (i32, i32) {
    %c0_i32 = arith.constant 0 : i32
    %c0_i32_0 = arith.constant 0 : i32
    %c0_i32_1 = arith.constant 0 : i32
    return %c0_i32, %c0_i32_0 : i32, i32
  }
  func.func @transform_7(%arg0: i32) -> (i32, i32) {
    %c0_i32 = arith.constant 0 : i32
    %c0_i32_0 = arith.constant 0 : i32
    return %arg0, %c0_i32 : i32, i32
  }
}

</mosaic_0001>

<llo_original>
// kernel: faster_rcnn_forward.3
$region0: #{faster_rcnn_forward.3}
  #allocation0 [shape = 'u32[]', space=smem, size = 0x4, offset = 0x4, fixed_abs, tag = 'smem constant byte address 0x4 - core index']
  #allocation1 [shape = 'u32[72,128]{1,0:T(1,128)}', space=vmem, size = 0x9000, scoped, tag = 'internal scratch']
  %s0 = inlined_call_operand.vmem [shape: bf16[512,36], index: 0, kind: input, shape index: {}]
  %s1 = inlined_call_operand.vmem [shape: bf16[36,128], index: 1, kind: input, shape index: {}]
  %s2 = inlined_call_operand.vmem [shape: f32[1,128], index: 2, kind: input, shape index: {}]
  %s3 = inlined_call_operand.vmem [shape: bf16[512,128], index: 3, kind: output, shape index: {}]
  %s4 = sld [smem:[#allocation0]]
  $region45: #{faster_rcnn_forward.3} parent=0
    _
  %s6 = ssub.s32 1, %s4
  %s7 = scalar_select 0, %s6, %s4
  loop: start=0, step=1, limit=4
  $region2: #{faster_rcnn_forward.3} parent=0 // loop_pre_header
    _
  $region3: #{faster_rcnn_forward.3} parent=0 // loop_header
    %s9 = sphi 0, %s13
    %p10 = scmp.ge.s32.totalorder %s9, 4
    %s19 = sphi 0, %s21
    %s22 = sphi 0, %s19
    %s23 = sphi 0, %s22
    %s39 = sphi 0, %s23
    %s43 = sphi 0, %s43
    %s45 = sphi 0, %s43
    %s46 = sphi 0, %s45
    %s60 = sphi 0, %s46
    %s64 = sphi 0, %s64
    %s66 = sphi 0, %s64
    %s67 = sphi 0, %s66
    %s81 = sphi 0, %s67
    %s87 = sphi 0, %s89
    %s90 = sphi 0, %s87
    %s91 = sphi 0, %s90
    %s107 = sphi 0, %s91
  $region4: #{faster_rcnn_forward.3} parent=0 // loop_header_branch
    %12 = sbr.rel (%p10) target = $region8
  $region5: #{faster_rcnn_forward.3} parent=0 // loop_body
    %s14 = ssub.s32 %s9, 1
    %s15 = ssub.s32 %s9, 2
    %s16 = sadd.s32 %s9, 1
    %s17 = ssub.s32 %s9, %s16
    %p18 = scmp.eq.s32.totalorder %s17, 0
    %s20 = sadd.s32 %s19, 1
    %s21 = scalar_select %p18, %s19, %s20
    %p24 = pneg %p18
    %p25 = scmp.eq.s32.totalorder %s9, 1
    %p26 = por %p24, %p25
    %p27 = scmp.ne.s32.totalorder %s19, %s22
    %p28 = scmp.eq.s32.totalorder %s9, 0
    %p29 = por %p27, %p28
    %p30 = scmp.ne.s32.totalorder %s19, %s22
    %p31 = scmp.eq.s32.totalorder %s14, 1
    %p32 = por %p30, %p31
    %p33 = scmp.ne.s32.totalorder %s22, %s23
    %p34 = scmp.eq.s32.totalorder %s14, 0
    %p35 = por %p33, %p34
    %p36 = scmp.ne.s32.totalorder %s22, %s23
    %p37 = scmp.eq.s32.totalorder %s15, 1
    %p38 = por %p36, %p37
    %p40 = scmp.ne.s32.totalorder %s23, %s39
    %p41 = scmp.eq.s32.totalorder %s15, 0
    %p42 = por %p40, %p41
    %s44 = sadd.s32 %s43, 1
    %p47 = scmp.eq.s32.totalorder %s9, 1
    %p48 = scmp.ne.s32.totalorder %s43, %s45
    %p49 = scmp.eq.s32.totalorder %s9, 0
    %p50 = por %p48, %p49
    %p51 = scmp.ne.s32.totalorder %s43, %s45
    %p52 = scmp.eq.s32.totalorder %s14, 1
    %p53 = por %p51, %p52
    %p54 = scmp.ne.s32.totalorder %s45, %s46
    %p55 = scmp.eq.s32.totalorder %s14, 0
    %p56 = por %p54, %p55
    %p57 = scmp.ne.s32.totalorder %s45, %s46
    %p58 = scmp.eq.s32.totalorder %s15, 1
    %p59 = por %p57, %p58
    %p61 = scmp.ne.s32.totalorder %s46, %s60
    %p62 = scmp.eq.s32.totalorder %s15, 0
    %p63 = por %p61, %p62
    %s65 = sadd.s32 %s64, 1
    %p68 = scmp.eq.s32.totalorder %s9, 1
    %p69 = scmp.ne.s32.totalorder %s64, %s66
    %p70 = scmp.eq.s32.totalorder %s9, 0
    %p71 = por %p69, %p70
    %p72 = scmp.ne.s32.totalorder %s64, %s66
    %p73 = scmp.eq.s32.totalorder %s14, 1
    %p74 = por %p72, %p73
    %p75 = scmp.ne.s32.totalorder %s66, %s67
    %p76 = scmp.eq.s32.totalorder %s14, 0
    %p77 = por %p75, %p76
    %p78 = scmp.ne.s32.totalorder %s66, %s67
    %p79 = scmp.eq.s32.totalorder %s15, 1
    %p80 = por %p78, %p79
    %p82 = scmp.ne.s32.totalorder %s67, %s81
    %p83 = scmp.eq.s32.totalorder %s15, 0
    %p84 = por %p82, %p83
    %s85 = ssub.s32 %s9, %s16
    %p86 = scmp.eq.s32.totalorder %s85, 0
    %s88 = sadd.s32 %s87, 1
    %s89 = scalar_select %p86, %s87, %s88
    %p92 = pneg %p86
    %p93 = scmp.eq.s32.totalorder %s9, 1
    %p94 = por %p92, %p93
    %p95 = scmp.ne.s32.totalorder %s87, %s90
    %p96 = scmp.eq.s32.totalorder %s9, 0
    %p97 = por %p95, %p96
    %p98 = scmp.ne.s32.totalorder %s87, %s90
    %p99 = scmp.eq.s32.totalorder %s14, 1
    %p100 = por %p98, %p99
    %p101 = scmp.ne.s32.totalorder %s90, %s91
    %p102 = scmp.eq.s32.totalorder %s14, 0
    %p103 = por %p101, %p102
    %p104 = scmp.ne.s32.totalorder %s90, %s91
    %p105 = scmp.eq.s32.totalorder %s15, 1
    %p106 = por %p104, %p105
    %p108 = scmp.ne.s32.totalorder %s91, %s107
    %p109 = scmp.eq.s32.totalorder %s15, 0
    %p110 = por %p108, %p109
    %p111 = scmp.le.s32.totalorder 1, %s9
    %p112 = scmp.lt.s32.totalorder %s9, 3
    %p113 = pnand %p111, %p112
    %p114 = pneg %p113
    // Predicated region
    $region9: #{faster_rcnn_forward.3} parent=5 // pred_check
      _
    $region10: #{faster_rcnn_forward.3} parent=5 // pred_check_branch
      %116 = sbr.rel (%p113) target = $region12
    $region11: #{faster_rcnn_forward.3} parent=5 // pred_region
      %s117 = ssub.s32 %s9, 1
      // Predicated region
      $region13: #{faster_rcnn_forward.3} parent=11 // pred_check
        %p118 = pneg %p56
      $region14: #{faster_rcnn_forward.3} parent=11 // pred_check_branch
        %120 = sbr.rel (%p118) target = $region16
      $region15: #{faster_rcnn_forward.3} parent=11 // pred_region
        _
      $region16: #{faster_rcnn_forward.3} parent=11 // pred_fallthru
        _
      // Predicated region
      $region17: #{faster_rcnn_forward.3} parent=11 // pred_check
        %p121 = pneg %p77
      $region18: #{faster_rcnn_forward.3} parent=11 // pred_check_branch
        %123 = sbr.rel (%p121) target = $region20
      $region19: #{faster_rcnn_forward.3} parent=11 // pred_region
        _
      $region20: #{faster_rcnn_forward.3} parent=11 // pred_fallthru
        _
    $region12: #{faster_rcnn_forward.3} parent=5 // pred_fallthru
      _
    %p124 = scmp.lt.s32.totalorder %s9, 2
    // Predicated region
    $region21: #{faster_rcnn_forward.3} parent=5 // pred_check
      %p125 = pneg %p124
    $region22: #{faster_rcnn_forward.3} parent=5 // pred_check_branch
      %127 = sbr.rel (%p125) target = $region24
    $region23: #{faster_rcnn_forward.3} parent=5 // pred_region
      // Predicated region
      $region25: #{faster_rcnn_forward.3} parent=23 // pred_check
        %p128 = pneg %p29
      $region26: #{faster_rcnn_forward.3} parent=23 // pred_check_branch
        %130 = sbr.rel (%p128) target = $region28
      $region27: #{faster_rcnn_forward.3} parent=23 // pred_region
        %s131 = smul.u32 32, %s9
        %p132 = scmp.lt.s32.totalorder %s131, 63
        %s133 = scalar_select %p132, %s131, 63
        %s134 = smul.addr %s133, 4
        %s135 = scalar_lea.vmem %s0, %s134
        %s136 = smul.u32 32, %s9
      $region28: #{faster_rcnn_forward.3} parent=23 // pred_fallthru
        _
    $region24: #{faster_rcnn_forward.3} parent=5 // pred_fallthru
      _
    %p137 = scmp.le.s32.totalorder 1, %s9
    %p138 = scmp.lt.s32.totalorder %s9, 3
    %p139 = pnand %p137, %p138
    %p140 = pneg %p139
    // Predicated region
    $region29: #{faster_rcnn_forward.3} parent=5 // pred_check
      _
    $region30: #{faster_rcnn_forward.3} parent=5 // pred_check_branch
      %142 = sbr.rel (%p139) target = $region32
    $region31: #{faster_rcnn_forward.3} parent=5 // pred_region
      %s143 = ssub.s32 %s9, 1
      %s144 = smul.u32 32, %s14
      %p145 = scmp.lt.s32.totalorder %s144, 63
      %s146 = scalar_select %p145, %s144, 63
      %s147 = smul.addr %s146, 4
      %s148 = scalar_lea.vmem %s0, %s147
      %p149 = pneg %p35
      %p150 = pneg %p32
      %p151 = pneg %p56
      %p152 = pneg %p53
      %p153 = pneg %p77
      %p154 = pneg %p74
      %p155 = pneg %p103
      %p156 = pneg %p100
      %s157 = smul.u32 32, %s14
      %p158 = scmp.lt.s32.totalorder %s157, 63
      %s159 = scalar_select %p158, %s157, 63
      %s160 = smul.addr %s159, 4
      %s161 = scalar_lea.vmem %s3, %s160
      %s162 = smul.u32 32, %s14
      %p163 = scmp.lt.s32.totalorder %s162, 63
      %s164 = scalar_select %p163, %s162, 63
      %s165 = smul.addr %s164, 4
      %s166 = scalar_lea.vmem %s0, %s165
      %s167 = smul.u32 32, %s14
      %s168 = smul.u32 32, %s14
      %p169 = scmp.lt.s32.totalorder %s168, 63
      %s170 = scalar_select %p169, %s168, 63
      %s171 = smul.addr %s170, 4
      %s172 = scalar_lea.vmem %s3, %s171
      %s173 = smul.u32 32, %s14
      %v175 = vld [vmem:[%s166] sm:$0xf]
      %v176 = vld [vmem:[%s166 + $0x4] sm:$0xf]
      %v177 = vld [vmem:[%s166 + $0x8] sm:$0xf]
      %v178 = vld [vmem:[%s166 + $0xc] sm:$0xf]
      %v179 = vld [vmem:[%s166 + $0x10] sm:$0xf]
      %v180 = vld [vmem:[%s166 + $0x14] sm:$0xf]
      %v181 = vld [vmem:[%s166 + $0x18] sm:$0xf]
      %v182 = vld [vmem:[%s166 + $0x1c] sm:$0xf]
      %v183 = vld [vmem:[%s166 + $0x20] sm:$0xf]
      %v184 = vld [vmem:[%s166 + $0x24] sm:$0xf]
      %v185 = vld [vmem:[%s166 + $0x28] sm:$0xf]
      %v186 = vld [vmem:[%s166 + $0x2c] sm:$0xf]
      %v187 = vld [vmem:[%s166 + $0x30] sm:$0xf]
      %v188 = vld [vmem:[%s166 + $0x34] sm:$0xf]
      %v189 = vld [vmem:[%s166 + $0x38] sm:$0xf]
      %v190 = vld [vmem:[%s166 + $0x3c] sm:$0xf]
      %v191 = vld [vmem:[%s166 + $0x40] sm:$0xf]
      %v192 = vld [vmem:[%s166 + $0x44] sm:$0xf]
      %v193 = vld [vmem:[%s166 + $0x48] sm:$0xf]
      %v194 = vld [vmem:[%s166 + $0x4c] sm:$0xf]
      %v195 = vld [vmem:[%s166 + $0x50] sm:$0xf]
      %v196 = vld [vmem:[%s166 + $0x54] sm:$0xf]
      %v197 = vld [vmem:[%s166 + $0x58] sm:$0xf]
      %v198 = vld [vmem:[%s166 + $0x5c] sm:$0xf]
      %v199 = vld [vmem:[%s166 + $0x60] sm:$0xf]
      %v200 = vld [vmem:[%s166 + $0x64] sm:$0xf]
      %v201 = vld [vmem:[%s166 + $0x68] sm:$0xf]
      %v202 = vld [vmem:[%s166 + $0x6c] sm:$0xf]
      %v203 = vld [vmem:[%s166 + $0x70] sm:$0xf]
      %v204 = vld [vmem:[%s166 + $0x74] sm:$0xf]
      %v205 = vld [vmem:[%s166 + $0x78] sm:$0xf]
      %v206 = vld [vmem:[%s166 + $0x7c] sm:$0xf]
      %v207 = vld [vmem:[%s1] sm:$0xf]
      %v208 = vld [vmem:[%s1 + $0x4] sm:$0xf]
      %v209 = vld [vmem:[%s1 + $0x8] sm:$0xf]
      %v210 = vld [vmem:[%s1 + $0xc] sm:$0xf]
      %v211 = vld [vmem:[%s1 + $0x10] sm:$0x3]
      %v212 = vld [vmem:[%s2] sm:$0x1]
      %v214 = vperm.slane %v212, 0
      %v248 = vunpack.c.l.b16 %v175
      %v249 = vunpack.c.l.b16 %v176
      %v250 = vunpack.c.l.b16 %v177
      %v251 = vunpack.c.l.b16 %v178
      %v252 = vunpack.c.l.b16 %v179
      %v253 = vunpack.c.l.b16 %v180
      %v254 = vunpack.c.l.b16 %v181
      %v255 = vunpack.c.l.b16 %v182
      %v256 = vunpack.c.l.b16 %v183
      %v257 = vunpack.c.l.b16 %v184
      %v258 = vunpack.c.l.b16 %v185
      %v259 = vunpack.c.l.b16 %v186
      %v260 = vunpack.c.l.b16 %v187
      %v261 = vunpack.c.l.b16 %v188
      %v262 = vunpack.c.l.b16 %v189
      %v263 = vunpack.c.l.b16 %v190
      %v264 = vunpack.c.l.b16 %v191
      %v265 = vunpack.c.l.b16 %v192
      %v266 = vunpack.c.l.b16 %v193
      %v267 = vunpack.c.l.b16 %v194
      %v268 = vunpack.c.l.b16 %v195
      %v269 = vunpack.c.l.b16 %v196
      %v270 = vunpack.c.l.b16 %v197
      %v271 = vunpack.c.l.b16 %v198
      %v272 = vunpack.c.l.b16 %v199
      %v273 = vunpack.c.l.b16 %v200
      %v274 = vunpack.c.l.b16 %v201
      %v275 = vunpack.c.l.b16 %v202
      %v276 = vunpack.c.l.b16 %v203
      %v277 = vunpack.c.l.b16 %v204
      %v278 = vunpack.c.l.b16 %v205
      %v279 = vunpack.c.l.b16 %v206
      %v280 = vpack.c.b16 %v249, %v248
      %v281 = vpack.c.b16 %v251, %v250
      %v282 = vpack.c.b16 %v253, %v252
      %v283 = vpack.c.b16 %v255, %v254
      %v284 = vpack.c.b16 %v257, %v256
      %v285 = vpack.c.b16 %v259, %v258
      %v286 = vpack.c.b16 %v261, %v260
      %v287 = vpack.c.b16 %v263, %v262
      %v288 = vpack.c.b16 %v265, %v264
      %v289 = vpack.c.b16 %v267, %v266
      %v290 = vpack.c.b16 %v269, %v268
      %v291 = vpack.c.b16 %v271, %v270
      %v292 = vpack.c.b16 %v273, %v272
      %v293 = vpack.c.b16 %v275, %v274
      %v294 = vpack.c.b16 %v277, %v276
      %v295 = vpack.c.b16 %v279, %v278
      %v301 = vunpack.c.l.b16 %v207
      %v302 = vunpack.c.l.b16 %v208
      %v303 = vunpack.c.l.b16 %v209
      %v304 = vunpack.c.l.b16 %v210
      %v305 = vunpack.c.l.b16 %v211
      %v306 = vpack.c.b16 %v302, %v301
      %v307 = vpack.c.b16 %v304, %v303
      %v308 = vpack.c.b16 %v305, %v305
      %vm311 = vcmask 293888
      %v313 = vsel %vm311, %v280, 0
      %v316 = vsel %vm311, %v281, 0
      %v319 = vsel %vm311, %v282, 0
      %v322 = vsel %vm311, %v283, 0
      %v325 = vsel %vm311, %v284, 0
      %v328 = vsel %vm311, %v285, 0
      %v331 = vsel %vm311, %v286, 0
      %v334 = vsel %vm311, %v287, 0
      %v337 = vsel %vm311, %v288, 0
      %v340 = vsel %vm311, %v289, 0
      %v343 = vsel %vm311, %v290, 0
      %v346 = vsel %vm311, %v291, 0
      %v349 = vsel %vm311, %v292, 0
      %v352 = vsel %vm311, %v293, 0
      %v355 = vsel %vm311, %v294, 0
      %v358 = vsel %vm311, %v295, 0
      %vm360 = vcmask 1041408
      %v362 = vsel %vm360, %v308, 0
      %364 = vmatpush.bf16.msra.mxu0 0
      %365 = vmatpush.bf16.msra.mxu0 0
      %366 = vmatpush.bf16.msra.mxu0 0
      %367 = vmatpush.bf16.msra.mxu0 0
      %368 = vmatpush.bf16.msra.mxu0 0
      %369 = vmatpush.bf16.msra.mxu0 %v362
      %370 = vmatpush.bf16.msra.mxu0 %v307
      %371 = vmatpush.bf16.msra.mxu0 %v306
      %372 = vmatmul.bf16.gmra.mxu0 %v313
      %v373 = vpop.f32.mrf.mxu0
      %v374 = vadd.f32 %v214, %v373
      %v375 = vpop.f32.mrf.mxu0
      %v376 = vadd.f32 %v214, %v375
      %377 = vmatmul.bf16.gmra.mxu0 %v316
      %v378 = vpop.f32.mrf.mxu0
      %v379 = vadd.f32 %v214, %v378
      %v380 = vpop.f32.mrf.mxu0
      %v381 = vadd.f32 %v214, %v380
      %382 = vmatmul.bf16.gmra.mxu0 %v319
      %v383 = vpop.f32.mrf.mxu0
      %v384 = vadd.f32 %v214, %v383
      %v385 = vpop.f32.mrf.mxu0
      %v386 = vadd.f32 %v214, %v385
      %387 = vmatmul.bf16.gmra.mxu0 %v322
      %v388 = vpop.f32.mrf.mxu0
      %v389 = vadd.f32 %v214, %v388
      %v390 = vpop.f32.mrf.mxu0
      %v391 = vadd.f32 %v214, %v390
      %392 = vmatmul.bf16.gmra.mxu0 %v325
      %v393 = vpop.f32.mrf.mxu0
      %v394 = vadd.f32 %v214, %v393
      %v395 = vpop.f32.mrf.mxu0
      %v396 = vadd.f32 %v214, %v395
      %397 = vmatmul.bf16.gmra.mxu0 %v328
      %v398 = vpop.f32.mrf.mxu0
      %v399 = vadd.f32 %v214, %v398
      %v400 = vpop.f32.mrf.mxu0
      %v401 = vadd.f32 %v214, %v400
      %402 = vmatmul.bf16.gmra.mxu0 %v331
      %v403 = vpop.f32.mrf.mxu0
      %v404 = vadd.f32 %v214, %v403
      %v405 = vpop.f32.mrf.mxu0
      %v406 = vadd.f32 %v214, %v405
      %407 = vmatmul.bf16.gmra.mxu0 %v334
      %v408 = vpop.f32.mrf.mxu0
      %v409 = vadd.f32 %v214, %v408
      %v410 = vpop.f32.mrf.mxu0
      %v411 = vadd.f32 %v214, %v410
      %412 = vmatmul.bf16.gmra.mxu0 %v337
      %v413 = vpop.f32.mrf.mxu0
      %v414 = vadd.f32 %v214, %v413
      %v415 = vpop.f32.mrf.mxu0
      %v416 = vadd.f32 %v214, %v415
      %417 = vmatmul.bf16.gmra.mxu0 %v340
      %v418 = vpop.f32.mrf.mxu0
      %v419 = vadd.f32 %v214, %v418
      %v420 = vpop.f32.mrf.mxu0
      %v421 = vadd.f32 %v214, %v420
      %422 = vmatmul.bf16.gmra.mxu0 %v343
      %v423 = vpop.f32.mrf.mxu0
      %v424 = vadd.f32 %v214, %v423
      %v425 = vpop.f32.mrf.mxu0
      %v426 = vadd.f32 %v214, %v425
      %427 = vmatmul.bf16.gmra.mxu0 %v346
      %v428 = vpop.f32.mrf.mxu0
      %v429 = vadd.f32 %v214, %v428
      %v430 = vpop.f32.mrf.mxu0
      %v431 = vadd.f32 %v214, %v430
      %432 = vmatmul.bf16.gmra.mxu0 %v349
      %v433 = vpop.f32.mrf.mxu0
      %v434 = vadd.f32 %v214, %v433
      %v435 = vpop.f32.mrf.mxu0
      %v436 = vadd.f32 %v214, %v435
      %437 = vmatmul.bf16.gmra.mxu0 %v352
      %v438 = vpop.f32.mrf.mxu0
      %v439 = vadd.f32 %v214, %v438
      %v440 = vpop.f32.mrf.mxu0
      %v441 = vadd.f32 %v214, %v440
      %442 = vmatmul.bf16.gmra.mxu0 %v355
      %v443 = vpop.f32.mrf.mxu0
      %v444 = vadd.f32 %v214, %v443
      %v445 = vpop.f32.mrf.mxu0
      %v446 = vadd.f32 %v214, %v445
      %447 = vmatmul.bf16.gmra.mxu0 %v358
      %v448 = vpop.f32.mrf.mxu0
      %v449 = vadd.f32 %v214, %v448
      %v450 = vpop.f32.mrf.mxu0
      %v451 = vadd.f32 %v214, %v450
      %452 = vdwg.mxu0
      %v453 = vmax.f32 %v374, 0.0
      %v454 = vmax.f32 %v376, 0.0
      %v455 = vmax.f32 %v379, 0.0
      %v456 = vmax.f32 %v381, 0.0
      %v457 = vmax.f32 %v384, 0.0
      %v458 = vmax.f32 %v386, 0.0
      %v459 = vmax.f32 %v389, 0.0
      %v460 = vmax.f32 %v391, 0.0
      %v461 = vmax.f32 %v394, 0.0
      %v462 = vmax.f32 %v396, 0.0
      %v463 = vmax.f32 %v399, 0.0
      %v464 = vmax.f32 %v401, 0.0
      %v465 = vmax.f32 %v404, 0.0
      %v466 = vmax.f32 %v406, 0.0
      %v467 = vmax.f32 %v409, 0.0
      %v468 = vmax.f32 %v411, 0.0
      %v469 = vmax.f32 %v414, 0.0
      %v470 = vmax.f32 %v416, 0.0
      %v471 = vmax.f32 %v419, 0.0
      %v472 = vmax.f32 %v421, 0.0
      %v473 = vmax.f32 %v424, 0.0
      %v474 = vmax.f32 %v426, 0.0
      %v475 = vmax.f32 %v429, 0.0
      %v476 = vmax.f32 %v431, 0.0
      %v477 = vmax.f32 %v434, 0.0
      %v478 = vmax.f32 %v436, 0.0
      %v479 = vmax.f32 %v439, 0.0
      %v480 = vmax.f32 %v441, 0.0
      %v481 = vmax.f32 %v444, 0.0
      %v482 = vmax.f32 %v446, 0.0
      %v483 = vmax.f32 %v449, 0.0
      %v484 = vmax.f32 %v451, 0.0
      %v485 = vpack.c.bf16 %v453, %v453
      %v486 = vpack.c.bf16 %v454, %v454
      %v487 = vpack.c.bf16 %v455, %v455
      %v488 = vpack.c.bf16 %v456, %v456
      %v489 = vpack.c.bf16 %v457, %v457
      %v490 = vpack.c.bf16 %v458, %v458
      %v491 = vpack.c.bf16 %v459, %v459
      %v492 = vpack.c.bf16 %v460, %v460
      %v493 = vpack.c.bf16 %v461, %v461
      %v494 = vpack.c.bf16 %v462, %v462
      %v495 = vpack.c.bf16 %v463, %v463
      %v496 = vpack.c.bf16 %v464, %v464
      %v497 = vpack.c.bf16 %v465, %v465
      %v498 = vpack.c.bf16 %v466, %v466
      %v499 = vpack.c.bf16 %v467, %v467
      %v500 = vpack.c.bf16 %v468, %v468
      %v501 = vpack.c.bf16 %v469, %v469
      %v502 = vpack.c.bf16 %v470, %v470
      %v503 = vpack.c.bf16 %v471, %v471
      %v504 = vpack.c.bf16 %v472, %v472
      %v505 = vpack.c.bf16 %v473, %v473
      %v506 = vpack.c.bf16 %v474, %v474
      %v507 = vpack.c.bf16 %v475, %v475
      %v508 = vpack.c.bf16 %v476, %v476
      %v509 = vpack.c.bf16 %v477, %v477
      %v510 = vpack.c.bf16 %v478, %v478
      %v511 = vpack.c.bf16 %v479, %v479
      %v512 = vpack.c.bf16 %v480, %v480
      %v513 = vpack.c.bf16 %v481, %v481
      %v514 = vpack.c.bf16 %v482, %v482
      %v515 = vpack.c.bf16 %v483, %v483
      %v516 = vpack.c.bf16 %v484, %v484
      %517 = vst [vmem:[%s172] sm:$0xf] %v485
      %518 = vst [vmem:[%s172 + $0x4] sm:$0xf] %v486
      %519 = vst [vmem:[%s172 + $0x8] sm:$0xf] %v487
      %520 = vst [vmem:[%s172 + $0xc] sm:$0xf] %v488
      %521 = vst [vmem:[%s172 + $0x10] sm:$0xf] %v489
      %522 = vst [vmem:[%s172 + $0x14] sm:$0xf] %v490
      %523 = vst [vmem:[%s172 + $0x18] sm:$0xf] %v491
      %524 = vst [vmem:[%s172 + $0x1c] sm:$0xf] %v492
      %525 = vst [vmem:[%s172 + $0x20] sm:$0xf] %v493
      %526 = vst [vmem:[%s172 + $0x24] sm:$0xf] %v494
      %527 = vst [vmem:[%s172 + $0x28] sm:$0xf] %v495
      %528 = vst [vmem:[%s172 + $0x2c] sm:$0xf] %v496
      %529 = vst [vmem:[%s172 + $0x30] sm:$0xf] %v497
      %530 = vst [vmem:[%s172 + $0x34] sm:$0xf] %v498
      %531 = vst [vmem:[%s172 + $0x38] sm:$0xf] %v499
      %532 = vst [vmem:[%s172 + $0x3c] sm:$0xf] %v500
      %533 = vst [vmem:[%s172 + $0x40] sm:$0xf] %v501
      %534 = vst [vmem:[%s172 + $0x44] sm:$0xf] %v502
      %535 = vst [vmem:[%s172 + $0x48] sm:$0xf] %v503
      %536 = vst [vmem:[%s172 + $0x4c] sm:$0xf] %v504
      %537 = vst [vmem:[%s172 + $0x50] sm:$0xf] %v505
      %538 = vst [vmem:[%s172 + $0x54] sm:$0xf] %v506
      %539 = vst [vmem:[%s172 + $0x58] sm:$0xf] %v507
      %540 = vst [vmem:[%s172 + $0x5c] sm:$0xf] %v508
      %541 = vst [vmem:[%s172 + $0x60] sm:$0xf] %v509
      %542 = vst [vmem:[%s172 + $0x64] sm:$0xf] %v510
      %543 = vst [vmem:[%s172 + $0x68] sm:$0xf] %v511
      %544 = vst [vmem:[%s172 + $0x6c] sm:$0xf] %v512
      %545 = vst [vmem:[%s172 + $0x70] sm:$0xf] %v513
      %546 = vst [vmem:[%s172 + $0x74] sm:$0xf] %v514
      %547 = vst [vmem:[%s172 + $0x78] sm:$0xf] %v515
      %548 = vst [vmem:[%s172 + $0x7c] sm:$0xf] %v516
      %s549 = smul.u32 32, %s14
      %p550 = scmp.lt.s32.totalorder %s549, 63
      %s551 = scalar_select %p550, %s549, 63
      %s552 = smul.addr %s551, 4
      %s553 = scalar_lea.vmem %s3, %s552
      // Predicated region
      $region33: #{faster_rcnn_forward.3} parent=31 // pred_check
        %p554 = pneg %p100
      $region34: #{faster_rcnn_forward.3} parent=31 // pred_check_branch
        %556 = sbr.rel (%p554) target = $region36
      $region35: #{faster_rcnn_forward.3} parent=31 // pred_region
        %s557 = smul.u32 32, %s14
      $region36: #{faster_rcnn_forward.3} parent=31 // pred_fallthru
        _
    $region32: #{faster_rcnn_forward.3} parent=5 // pred_fallthru
      _
    %p558 = scmp.le.s32.totalorder 2, %s9
    // Predicated region
    $region37: #{faster_rcnn_forward.3} parent=5 // pred_check
      %p559 = pneg %p558
    $region38: #{faster_rcnn_forward.3} parent=5 // pred_check_branch
      %561 = sbr.rel (%p559) target = $region40
    $region39: #{faster_rcnn_forward.3} parent=5 // pred_region
      %s562 = ssub.s32 %s9, 2
      // Predicated region
      $region41: #{faster_rcnn_forward.3} parent=39 // pred_check
        %p563 = pneg %p106
      $region42: #{faster_rcnn_forward.3} parent=39 // pred_check_branch
        %565 = sbr.rel (%p563) target = $region44
      $region43: #{faster_rcnn_forward.3} parent=39 // pred_region
        %s566 = smul.u32 32, %s15
        %p567 = scmp.lt.s32.totalorder %s566, 63
        %s568 = scalar_select %p567, %s566, 63
        %s569 = smul.addr %s568, 4
        %s570 = scalar_lea.vmem %s3, %s569
      $region44: #{faster_rcnn_forward.3} parent=39 // pred_fallthru
        _
    $region40: #{faster_rcnn_forward.3} parent=5 // pred_fallthru
      _
  $region6: #{faster_rcnn_forward.3} parent=0 // loop_footer
    %s13 = sadd.s32 1, %s9
  $region7: #{faster_rcnn_forward.3} parent=0 // loop_footer_branch
    %8 = sbr.rel target = $region3
  $region8: #{faster_rcnn_forward.3} parent=0 // loop_exit
    _

// kernel: faster_rcnn_forward.4
$region0: #{faster_rcnn_forward.4}
  #allocation0 [shape = 'u32[]', space=smem, size = 0x4, offset = 0x4, fixed_abs, tag = 'smem constant byte address 0x4 - core index']
  #allocation1 [shape = 'u32[72,128]{1,0:T(1,128)}', space=vmem, size = 0x9000, scoped, tag = 'internal scratch']
  %s0 = inlined_call_operand.vmem [shape: bf16[512,288], index: 0, kind: input, shape index: {}]
  %s1 = inlined_call_operand.vmem [shape: bf16[288,128], index: 1, kind: input, shape index: {}]
  %s2 = inlined_call_operand.vmem [shape: f32[1,128], index: 2, kind: input, shape index: {}]
  %s3 = inlined_call_operand.vmem [shape: bf16[128,128], index: 3, kind: input, shape index: {}]
  %s4 = inlined_call_operand.vmem [shape: f32[1,128], index: 4, kind: input, shape index: {}]
  %s5 = inlined_call_operand.vmem [shape: f32[512,128], index: 5, kind: output, shape index: {}]
  %s6 = sld [smem:[#allocation0]]
  $region53: #{faster_rcnn_forward.4} parent=0
    _
  %s8 = ssub.s32 1, %s6
  %s9 = scalar_select 0, %s8, %s6
  loop: start=0, step=1, limit=4
  $region2: #{faster_rcnn_forward.4} parent=0 // loop_pre_header
    _
  $region3: #{faster_rcnn_forward.4} parent=0 // loop_header
    %s11 = sphi 0, %s15
    %p12 = scmp.ge.s32.totalorder %s11, 4
    %s21 = sphi 0, %s23
    %s24 = sphi 0, %s21
    %s25 = sphi 0, %s24
    %s41 = sphi 0, %s25
    %s45 = sphi 0, %s45
    %s47 = sphi 0, %s45
    %s48 = sphi 0, %s47
    %s62 = sphi 0, %s48
    %s66 = sphi 0, %s66
    %s68 = sphi 0, %s66
    %s69 = sphi 0, %s68
    %s83 = sphi 0, %s69
    %s87 = sphi 0, %s87
    %s89 = sphi 0, %s87
    %s90 = sphi 0, %s89
    %s104 = sphi 0, %s90
    %s108 = sphi 0, %s108
    %s110 = sphi 0, %s108
    %s111 = sphi 0, %s110
    %s125 = sphi 0, %s111
    %s131 = sphi 0, %s133
    %s134 = sphi 0, %s131
    %s135 = sphi 0, %s134
    %s151 = sphi 0, %s135
  $region4: #{faster_rcnn_forward.4} parent=0 // loop_header_branch
    %14 = sbr.rel (%p12) target = $region8
  $region5: #{faster_rcnn_forward.4} parent=0 // loop_body
    %s16 = ssub.s32 %s11, 1
    %s17 = ssub.s32 %s11, 2
    %s18 = sadd.s32 %s11, 1
    %s19 = ssub.s32 %s11, %s18
    %p20 = scmp.eq.s32.totalorder %s19, 0
    %s22 = sadd.s32 %s21, 1
    %s23 = scalar_select %p20, %s21, %s22
    %p26 = pneg %p20
    %p27 = scmp.eq.s32.totalorder %s11, 1
    %p28 = por %p26, %p27
    %p29 = scmp.ne.s32.totalorder %s21, %s24
    %p30 = scmp.eq.s32.totalorder %s11, 0
    %p31 = por %p29, %p30
    %p32 = scmp.ne.s32.totalorder %s21, %s24
    %p33 = scmp.eq.s32.totalorder %s16, 1
    %p34 = por %p32, %p33
    %p35 = scmp.ne.s32.totalorder %s24, %s25
    %p36 = scmp.eq.s32.totalorder %s16, 0
    %p37 = por %p35, %p36
    %p38 = scmp.ne.s32.totalorder %s24, %s25
    %p39 = scmp.eq.s32.totalorder %s17, 1
    %p40 = por %p38, %p39
    %p42 = scmp.ne.s32.totalorder %s25, %s41
    %p43 = scmp.eq.s32.totalorder %s17, 0
    %p44 = por %p42, %p43
    %s46 = sadd.s32 %s45, 1
    %p49 = scmp.eq.s32.totalorder %s11, 1
    %p50 = scmp.ne.s32.totalorder %s45, %s47
    %p51 = scmp.eq.s32.totalorder %s11, 0
    %p52 = por %p50, %p51
    %p53 = scmp.ne.s32.totalorder %s45, %s47
    %p54 = scmp.eq.s32.totalorder %s16, 1
    %p55 = por %p53, %p54
    %p56 = scmp.ne.s32.totalorder %s47, %s48
    %p57 = scmp.eq.s32.totalorder %s16, 0
    %p58 = por %p56, %p57
    %p59 = scmp.ne.s32.totalorder %s47, %s48
    %p60 = scmp.eq.s32.totalorder %s17, 1
    %p61 = por %p59, %p60
    %p63 = scmp.ne.s32.totalorder %s48, %s62
    %p64 = scmp.eq.s32.totalorder %s17, 0
    %p65 = por %p63, %p64
    %s67 = sadd.s32 %s66, 1
    %p70 = scmp.eq.s32.totalorder %s11, 1
    %p71 = scmp.ne.s32.totalorder %s66, %s68
    %p72 = scmp.eq.s32.totalorder %s11, 0
    %p73 = por %p71, %p72
    %p74 = scmp.ne.s32.totalorder %s66, %s68
    %p75 = scmp.eq.s32.totalorder %s16, 1
    %p76 = por %p74, %p75
    %p77 = scmp.ne.s32.totalorder %s68, %s69
    %p78 = scmp.eq.s32.totalorder %s16, 0
    %p79 = por %p77, %p78
    %p80 = scmp.ne.s32.totalorder %s68, %s69
    %p81 = scmp.eq.s32.totalorder %s17, 1
    %p82 = por %p80, %p81
    %p84 = scmp.ne.s32.totalorder %s69, %s83
    %p85 = scmp.eq.s32.totalorder %s17, 0
    %p86 = por %p84, %p85
    %s88 = sadd.s32 %s87, 1
    %p91 = scmp.eq.s32.totalorder %s11, 1
    %p92 = scmp.ne.s32.totalorder %s87, %s89
    %p93 = scmp.eq.s32.totalorder %s11, 0
    %p94 = por %p92, %p93
    %p95 = scmp.ne.s32.totalorder %s87, %s89
    %p96 = scmp.eq.s32.totalorder %s16, 1
    %p97 = por %p95, %p96
    %p98 = scmp.ne.s32.totalorder %s89, %s90
    %p99 = scmp.eq.s32.totalorder %s16, 0
    %p100 = por %p98, %p99
    %p101 = scmp.ne.s32.totalorder %s89, %s90
    %p102 = scmp.eq.s32.totalorder %s17, 1
    %p103 = por %p101, %p102
    %p105 = scmp.ne.s32.totalorder %s90, %s104
    %p106 = scmp.eq.s32.totalorder %s17, 0
    %p107 = por %p105, %p106
    %s109 = sadd.s32 %s108, 1
    %p112 = scmp.eq.s32.totalorder %s11, 1
    %p113 = scmp.ne.s32.totalorder %s108, %s110
    %p114 = scmp.eq.s32.totalorder %s11, 0
    %p115 = por %p113, %p114
    %p116 = scmp.ne.s32.totalorder %s108, %s110
    %p117 = scmp.eq.s32.totalorder %s16, 1
    %p118 = por %p116, %p117
    %p119 = scmp.ne.s32.totalorder %s110, %s111
    %p120 = scmp.eq.s32.totalorder %s16, 0
    %p121 = por %p119, %p120
    %p122 = scmp.ne.s32.totalorder %s110, %s111
    %p123 = scmp.eq.s32.totalorder %s17, 1
    %p124 = por %p122, %p123
    %p126 = scmp.ne.s32.totalorder %s111, %s125
    %p127 = scmp.eq.s32.totalorder %s17, 0
    %p128 = por %p126, %p127
    %s129 = ssub.s32 %s11, %s18
    %p130 = scmp.eq.s32.totalorder %s129, 0
    %s132 = sadd.s32 %s131, 1
    %s133 = scalar_select %p130, %s131, %s132
    %p136 = pneg %p130
    %p137 = scmp.eq.s32.totalorder %s11, 1
    %p138 = por %p136, %p137
    %p139 = scmp.ne.s32.totalorder %s131, %s134
    %p140 = scmp.eq.s32.totalorder %s11, 0
    %p141 = por %p139, %p140
    %p142 = scmp.ne.s32.totalorder %s131, %s134
    %p143 = scmp.eq.s32.totalorder %s16, 1
    %p144 = por %p142, %p143
    %p145 = scmp.ne.s32.totalorder %s134, %s135
    %p146 = scmp.eq.s32.totalorder %s16, 0
    %p147 = por %p145, %p146
    %p148 = scmp.ne.s32.totalorder %s134, %s135
    %p149 = scmp.eq.s32.totalorder %s17, 1
    %p150 = por %p148, %p149
    %p152 = scmp.ne.s32.totalorder %s135, %s151
    %p153 = scmp.eq.s32.totalorder %s17, 0
    %p154 = por %p152, %p153
    %p155 = scmp.le.s32.totalorder 1, %s11
    %p156 = scmp.lt.s32.totalorder %s11, 3
    %p157 = pnand %p155, %p156
    %p158 = pneg %p157
    // Predicated region
    $region9: #{faster_rcnn_forward.4} parent=5 // pred_check
      _
    $region10: #{faster_rcnn_forward.4} parent=5 // pred_check_branch
      %160 = sbr.rel (%p157) target = $region12
    $region11: #{faster_rcnn_forward.4} parent=5 // pred_region
      %s161 = ssub.s32 %s11, 1
      // Predicated region
      $region13: #{faster_rcnn_forward.4} parent=11 // pred_check
        %p162 = pneg %p58
      $region14: #{faster_rcnn_forward.4} parent=11 // pred_check_branch
        %164 = sbr.rel (%p162) target = $region16
      $region15: #{faster_rcnn_forward.4} parent=11 // pred_region
        _
      $region16: #{faster_rcnn_forward.4} parent=11 // pred_fallthru
        _
      // Predicated region
      $region17: #{faster_rcnn_forward.4} parent=11 // pred_check
        %p165 = pneg %p79
      $region18: #{faster_rcnn_forward.4} parent=11 // pred_check_branch
        %167 = sbr.rel (%p165) target = $region20
      $region19: #{faster_rcnn_forward.4} parent=11 // pred_region
        _
      $region20: #{faster_rcnn_forward.4} parent=11 // pred_fallthru
        _
      // Predicated region
      $region21: #{faster_rcnn_forward.4} parent=11 // pred_check
        %p168 = pneg %p100
      $region22: #{faster_rcnn_forward.4} parent=11 // pred_check_branch
        %170 = sbr.rel (%p168) target = $region24
      $region23: #{faster_rcnn_forward.4} parent=11 // pred_region
        _
      $region24: #{faster_rcnn_forward.4} parent=11 // pred_fallthru
        _
      // Predicated region
      $region25: #{faster_rcnn_forward.4} parent=11 // pred_check
        %p171 = pneg %p121
      $region26: #{faster_rcnn_forward.4} parent=11 // pred_check_branch
        %173 = sbr.rel (%p171) target = $region28
      $region27: #{faster_rcnn_forward.4} parent=11 // pred_region
        _
      $region28: #{faster_rcnn_forward.4} parent=11 // pred_fallthru
        _
    $region12: #{faster_rcnn_forward.4} parent=5 // pred_fallthru
      _
    %p174 = scmp.lt.s32.totalorder %s11, 2
    // Predicated region
    $region29: #{faster_rcnn_forward.4} parent=5 // pred_check
      %p175 = pneg %p174
    $region30: #{faster_rcnn_forward.4} parent=5 // pred_check_branch
      %177 = sbr.rel (%p175) target = $region32
    $region31: #{faster_rcnn_forward.4} parent=5 // pred_region
      // Predicated region
      $region33: #{faster_rcnn_forward.4} parent=31 // pred_check
        %p178 = pneg %p31
      $region34: #{faster_rcnn_forward.4} parent=31 // pred_check_branch
        %180 = sbr.rel (%p178) target = $region36
      $region35: #{faster_rcnn_forward.4} parent=31 // pred_region
        %s181 = smul.u32 32, %s11
        %p182 = scmp.lt.s32.totalorder %s181, 63
        %s183 = scalar_select %p182, %s181, 63
        %s184 = smul.addr %s183, 3
        %s185 = smul.addr %s184, 4
        %s186 = scalar_lea.vmem %s0, %s185
        %s187 = smul.u32 32, %s11
      $region36: #{faster_rcnn_forward.4} parent=31 // pred_fallthru
        _
    $region32: #{faster_rcnn_forward.4} parent=5 // pred_fallthru
      _
    %p188 = scmp.le.s32.totalorder 1, %s11
    %p189 = scmp.lt.s32.totalorder %s11, 3
    %p190 = pnand %p188, %p189
    %p191 = pneg %p190
    // Predicated region
    $region37: #{faster_rcnn_forward.4} parent=5 // pred_check
      _
    $region38: #{faster_rcnn_forward.4} parent=5 // pred_check_branch
      %193 = sbr.rel (%p190) target = $region40
    $region39: #{faster_rcnn_forward.4} parent=5 // pred_region
      %s194 = ssub.s32 %s11, 1
      %s195 = smul.u32 32, %s16
      %p196 = scmp.lt.s32.totalorder %s195, 63
      %s197 = scalar_select %p196, %s195, 63
      %s198 = smul.addr %s197, 3
      %s199 = smul.addr %s198, 4
      %s200 = scalar_lea.vmem %s0, %s199
      %p201 = pneg %p37
      %p202 = pneg %p34
      %p203 = pneg %p58
      %p204 = pneg %p55
      %p205 = pneg %p79
      %p206 = pneg %p76
      %p207 = pneg %p100
      %p208 = pneg %p97
      %p209 = pneg %p121
      %p210 = pneg %p118
      %p211 = pneg %p147
      %p212 = pneg %p144
      %s213 = smul.u32 32, %s16
      %p214 = scmp.lt.s32.totalorder %s213, 63
      %s215 = scalar_select %p214, %s213, 63
      %s216 = smul.addr %s215, 8
      %s217 = scalar_lea.vmem %s5, %s216
      %s218 = smul.u32 32, %s16
      %p219 = scmp.lt.s32.totalorder %s218, 63
      %s220 = scalar_select %p219, %s218, 63
      %s221 = smul.addr %s220, 3
      %s222 = smul.addr %s221, 4
      %s223 = scalar_lea.vmem %s0, %s222
      %s224 = smul.u32 32, %s16
      %s225 = smul.u32 32, %s16
      %p226 = scmp.lt.s32.totalorder %s225, 63
      %s227 = scalar_select %p226, %s225, 63
      %s228 = smul.addr %s227, 8
      %s229 = scalar_lea.vmem %s5, %s228
      %s230 = smul.u32 32, %s16
      %v232 = vld [vmem:[%s223] sm:$0xff]
      %v233 = vld [vmem:[%s223 + $0x8] sm:$0xf]
      %v234 = vld [vmem:[%s223 + $0xc] sm:$0xff]
      %v235 = vld [vmem:[%s223 + $0x14] sm:$0xf]
      %v236 = vld [vmem:[%s223 + $0x18] sm:$0xff]
      %v237 = vld [vmem:[%s223 + $0x20] sm:$0xf]
      %v238 = vld [vmem:[%s223 + $0x24] sm:$0xff]
      %v239 = vld [vmem:[%s223 + $0x2c] sm:$0xf]
      %v240 = vld [vmem:[%s223 + $0x30] sm:$0xff]
      %v241 = vld [vmem:[%s223 + $0x38] sm:$0xf]
      %v242 = vld [vmem:[%s223 + $0x3c] sm:$0xff]
      %v243 = vld [vmem:[%s223 + $0x44] sm:$0xf]
      %v244 = vld [vmem:[%s223 + $0x48] sm:$0xff]
      %v245 = vld [vmem:[%s223 + $0x50] sm:$0xf]
      %v246 = vld [vmem:[%s223 + $0x54] sm:$0xff]
      %v247 = vld [vmem:[%s223 + $0x5c] sm:$0xf]
      %v248 = vld [vmem:[%s223 + $0x60] sm:$0xff]
      %v249 = vld [vmem:[%s223 + $0x68] sm:$0xf]
      %v250 = vld [vmem:[%s223 + $0x6c] sm:$0xff]
      %v251 = vld [vmem:[%s223 + $0x74] sm:$0xf]
      %v252 = vld [vmem:[%s223 + $0x78] sm:$0xff]
      %v253 = vld [vmem:[%s223 + $0x80] sm:$0xf]
      %v254 = vld [vmem:[%s223 + $0x84] sm:$0xff]
      %v255 = vld [vmem:[%s223 + $0x8c] sm:$0xf]
      %v256 = vld [vmem:[%s223 + $0x90] sm:$0xff]
      %v257 = vld [vmem:[%s223 + $0x98] sm:$0xf]
      %v258 = vld [vmem:[%s223 + $0x9c] sm:$0xff]
      %v259 = vld [vmem:[%s223 + $0xa4] sm:$0xf]
      %v260 = vld [vmem:[%s223 + $0xa8] sm:$0xff]
      %v261 = vld [vmem:[%s223 + $0xb0] sm:$0xf]
      %v262 = vld [vmem:[%s223 + $0xb4] sm:$0xff]
      %v263 = vld [vmem:[%s223 + $0xbc] sm:$0xf]
      %v264 = vld [vmem:[%s223 + $0xc0] sm:$0xff]
      %v265 = vld [vmem:[%s223 + $0xc8] sm:$0xf]
      %v266 = vld [vmem:[%s223 + $0xcc] sm:$0xff]
      %v267 = vld [vmem:[%s223 + $0xd4] sm:$0xf]
      %v268 = vld [vmem:[%s223 + $0xd8] sm:$0xff]
      %v269 = vld [vmem:[%s223 + $0xe0] sm:$0xf]
      %v270 = vld [vmem:[%s223 + $0xe4] sm:$0xff]
      %v271 = vld [vmem:[%s223 + $0xec] sm:$0xf]
      %v272 = vld [vmem:[%s223 + $0xf0] sm:$0xff]
      %v273 = vld [vmem:[%s223 + $0xf8] sm:$0xf]
      %v274 = vld [vmem:[%s223 + $0xfc] sm:$0xff]
      %v275 = vld [vmem:[%s223 + $0x104] sm:$0xf]
      %v276 = vld [vmem:[%s223 + $0x108] sm:$0xff]
      %v277 = vld [vmem:[%s223 + $0x110] sm:$0xf]
      %v278 = vld [vmem:[%s223 + $0x114] sm:$0xff]
      %v279 = vld [vmem:[%s223 + $0x11c] sm:$0xf]
      %v280 = vld [vmem:[%s223 + $0x120] sm:$0xff]
      %v281 = vld [vmem:[%s223 + $0x128] sm:$0xf]
      %v282 = vld [vmem:[%s223 + $0x12c] sm:$0xff]
      %v283 = vld [vmem:[%s223 + $0x134] sm:$0xf]
      %v284 = vld [vmem:[%s223 + $0x138] sm:$0xff]
      %v285 = vld [vmem:[%s223 + $0x140] sm:$0xf]
      %v286 = vld [vmem:[%s223 + $0x144] sm:$0xff]
      %v287 = vld [vmem:[%s223 + $0x14c] sm:$0xf]
      %v288 = vld [vmem:[%s223 + $0x150] sm:$0xff]
      %v289 = vld [vmem:[%s223 + $0x158] sm:$0xf]
      %v290 = vld [vmem:[%s223 + $0x15c] sm:$0xff]
      %v291 = vld [vmem:[%s223 + $0x164] sm:$0xf]
      %v292 = vld [vmem:[%s223 + $0x168] sm:$0xff]
      %v293 = vld [vmem:[%s223 + $0x170] sm:$0xf]
      %v294 = vld [vmem:[%s223 + $0x174] sm:$0xff]
      %v295 = vld [vmem:[%s223 + $0x17c] sm:$0xf]
      %v296 = vld [vmem:[%s1] sm:$0xf]
      %v297 = vld [vmem:[%s1 + $0x4] sm:$0xf]
      %v298 = vld [vmem:[%s1 + $0x8] sm:$0xf]
      %v299 = vld [vmem:[%s1 + $0xc] sm:$0xf]
      %v300 = vld [vmem:[%s1 + $0x10] sm:$0xf]
      %v301 = vld [vmem:[%s1 + $0x14] sm:$0xf]
      %v302 = vld [vmem:[%s1 + $0x18] sm:$0xf]
      %v303 = vld [vmem:[%s1 + $0x1c] sm:$0xf]
      %v304 = vld [vmem:[%s1 + $0x20] sm:$0xf]
      %v305 = vld [vmem:[%s1 + $0x24] sm:$0xf]
      %v306 = vld [vmem:[%s1 + $0x28] sm:$0xf]
      %v307 = vld [vmem:[%s1 + $0x2c] sm:$0xf]
      %v308 = vld [vmem:[%s1 + $0x30] sm:$0xf]
      %v309 = vld [vmem:[%s1 + $0x34] sm:$0xf]
      %v310 = vld [vmem:[%s1 + $0x38] sm:$0xf]
      %v311 = vld [vmem:[%s1 + $0x3c] sm:$0xf]
      %v312 = vld [vmem:[%s1 + $0x40] sm:$0xf]
      %v313 = vld [vmem:[%s1 + $0x44] sm:$0xf]
      %v314 = vld [vmem:[%s1 + $0x48] sm:$0xf]
      %v315 = vld [vmem:[%s1 + $0x4c] sm:$0xf]
      %v316 = vld [vmem:[%s1 + $0x50] sm:$0xf]
      %v317 = vld [vmem:[%s1 + $0x54] sm:$0xf]
      %v318 = vld [vmem:[%s1 + $0x58] sm:$0xf]
      %v319 = vld [vmem:[%s1 + $0x5c] sm:$0xf]
      %v320 = vld [vmem:[%s1 + $0x60] sm:$0xf]
      %v321 = vld [vmem:[%s1 + $0x64] sm:$0xf]
      %v322 = vld [vmem:[%s1 + $0x68] sm:$0xf]
      %v323 = vld [vmem:[%s1 + $0x6c] sm:$0xf]
      %v324 = vld [vmem:[%s1 + $0x70] sm:$0xf]
      %v325 = vld [vmem:[%s1 + $0x74] sm:$0xf]
      %v326 = vld [vmem:[%s1 + $0x78] sm:$0xf]
      %v327 = vld [vmem:[%s1 + $0x7c] sm:$0xf]
      %v328 = vld [vmem:[%s1 + $0x80] sm:$0xf]
      %v329 = vld [vmem:[%s1 + $0x84] sm:$0xf]
      %v330 = vld [vmem:[%s1 + $0x88] sm:$0xf]
      %v331 = vld [vmem:[%s1 + $0x8c] sm:$0xf]
      %v332 = vld [vmem:[%s2] sm:$0x1]
      %v334 = vperm.slane %v332, 0
      %v400 = vunpack.c.l.b16 %v232
      %v401 = vunpack.c.h.b16 %v232
      %v402 = vunpack.c.l.b16 %v233
      %v403 = vunpack.c.l.b16 %v234
      %v404 = vunpack.c.h.b16 %v234
      %v405 = vunpack.c.l.b16 %v235
      %v406 = vunpack.c.l.b16 %v236
      %v407 = vunpack.c.h.b16 %v236
      %v408 = vunpack.c.l.b16 %v237
      %v409 = vunpack.c.l.b16 %v238
      %v410 = vunpack.c.h.b16 %v238
      %v411 = vunpack.c.l.b16 %v239
      %v412 = vunpack.c.l.b16 %v240
      %v413 = vunpack.c.h.b16 %v240
      %v414 = vunpack.c.l.b16 %v241
      %v415 = vunpack.c.l.b16 %v242
      %v416 = vunpack.c.h.b16 %v242
      %v417 = vunpack.c.l.b16 %v243
      %v418 = vunpack.c.l.b16 %v244
      %v419 = vunpack.c.h.b16 %v244
      %v420 = vunpack.c.l.b16 %v245
      %v421 = vunpack.c.l.b16 %v246
      %v422 = vunpack.c.h.b16 %v246
      %v423 = vunpack.c.l.b16 %v247
      %v424 = vunpack.c.l.b16 %v248
      %v425 = vunpack.c.h.b16 %v248
      %v426 = vunpack.c.l.b16 %v249
      %v427 = vunpack.c.l.b16 %v250
      %v428 = vunpack.c.h.b16 %v250
      %v429 = vunpack.c.l.b16 %v251
      %v430 = vunpack.c.l.b16 %v252
      %v431 = vunpack.c.h.b16 %v252
      %v432 = vunpack.c.l.b16 %v253
      %v433 = vunpack.c.l.b16 %v254
      %v434 = vunpack.c.h.b16 %v254
      %v435 = vunpack.c.l.b16 %v255
      %v436 = vunpack.c.l.b16 %v256
      %v437 = vunpack.c.h.b16 %v256
      %v438 = vunpack.c.l.b16 %v257
      %v439 = vunpack.c.l.b16 %v258
      %v440 = vunpack.c.h.b16 %v258
      %v441 = vunpack.c.l.b16 %v259
      %v442 = vunpack.c.l.b16 %v260
      %v443 = vunpack.c.h.b16 %v260
      %v444 = vunpack.c.l.b16 %v261
      %v445 = vunpack.c.l.b16 %v262
      %v446 = vunpack.c.h.b16 %v262
      %v447 = vunpack.c.l.b16 %v263
      %v448 = vunpack.c.l.b16 %v264
      %v449 = vunpack.c.h.b16 %v264
      %v450 = vunpack.c.l.b16 %v265
      %v451 = vunpack.c.l.b16 %v266
      %v452 = vunpack.c.h.b16 %v266
      %v453 = vunpack.c.l.b16 %v267
      %v454 = vunpack.c.l.b16 %v268
      %v455 = vunpack.c.h.b16 %v268
      %v456 = vunpack.c.l.b16 %v269
      %v457 = vunpack.c.l.b16 %v270
      %v458 = vunpack.c.h.b16 %v270
      %v459 = vunpack.c.l.b16 %v271
      %v460 = vunpack.c.l.b16 %v272
      %v461 = vunpack.c.h.b16 %v272
      %v462 = vunpack.c.l.b16 %v273
      %v463 = vunpack.c.l.b16 %v274
      %v464 = vunpack.c.h.b16 %v274
      %v465 = vunpack.c.l.b16 %v275
      %v466 = vunpack.c.l.b16 %v276
      %v467 = vunpack.c.h.b16 %v276
      %v468 = vunpack.c.l.b16 %v277
      %v469 = vunpack.c.l.b16 %v278
      %v470 = vunpack.c.h.b16 %v278
      %v471 = vunpack.c.l.b16 %v279
      %v472 = vunpack.c.l.b16 %v280
      %v473 = vunpack.c.h.b16 %v280
      %v474 = vunpack.c.l.b16 %v281
      %v475 = vunpack.c.l.b16 %v282
      %v476 = vunpack.c.h.b16 %v282
      %v477 = vunpack.c.l.b16 %v283
      %v478 = vunpack.c.l.b16 %v284
      %v479 = vunpack.c.h.b16 %v284
      %v480 = vunpack.c.l.b16 %v285
      %v481 = vunpack.c.l.b16 %v286
      %v482 = vunpack.c.h.b16 %v286
      %v483 = vunpack.c.l.b16 %v287
      %v484 = vunpack.c.l.b16 %v288
      %v485 = vunpack.c.h.b16 %v288
      %v486 = vunpack.c.l.b16 %v289
      %v487 = vunpack.c.l.b16 %v290
      %v488 = vunpack.c.h.b16 %v290
      %v489 = vunpack.c.l.b16 %v291
      %v490 = vunpack.c.l.b16 %v292
      %v491 = vunpack.c.h.b16 %v292
      %v492 = vunpack.c.l.b16 %v293
      %v493 = vunpack.c.l.b16 %v294
      %v494 = vunpack.c.h.b16 %v294
      %v495 = vunpack.c.l.b16 %v295
      %v496 = vpack.c.b16 %v403, %v400
      %v497 = vpack.c.b16 %v404, %v401
      %v498 = vpack.c.b16 %v405, %v402
      %v499 = vpack.c.b16 %v409, %v406
      %v500 = vpack.c.b16 %v410, %v407
      %v501 = vpack.c.b16 %v411, %v408
      %v502 = vpack.c.b16 %v415, %v412
      %v503 = vpack.c.b16 %v416, %v413
      %v504 = vpack.c.b16 %v417, %v414
      %v505 = vpack.c.b16 %v421, %v418
      %v506 = vpack.c.b16 %v422, %v419
      %v507 = vpack.c.b16 %v423, %v420
      %v508 = vpack.c.b16 %v427, %v424
      %v509 = vpack.c.b16 %v428, %v425
      %v510 = vpack.c.b16 %v429, %v426
      %v511 = vpack.c.b16 %v433, %v430
      %v512 = vpack.c.b16 %v434, %v431
      %v513 = vpack.c.b16 %v435, %v432
      %v514 = vpack.c.b16 %v439, %v436
      %v515 = vpack.c.b16 %v440, %v437
      %v516 = vpack.c.b16 %v441, %v438
      %v517 = vpack.c.b16 %v445, %v442
      %v518 = vpack.c.b16 %v446, %v443
      %v519 = vpack.c.b16 %v447, %v444
      %v520 = vpack.c.b16 %v451, %v448
      %v521 = vpack.c.b16 %v452, %v449
      %v522 = vpack.c.b16 %v453, %v450
      %v523 = vpack.c.b16 %v457, %v454
      %v524 = vpack.c.b16 %v458, %v455
      %v525 = vpack.c.b16 %v459, %v456
      %v526 = vpack.c.b16 %v463, %v460
      %v527 = vpack.c.b16 %v464, %v461
      %v528 = vpack.c.b16 %v465, %v462
      %v529 = vpack.c.b16 %v469, %v466
      %v530 = vpack.c.b16 %v470, %v467
      %v531 = vpack.c.b16 %v471, %v468
      %v532 = vpack.c.b16 %v475, %v472
      %v533 = vpack.c.b16 %v476, %v473
      %v534 = vpack.c.b16 %v477, %v474
      %v535 = vpack.c.b16 %v481, %v478
      %v536 = vpack.c.b16 %v482, %v479
      %v537 = vpack.c.b16 %v483, %v480
      %v538 = vpack.c.b16 %v487, %v484
      %v539 = vpack.c.b16 %v488, %v485
      %v540 = vpack.c.b16 %v489, %v486
      %v541 = vpack.c.b16 %v493, %v490
      %v542 = vpack.c.b16 %v494, %v491
      %v543 = vpack.c.b16 %v495, %v492
      %v612 = vunpack.c.l.b16 %v296
      %v613 = vunpack.c.l.b16 %v297
      %v614 = vunpack.c.l.b16 %v298
      %v615 = vunpack.c.l.b16 %v299
      %v616 = vunpack.c.l.b16 %v300
      %v617 = vunpack.c.l.b16 %v301
      %v618 = vunpack.c.l.b16 %v302
      %v619 = vunpack.c.l.b16 %v303
      %v620 = vunpack.c.l.b16 %v304
      %v621 = vunpack.c.l.b16 %v305
      %v622 = vunpack.c.l.b16 %v306
      %v623 = vunpack.c.l.b16 %v307
      %v624 = vunpack.c.l.b16 %v308
      %v625 = vunpack.c.l.b16 %v309
      %v626 = vunpack.c.l.b16 %v310
      %v627 = vunpack.c.l.b16 %v311
      %v628 = vunpack.c.l.b16 %v312
      %v629 = vunpack.c.l.b16 %v313
      %v630 = vunpack.c.l.b16 %v314
      %v631 = vunpack.c.l.b16 %v315
      %v632 = vunpack.c.l.b16 %v316
      %v633 = vunpack.c.l.b16 %v317
      %v634 = vunpack.c.l.b16 %v318
      %v635 = vunpack.c.l.b16 %v319
      %v636 = vunpack.c.l.b16 %v320
      %v637 = vunpack.c.l.b16 %v321
      %v638 = vunpack.c.l.b16 %v322
      %v639 = vunpack.c.l.b16 %v323
      %v640 = vunpack.c.l.b16 %v324
      %v641 = vunpack.c.l.b16 %v325
      %v642 = vunpack.c.l.b16 %v326
      %v643 = vunpack.c.l.b16 %v327
      %v644 = vunpack.c.l.b16 %v328
      %v645 = vunpack.c.l.b16 %v329
      %v646 = vunpack.c.l.b16 %v330
      %v647 = vunpack.c.l.b16 %v331
      %v648 = vpack.c.b16 %v613, %v612
      %v649 = vpack.c.b16 %v615, %v614
      %v650 = vpack.c.b16 %v617, %v616
      %v651 = vpack.c.b16 %v619, %v618
      %v652 = vpack.c.b16 %v621, %v620
      %v653 = vpack.c.b16 %v623, %v622
      %v654 = vpack.c.b16 %v625, %v624
      %v655 = vpack.c.b16 %v627, %v626
      %v656 = vpack.c.b16 %v629, %v628
      %v657 = vpack.c.b16 %v631, %v630
      %v658 = vpack.c.b16 %v633, %v632
      %v659 = vpack.c.b16 %v635, %v634
      %v660 = vpack.c.b16 %v637, %v636
      %v661 = vpack.c.b16 %v639, %v638
      %v662 = vpack.c.b16 %v641, %v640
      %v663 = vpack.c.b16 %v643, %v642
      %v664 = vpack.c.b16 %v645, %v644
      %v665 = vpack.c.b16 %v647, %v646
      %vm684 = vcmask 261120
      %v686 = vsel %vm684, %v498, 0
      %v689 = vsel %vm684, %v501, 0
      %v692 = vsel %vm684, %v504, 0
      %v695 = vsel %vm684, %v507, 0
      %v698 = vsel %vm684, %v510, 0
      %v701 = vsel %vm684, %v513, 0
      %v704 = vsel %vm684, %v516, 0
      %v707 = vsel %vm684, %v519, 0
      %v710 = vsel %vm684, %v522, 0
      %v713 = vsel %vm684, %v525, 0
      %v716 = vsel %vm684, %v528, 0
      %v719 = vsel %vm684, %v531, 0
      %v722 = vsel %vm684, %v534, 0
      %v725 = vsel %vm684, %v537, 0
      %v728 = vsel %vm684, %v540, 0
      %v731 = vsel %vm684, %v543, 0
      %733 = vmatpush.bf16.msra.mxu0 %v655
      %734 = vmatpush.bf16.msra.mxu0 %v654
      %735 = vmatpush.bf16.msra.mxu0 %v653
      %736 = vmatpush.bf16.msra.mxu0 %v652
      %737 = vmatpush.bf16.msra.mxu0 %v651
      %738 = vmatpush.bf16.msra.mxu0 %v650
      %739 = vmatpush.bf16.msra.mxu0 %v649
      %740 = vmatpush.bf16.msra.mxu0 %v648
      %741 = vmatmul.bf16.gmra.mxu0 %v496
      %v742 = vpop.f32.mrf.mxu0
      %v743 = vadd.f32 %v334, %v742
      %v744 = vpop.f32.mrf.mxu0
      %v745 = vadd.f32 %v334, %v744
      %746 = vmatmul.bf16.gmra.mxu0 %v499
      %v747 = vpop.f32.mrf.mxu0
      %v748 = vadd.f32 %v334, %v747
      %v749 = vpop.f32.mrf.mxu0
      %v750 = vadd.f32 %v334, %v749
      %751 = vmatmul.bf16.gmra.mxu0 %v502
      %v752 = vpop.f32.mrf.mxu0
      %v753 = vadd.f32 %v334, %v752
      %v754 = vpop.f32.mrf.mxu0
      %v755 = vadd.f32 %v334, %v754
      %756 = vmatmul.bf16.gmra.mxu0 %v505
      %v757 = vpop.f32.mrf.mxu0
      %v758 = vadd.f32 %v334, %v757
      %v759 = vpop.f32.mrf.mxu0
      %v760 = vadd.f32 %v334, %v759
      %761 = vmatmul.bf16.gmra.mxu0 %v508
      %v762 = vpop.f32.mrf.mxu0
      %v763 = vadd.f32 %v334, %v762
      %v764 = vpop.f32.mrf.mxu0
      %v765 = vadd.f32 %v334, %v764
      %766 = vmatmul.bf16.gmra.mxu0 %v511
      %v767 = vpop.f32.mrf.mxu0
      %v768 = vadd.f32 %v334, %v767
      %v769 = vpop.f32.mrf.mxu0
      %v770 = vadd.f32 %v334, %v769
      %771 = vmatmul.bf16.gmra.mxu0 %v514
      %v772 = vpop.f32.mrf.mxu0
      %v773 = vadd.f32 %v334, %v772
      %v774 = vpop.f32.mrf.mxu0
      %v775 = vadd.f32 %v334, %v774
      %776 = vmatmul.bf16.gmra.mxu0 %v517
      %v777 = vpop.f32.mrf.mxu0
      %v778 = vadd.f32 %v334, %v777
      %v779 = vpop.f32.mrf.mxu0
      %v780 = vadd.f32 %v334, %v779
      %781 = vmatmul.bf16.gmra.mxu0 %v520
      %v782 = vpop.f32.mrf.mxu0
      %v783 = vadd.f32 %v334, %v782
      %v784 = vpop.f32.mrf.mxu0
      %v785 = vadd.f32 %v334, %v784
      %786 = vmatmul.bf16.gmra.mxu0 %v523
      %v787 = vpop.f32.mrf.mxu0
      %v788 = vadd.f32 %v334, %v787
      %v789 = vpop.f32.mrf.mxu0
      %v790 = vadd.f32 %v334, %v789
      %791 = vmatmul.bf16.gmra.mxu0 %v526
      %v792 = vpop.f32.mrf.mxu0
      %v793 = vadd.f32 %v334, %v792
      %v794 = vpop.f32.mrf.mxu0
      %v795 = vadd.f32 %v334, %v794
      %796 = vmatmul.bf16.gmra.mxu0 %v529
      %v797 = vpop.f32.mrf.mxu0
      %v798 = vadd.f32 %v334, %v797
      %v799 = vpop.f32.mrf.mxu0
      %v800 = vadd.f32 %v334, %v799
      %801 = vmatmul.bf16.gmra.mxu0 %v532
      %v802 = vpop.f32.mrf.mxu0
      %v803 = vadd.f32 %v334, %v802
      %v804 = vpop.f32.mrf.mxu0
      %v805 = vadd.f32 %v334, %v804
      %806 = vmatmul.bf16.gmra.mxu0 %v535
      %v807 = vpop.f32.mrf.mxu0
      %v808 = vadd.f32 %v334, %v807
      %v809 = vpop.f32.mrf.mxu0
      %v810 = vadd.f32 %v334, %v809
      %811 = vmatmul.bf16.gmra.mxu0 %v538
      %v812 = vpop.f32.mrf.mxu0
      %v813 = vadd.f32 %v334, %v812
      %v814 = vpop.f32.mrf.mxu0
      %v815 = vadd.f32 %v334, %v814
      %816 = vmatmul.bf16.gmra.mxu0 %v541
      %v817 = vpop.f32.mrf.mxu0
      %v818 = vadd.f32 %v334, %v817
      %v819 = vpop.f32.mrf.mxu0
      %v820 = vadd.f32 %v334, %v819
      %821 = vdwg.mxu0
      %822 = vmatpush.bf16.msra.mxu0 %v663
      %823 = vmatpush.bf16.msra.mxu0 %v662
      %824 = vmatpush.bf16.msra.mxu0 %v661
      %825 = vmatpush.bf16.msra.mxu0 %v660
      %826 = vmatpush.bf16.msra.mxu0 %v659
      %827 = vmatpush.bf16.msra.mxu0 %v658
      %828 = vmatpush.bf16.msra.mxu0 %v657
      %829 = vmatpush.bf16.msra.mxu0 %v656
      %830 = vmatmul.bf16.gmra.mxu0 %v497
      %v831 = vpop.f32.mrf.mxu0
      %v832 = vadd.f32 %v743, %v831
      %v833 = vpop.f32.mrf.mxu0
      %v834 = vadd.f32 %v745, %v833
      %835 = vmatmul.bf16.gmra.mxu0 %v500
      %v836 = vpop.f32.mrf.mxu0
      %v837 = vadd.f32 %v748, %v836
      %v838 = vpop.f32.mrf.mxu0
      %v839 = vadd.f32 %v750, %v838
      %840 = vmatmul.bf16.gmra.mxu0 %v503
      %v841 = vpop.f32.mrf.mxu0
      %v842 = vadd.f32 %v753, %v841
      %v843 = vpop.f32.mrf.mxu0
      %v844 = vadd.f32 %v755, %v843
      %845 = vmatmul.bf16.gmra.mxu0 %v506
      %v846 = vpop.f32.mrf.mxu0
      %v847 = vadd.f32 %v758, %v846
      %v848 = vpop.f32.mrf.mxu0
      %v849 = vadd.f32 %v760, %v848
      %850 = vmatmul.bf16.gmra.mxu0 %v509
      %v851 = vpop.f32.mrf.mxu0
      %v852 = vadd.f32 %v763, %v851
      %v853 = vpop.f32.mrf.mxu0
      %v854 = vadd.f32 %v765, %v853
      %855 = vmatmul.bf16.gmra.mxu0 %v512
      %v856 = vpop.f32.mrf.mxu0
      %v857 = vadd.f32 %v768, %v856
      %v858 = vpop.f32.mrf.mxu0
      %v859 = vadd.f32 %v770, %v858
      %860 = vmatmul.bf16.gmra.mxu0 %v515
      %v861 = vpop.f32.mrf.mxu0
      %v862 = vadd.f32 %v773, %v861
      %v863 = vpop.f32.mrf.mxu0
      %v864 = vadd.f32 %v775, %v863
      %865 = vmatmul.bf16.gmra.mxu0 %v518
      %v866 = vpop.f32.mrf.mxu0
      %v867 = vadd.f32 %v778, %v866
      %v868 = vpop.f32.mrf.mxu0
      %v869 = vadd.f32 %v780, %v868
      %870 = vmatmul.bf16.gmra.mxu0 %v521
      %v871 = vpop.f32.mrf.mxu0
      %v872 = vadd.f32 %v783, %v871
      %v873 = vpop.f32.mrf.mxu0
      %v874 = vadd.f32 %v785, %v873
      %875 = vmatmul.bf16.gmra.mxu0 %v524
      %v876 = vpop.f32.mrf.mxu0
      %v877 = vadd.f32 %v788, %v876
      %v878 = vpop.f32.mrf.mxu0
      %v879 = vadd.f32 %v790, %v878
      %880 = vmatmul.bf16.gmra.mxu0 %v527
      %v881 = vpop.f32.mrf.mxu0
      %v882 = vadd.f32 %v793, %v881
      %v883 = vpop.f32.mrf.mxu0
      %v884 = vadd.f32 %v795, %v883
      %885 = vmatmul.bf16.gmra.mxu0 %v530
      %v886 = vpop.f32.mrf.mxu0
      %v887 = vadd.f32 %v798, %v886
      %v888 = vpop.f32.mrf.mxu0
      %v889 = vadd.f32 %v800, %v888
      %890 = vmatmul.bf16.gmra.mxu0 %v533
      %v891 = vpop.f32.mrf.mxu0
      %v892 = vadd.f32 %v803, %v891
      %v893 = vpop.f32.mrf.mxu0
      %v894 = vadd.f32 %v805, %v893
      %895 = vmatmul.bf16.gmra.mxu0 %v536
      %v896 = vpop.f32.mrf.mxu0
      %v897 = vadd.f32 %v808, %v896
      %v898 = vpop.f32.mrf.mxu0
      %v899 = vadd.f32 %v810, %v898
      %900 = vmatmul.bf16.gmra.mxu0 %v539
      %v901 = vpop.f32.mrf.mxu0
      %v902 = vadd.f32 %v813, %v901
      %v903 = vpop.f32.mrf.mxu0
      %v904 = vadd.f32 %v815, %v903
      %905 = vmatmul.bf16.gmra.mxu0 %v542
      %v906 = vpop.f32.mrf.mxu0
      %v907 = vadd.f32 %v818, %v906
      %v908 = vpop.f32.mrf.mxu0
      %v909 = vadd.f32 %v820, %v908
      %910 = vdwg.mxu0
      %911 = vmatpush.bf16.msra.mxu0 0
      %912 = vmatpush.bf16.msra.mxu0 0
      %913 = vmatpush.bf16.msra.mxu0 0
      %914 = vmatpush.bf16.msra.mxu0 0
      %915 = vmatpush.bf16.msra.mxu0 0
      %916 = vmatpush.bf16.msra.mxu0 0
      %917 = vmatpush.bf16.msra.mxu0 %v665
      %918 = vmatpush.bf16.msra.mxu0 %v664
      %919 = vmatmul.bf16.gmra.mxu0 %v686
      %v920 = vpop.f32.mrf.mxu0
      %v921 = vadd.f32 %v832, %v920
      %v922 = vpop.f32.mrf.mxu0
      %v923 = vadd.f32 %v834, %v922
      %924 = vmatmul.bf16.gmra.mxu0 %v689
      %v925 = vpop.f32.mrf.mxu0
      %v926 = vadd.f32 %v837, %v925
      %v927 = vpop.f32.mrf.mxu0
      %v928 = vadd.f32 %v839, %v927
      %929 = vmatmul.bf16.gmra.mxu0 %v692
      %v930 = vpop.f32.mrf.mxu0
      %v931 = vadd.f32 %v842, %v930
      %v932 = vpop.f32.mrf.mxu0
      %v933 = vadd.f32 %v844, %v932
      %934 = vmatmul.bf16.gmra.mxu0 %v695
      %v935 = vpop.f32.mrf.mxu0
      %v936 = vadd.f32 %v847, %v935
      %v937 = vpop.f32.mrf.mxu0
      %v938 = vadd.f32 %v849, %v937
      %939 = vmatmul.bf16.gmra.mxu0 %v698
      %v940 = vpop.f32.mrf.mxu0
      %v941 = vadd.f32 %v852, %v940
      %v942 = vpop.f32.mrf.mxu0
      %v943 = vadd.f32 %v854, %v942
      %944 = vmatmul.bf16.gmra.mxu0 %v701
      %v945 = vpop.f32.mrf.mxu0
      %v946 = vadd.f32 %v857, %v945
      %v947 = vpop.f32.mrf.mxu0
      %v948 = vadd.f32 %v859, %v947
      %949 = vmatmul.bf16.gmra.mxu0 %v704
      %v950 = vpop.f32.mrf.mxu0
      %v951 = vadd.f32 %v862, %v950
      %v952 = vpop.f32.mrf.mxu0
      %v953 = vadd.f32 %v864, %v952
      %954 = vmatmul.bf16.gmra.mxu0 %v707
      %v955 = vpop.f32.mrf.mxu0
      %v956 = vadd.f32 %v867, %v955
      %v957 = vpop.f32.mrf.mxu0
      %v958 = vadd.f32 %v869, %v957
      %959 = vmatmul.bf16.gmra.mxu0 %v710
      %v960 = vpop.f32.mrf.mxu0
      %v961 = vadd.f32 %v872, %v960
      %v962 = vpop.f32.mrf.mxu0
      %v963 = vadd.f32 %v874, %v962
      %964 = vmatmul.bf16.gmra.mxu0 %v713
      %v965 = vpop.f32.mrf.mxu0
      %v966 = vadd.f32 %v877, %v965
      %v967 = vpop.f32.mrf.mxu0
      %v968 = vadd.f32 %v879, %v967
      %969 = vmatmul.bf16.gmra.mxu0 %v716
      %v970 = vpop.f32.mrf.mxu0
      %v971 = vadd.f32 %v882, %v970
      %v972 = vpop.f32.mrf.mxu0
      %v973 = vadd.f32 %v884, %v972
      %974 = vmatmul.bf16.gmra.mxu0 %v719
      %v975 = vpop.f32.mrf.mxu0
      %v976 = vadd.f32 %v887, %v975
      %v977 = vpop.f32.mrf.mxu0
      %v978 = vadd.f32 %v889, %v977
      %979 = vmatmul.bf16.gmra.mxu0 %v722
      %v980 = vpop.f32.mrf.mxu0
      %v981 = vadd.f32 %v892, %v980
      %v982 = vpop.f32.mrf.mxu0
      %v983 = vadd.f32 %v894, %v982
      %984 = vmatmul.bf16.gmra.mxu0 %v725
      %v985 = vpop.f32.mrf.mxu0
      %v986 = vadd.f32 %v897, %v985
      %v987 = vpop.f32.mrf.mxu0
      %v988 = vadd.f32 %v899, %v987
      %989 = vmatmul.bf16.gmra.mxu0 %v728
      %v990 = vpop.f32.mrf.mxu0
      %v991 = vadd.f32 %v902, %v990
      %v992 = vpop.f32.mrf.mxu0
      %v993 = vadd.f32 %v904, %v992
      %994 = vmatmul.bf16.gmra.mxu0 %v731
      %v995 = vpop.f32.mrf.mxu0
      %v996 = vadd.f32 %v907, %v995
      %v997 = vpop.f32.mrf.mxu0
      %v998 = vadd.f32 %v909, %v997
      %999 = vdwg.mxu0
      %v1000 = vmax.f32 %v921, 0.0
      %v1001 = vmax.f32 %v923, 0.0
      %v1002 = vmax.f32 %v926, 0.0
      %v1003 = vmax.f32 %v928, 0.0
      %v1004 = vmax.f32 %v931, 0.0
      %v1005 = vmax.f32 %v933, 0.0
      %v1006 = vmax.f32 %v936, 0.0
      %v1007 = vmax.f32 %v938, 0.0
      %v1008 = vmax.f32 %v941, 0.0
      %v1009 = vmax.f32 %v943, 0.0
      %v1010 = vmax.f32 %v946, 0.0
      %v1011 = vmax.f32 %v948, 0.0
      %v1012 = vmax.f32 %v951, 0.0
      %v1013 = vmax.f32 %v953, 0.0
      %v1014 = vmax.f32 %v956, 0.0
      %v1015 = vmax.f32 %v958, 0.0
      %v1016 = vmax.f32 %v961, 0.0
      %v1017 = vmax.f32 %v963, 0.0
      %v1018 = vmax.f32 %v966, 0.0
      %v1019 = vmax.f32 %v968, 0.0
      %v1020 = vmax.f32 %v971, 0.0
      %v1021 = vmax.f32 %v973, 0.0
      %v1022 = vmax.f32 %v976, 0.0
      %v1023 = vmax.f32 %v978, 0.0
      %v1024 = vmax.f32 %v981, 0.0
      %v1025 = vmax.f32 %v983, 0.0
      %v1026 = vmax.f32 %v986, 0.0
      %v1027 = vmax.f32 %v988, 0.0
      %v1028 = vmax.f32 %v991, 0.0
      %v1029 = vmax.f32 %v993, 0.0
      %v1030 = vmax.f32 %v996, 0.0
      %v1031 = vmax.f32 %v998, 0.0
      %v1032 = vld [vmem:[%s3] sm:$0xf]
      %v1033 = vld [vmem:[%s3 + $0x4] sm:$0xf]
      %v1034 = vld [vmem:[%s3 + $0x8] sm:$0xf]
      %v1035 = vld [vmem:[%s3 + $0xc] sm:$0xf]
      %v1036 = vld [vmem:[%s3 + $0x10] sm:$0xf]
      %v1037 = vld [vmem:[%s3 + $0x14] sm:$0xf]
      %v1038 = vld [vmem:[%s3 + $0x18] sm:$0xf]
      %v1039 = vld [vmem:[%s3 + $0x1c] sm:$0xf]
      %v1040 = vld [vmem:[%s3 + $0x20] sm:$0xf]
      %v1041 = vld [vmem:[%s3 + $0x24] sm:$0xf]
      %v1042 = vld [vmem:[%s3 + $0x28] sm:$0xf]
      %v1043 = vld [vmem:[%s3 + $0x2c] sm:$0xf]
      %v1044 = vld [vmem:[%s3 + $0x30] sm:$0xf]
      %v1045 = vld [vmem:[%s3 + $0x34] sm:$0xf]
      %v1046 = vld [vmem:[%s3 + $0x38] sm:$0xf]
      %v1047 = vld [vmem:[%s3 + $0x3c] sm:$0xf]
      %v1048 = vld [vmem:[%s4] sm:$0x1]
      %v1049 = vpack.c.bf16 %v1001, %v1000
      %v1050 = vpack.c.bf16 %v1003, %v1002
      %v1051 = vpack.c.bf16 %v1005, %v1004
      %v1052 = vpack.c.bf16 %v1007, %v1006
      %v1053 = vpack.c.bf16 %v1009, %v1008
      %v1054 = vpack.c.bf16 %v1011, %v1010
      %v1055 = vpack.c.bf16 %v1013, %v1012
      %v1056 = vpack.c.bf16 %v1015, %v1014
      %v1057 = vpack.c.bf16 %v1017, %v1016
      %v1058 = vpack.c.bf16 %v1019, %v1018
      %v1059 = vpack.c.bf16 %v1021, %v1020
      %v1060 = vpack.c.bf16 %v1023, %v1022
      %v1061 = vpack.c.bf16 %v1025, %v1024
      %v1062 = vpack.c.bf16 %v1027, %v1026
      %v1063 = vpack.c.bf16 %v1029, %v1028
      %v1064 = vpack.c.bf16 %v1031, %v1030
      %v1066 = vperm.slane %v1048, 0
      %v1084 = vunpack.c.l.b16 %v1032
      %v1085 = vunpack.c.l.b16 %v1033
      %v1086 = vunpack.c.l.b16 %v1034
      %v1087 = vunpack.c.l.b16 %v1035
      %v1088 = vunpack.c.l.b16 %v1036
      %v1089 = vunpack.c.l.b16 %v1037
      %v1090 = vunpack.c.l.b16 %v1038
      %v1091 = vunpack.c.l.b16 %v1039
      %v1092 = vunpack.c.l.b16 %v1040
      %v1093 = vunpack.c.l.b16 %v1041
      %v1094 = vunpack.c.l.b16 %v1042
      %v1095 = vunpack.c.l.b16 %v1043
      %v1096 = vunpack.c.l.b16 %v1044
      %v1097 = vunpack.c.l.b16 %v1045
      %v1098 = vunpack.c.l.b16 %v1046
      %v1099 = vunpack.c.l.b16 %v1047
      %v1100 = vpack.c.b16 %v1085, %v1084
      %v1101 = vpack.c.b16 %v1087, %v1086
      %v1102 = vpack.c.b16 %v1089, %v1088
      %v1103 = vpack.c.b16 %v1091, %v1090
      %v1104 = vpack.c.b16 %v1093, %v1092
      %v1105 = vpack.c.b16 %v1095, %v1094
      %v1106 = vpack.c.b16 %v1097, %v1096
      %v1107 = vpack.c.b16 %v1099, %v1098
      %1116 = vmatpush.bf16.msra.mxu0 %v1107
      %1117 = vmatpush.bf16.msra.mxu0 %v1106
      %1118 = vmatpush.bf16.msra.mxu0 %v1105
      %1119 = vmatpush.bf16.msra.mxu0 %v1104
      %1120 = vmatpush.bf16.msra.mxu0 %v1103
      %1121 = vmatpush.bf16.msra.mxu0 %v1102
      %1122 = vmatpush.bf16.msra.mxu0 %v1101
      %1123 = vmatpush.bf16.msra.mxu0 %v1100
      %1124 = vmatmul.bf16.gmra.mxu0 %v1049
      %v1125 = vpop.f32.mrf.mxu0
      %v1126 = vadd.f32 %v1066, %v1125
      %v1127 = vpop.f32.mrf.mxu0
      %v1128 = vadd.f32 %v1066, %v1127
      %1129 = vmatmul.bf16.gmra.mxu0 %v1050
      %v1130 = vpop.f32.mrf.mxu0
      %v1131 = vadd.f32 %v1066, %v1130
      %v1132 = vpop.f32.mrf.mxu0
      %v1133 = vadd.f32 %v1066, %v1132
      %1134 = vmatmul.bf16.gmra.mxu0 %v1051
      %v1135 = vpop.f32.mrf.mxu0
      %v1136 = vadd.f32 %v1066, %v1135
      %v1137 = vpop.f32.mrf.mxu0
      %v1138 = vadd.f32 %v1066, %v1137
      %1139 = vmatmul.bf16.gmra.mxu0 %v1052
      %v1140 = vpop.f32.mrf.mxu0
      %v1141 = vadd.f32 %v1066, %v1140
      %v1142 = vpop.f32.mrf.mxu0
      %v1143 = vadd.f32 %v1066, %v1142
      %1144 = vmatmul.bf16.gmra.mxu0 %v1053
      %v1145 = vpop.f32.mrf.mxu0
      %v1146 = vadd.f32 %v1066, %v1145
      %v1147 = vpop.f32.mrf.mxu0
      %v1148 = vadd.f32 %v1066, %v1147
      %1149 = vmatmul.bf16.gmra.mxu0 %v1054
      %v1150 = vpop.f32.mrf.mxu0
      %v1151 = vadd.f32 %v1066, %v1150
      %v1152 = vpop.f32.mrf.mxu0
      %v1153 = vadd.f32 %v1066, %v1152
      %1154 = vmatmul.bf16.gmra.mxu0 %v1055
      %v1155 = vpop.f32.mrf.mxu0
      %v1156 = vadd.f32 %v1066, %v1155
      %v1157 = vpop.f32.mrf.mxu0
      %v1158 = vadd.f32 %v1066, %v1157
      %1159 = vmatmul.bf16.gmra.mxu0 %v1056
      %v1160 = vpop.f32.mrf.mxu0
      %v1161 = vadd.f32 %v1066, %v1160
      %v1162 = vpop.f32.mrf.mxu0
      %v1163 = vadd.f32 %v1066, %v1162
      %1164 = vmatmul.bf16.gmra.mxu0 %v1057
      %v1165 = vpop.f32.mrf.mxu0
      %v1166 = vadd.f32 %v1066, %v1165
      %v1167 = vpop.f32.mrf.mxu0
      %v1168 = vadd.f32 %v1066, %v1167
      %1169 = vmatmul.bf16.gmra.mxu0 %v1058
      %v1170 = vpop.f32.mrf.mxu0
      %v1171 = vadd.f32 %v1066, %v1170
      %v1172 = vpop.f32.mrf.mxu0
      %v1173 = vadd.f32 %v1066, %v1172
      %1174 = vmatmul.bf16.gmra.mxu0 %v1059
      %v1175 = vpop.f32.mrf.mxu0
      %v1176 = vadd.f32 %v1066, %v1175
      %v1177 = vpop.f32.mrf.mxu0
      %v1178 = vadd.f32 %v1066, %v1177
      %1179 = vmatmul.bf16.gmra.mxu0 %v1060
      %v1180 = vpop.f32.mrf.mxu0
      %v1181 = vadd.f32 %v1066, %v1180
      %v1182 = vpop.f32.mrf.mxu0
      %v1183 = vadd.f32 %v1066, %v1182
      %1184 = vmatmul.bf16.gmra.mxu0 %v1061
      %v1185 = vpop.f32.mrf.mxu0
      %v1186 = vadd.f32 %v1066, %v1185
      %v1187 = vpop.f32.mrf.mxu0
      %v1188 = vadd.f32 %v1066, %v1187
      %1189 = vmatmul.bf16.gmra.mxu0 %v1062
      %v1190 = vpop.f32.mrf.mxu0
      %v1191 = vadd.f32 %v1066, %v1190
      %v1192 = vpop.f32.mrf.mxu0
      %v1193 = vadd.f32 %v1066, %v1192
      %1194 = vmatmul.bf16.gmra.mxu0 %v1063
      %v1195 = vpop.f32.mrf.mxu0
      %v1196 = vadd.f32 %v1066, %v1195
      %v1197 = vpop.f32.mrf.mxu0
      %v1198 = vadd.f32 %v1066, %v1197
      %1199 = vmatmul.bf16.gmra.mxu0 %v1064
      %v1200 = vpop.f32.mrf.mxu0
      %v1201 = vadd.f32 %v1066, %v1200
      %v1202 = vpop.f32.mrf.mxu0
      %v1203 = vadd.f32 %v1066, %v1202
      %1204 = vdwg.mxu0
      %1205 = vst [vmem:[%s229] sm:$0xff] %v1126
      %1206 = vst [vmem:[%s229 + $0x8] sm:$0xff] %v1128
      %1207 = vst [vmem:[%s229 + $0x10] sm:$0xff] %v1131
      %1208 = vst [vmem:[%s229 + $0x18] sm:$0xff] %v1133
      %1209 = vst [vmem:[%s229 + $0x20] sm:$0xff] %v1136
      %1210 = vst [vmem:[%s229 + $0x28] sm:$0xff] %v1138
      %1211 = vst [vmem:[%s229 + $0x30] sm:$0xff] %v1141
      %1212 = vst [vmem:[%s229 + $0x38] sm:$0xff] %v1143
      %1213 = vst [vmem:[%s229 + $0x40] sm:$0xff] %v1146
      %1214 = vst [vmem:[%s229 + $0x48] sm:$0xff] %v1148
      %1215 = vst [vmem:[%s229 + $0x50] sm:$0xff] %v1151
      %1216 = vst [vmem:[%s229 + $0x58] sm:$0xff] %v1153
      %1217 = vst [vmem:[%s229 + $0x60] sm:$0xff] %v1156
      %1218 = vst [vmem:[%s229 + $0x68] sm:$0xff] %v1158
      %1219 = vst [vmem:[%s229 + $0x70] sm:$0xff] %v1161
      %1220 = vst [vmem:[%s229 + $0x78] sm:$0xff] %v1163
      %1221 = vst [vmem:[%s229 + $0x80] sm:$0xff] %v1166
      %1222 = vst [vmem:[%s229 + $0x88] sm:$0xff] %v1168
      %1223 = vst [vmem:[%s229 + $0x90] sm:$0xff] %v1171
      %1224 = vst [vmem:[%s229 + $0x98] sm:$0xff] %v1173
      %1225 = vst [vmem:[%s229 + $0xa0] sm:$0xff] %v1176
      %1226 = vst [vmem:[%s229 + $0xa8] sm:$0xff] %v1178
      %1227 = vst [vmem:[%s229 + $0xb0] sm:$0xff] %v1181
      %1228 = vst [vmem:[%s229 + $0xb8] sm:$0xff] %v1183
      %1229 = vst [vmem:[%s229 + $0xc0] sm:$0xff] %v1186
      %1230 = vst [vmem:[%s229 + $0xc8] sm:$0xff] %v1188
      %1231 = vst [vmem:[%s229 + $0xd0] sm:$0xff] %v1191
      %1232 = vst [vmem:[%s229 + $0xd8] sm:$0xff] %v1193
      %1233 = vst [vmem:[%s229 + $0xe0] sm:$0xff] %v1196
      %1234 = vst [vmem:[%s229 + $0xe8] sm:$0xff] %v1198
      %1235 = vst [vmem:[%s229 + $0xf0] sm:$0xff] %v1201
      %1236 = vst [vmem:[%s229 + $0xf8] sm:$0xff] %v1203
      %s1237 = smul.u32 32, %s16
      %p1238 = scmp.lt.s32.totalorder %s1237, 63
      %s1239 = scalar_select %p1238, %s1237, 63
      %s1240 = smul.addr %s1239, 8
      %s1241 = scalar_lea.vmem %s5, %s1240
      // Predicated region
      $region41: #{faster_rcnn_forward.4} parent=39 // pred_check
        %p1242 = pneg %p144
      $region42: #{faster_rcnn_forward.4} parent=39 // pred_check_branch
        %1244 = sbr.rel (%p1242) target = $region44
      $region43: #{faster_rcnn_forward.4} parent=39 // pred_region
        %s1245 = smul.u32 32, %s16
      $region44: #{faster_rcnn_forward.4} parent=39 // pred_fallthru
        _
    $region40: #{faster_rcnn_forward.4} parent=5 // pred_fallthru
      _
    %p1246 = scmp.le.s32.totalorder 2, %s11
    // Predicated region
    $region45: #{faster_rcnn_forward.4} parent=5 // pred_check
      %p1247 = pneg %p1246
    $region46: #{faster_rcnn_forward.4} parent=5 // pred_check_branch
      %1249 = sbr.rel (%p1247) target = $region48
    $region47: #{faster_rcnn_forward.4} parent=5 // pred_region
      %s1250 = ssub.s32 %s11, 2
      // Predicated region
      $region49: #{faster_rcnn_forward.4} parent=47 // pred_check
        %p1251 = pneg %p150
      $region50: #{faster_rcnn_forward.4} parent=47 // pred_check_branch
        %1253 = sbr.rel (%p1251) target = $region52
      $region51: #{faster_rcnn_forward.4} parent=47 // pred_region
        %s1254 = smul.u32 32, %s17
        %p1255 = scmp.lt.s32.totalorder %s1254, 63
        %s1256 = scalar_select %p1255, %s1254, 63
        %s1257 = smul.addr %s1256, 8
        %s1258 = scalar_lea.vmem %s5, %s1257
      $region52: #{faster_rcnn_forward.4} parent=47 // pred_fallthru
        _
    $region48: #{faster_rcnn_forward.4} parent=5 // pred_fallthru
      _
  $region6: #{faster_rcnn_forward.4} parent=0 // loop_footer
    %s15 = sadd.s32 1, %s11
  $region7: #{faster_rcnn_forward.4} parent=0 // loop_footer_branch
    %10 = sbr.rel target = $region3
  $region8: #{faster_rcnn_forward.4} parent=0 // loop_exit
    _

// kernel: custom-call
$region0: #{custom-call}
  #allocation0 [shape = 'u32[8,128]{1,0}', space=vmem, size = 0x1000, scoped, tag = 'scratch']
  #allocation1 [shape = 'u32[8,128]{1,0}', space=vmem, size = 0x1000, scoped, tag = 'scratch']
  #allocation2 [shape = 'u32[8,128]{1,0}', space=vmem, size = 0x1000, scoped, tag = 'scratch']
  #allocation3 [shape = 'u32[8,128]{1,0}', space=vmem, size = 0x1000, scoped, tag = 'scratch']
  #allocation4 [shape = 'u32[8,128]{1,0}', space=vmem, size = 0x1000, scoped, tag = 'scratch']
  #allocation5 [shape = 'u32[8,128]{1,0}', space=vmem, size = 0x1000, scoped, tag = 'scratch']
  #allocation6 [shape = 'u32[8,128]{1,0}', space=vmem, size = 0x1000, scoped, tag = 'scratch']
  %s0 = inlined_call_operand.vmem [shape: f32[2,2304], index: 0, kind: input, shape index: {}]
  %s1 = inlined_call_operand.hbm [shape: f32[2,32], index: 1, kind: output, shape index: {0}]
  %s2 = inlined_call_operand.vmem [shape: s32[2,32], index: 2, kind: output, shape index: {1}]
  %3 = xla_tuple %s1, %s2
  %4 = xla_tuple 2147483648, 2147483647
  $region1: #{custom-call} parent=0
    #allocation7 [shape = 'u8[4096]{0}', space=vmem, size = 0x1000, scoped, tag = 'operand span for operand 1']
    #allocation8 [shape = 'u8[1024]{0}', space=vmem, size = 0x400, scoped, tag = 'packed  for operand 1']
    #allocation9 [shape = 's32[1]{0}', space=sflag, size = 0x4, scoped, tag = 'scoped memory for custom-call']
    #allocation10 [shape = 'u8[4096]{0}', space=vmem, size = 0x1000, scoped, tag = 'operand span for operand 2']
    #allocation11 [shape = 'u8[1024]{0}', space=vmem, size = 0x400, scoped, tag = 'packed  for operand 2']
    #allocation12 [shape = 'f32[32,2]{1,0:T(8,128)}', space=vmem, size = 0x4000, scoped, tag = 'scoped memory for custom-call']
    #allocation13 [shape = 'f32[32,2]{1,0:T(8,128)}', space=vmem, size = 0x4000, scoped, tag = 'scoped memory for custom-call']
    #allocation14 [shape = 's32[32,2]{1,0:T(8,128)}', space=vmem, size = 0x4000, scoped, tag = 'scoped memory for custom-call']
    #allocation15 [shape = 's32[32,2]{1,0:T(8,128)}', space=vmem, size = 0x4000, scoped, tag = 'scoped memory for custom-call']
    %5 = vsyncpa [#allocation9], 0
    %6 = xla_tuple [#allocation7], [#allocation10]
    %7 = vst [vmem:[#allocation12] sm:$0xff] 2147483648
    %s8 = scalar_lea.vmem [#allocation12], 8
    %9 = vst [vmem:[%s8] sm:$0xff] 2147483648
    %s10 = scalar_lea.vmem [#allocation12], 16
    %11 = vst [vmem:[%s10] sm:$0xff] 2147483648
    %s12 = scalar_lea.vmem [#allocation12], 24
    %13 = vst [vmem:[%s12] sm:$0xff] 2147483648
    %14 = vst [vmem:[#allocation14] sm:$0xff] 2147483647
    %s15 = scalar_lea.vmem [#allocation14], 8
    %16 = vst [vmem:[%s15] sm:$0xff] 2147483647
    %s17 = scalar_lea.vmem [#allocation14], 16
    %18 = vst [vmem:[%s17] sm:$0xff] 2147483647
    %s19 = scalar_lea.vmem [#allocation14], 24
    %20 = vst [vmem:[%s19] sm:$0xff] 2147483647
    %21 = xla_tuple [#allocation12], [#allocation14]
    %22 = xla_tuple [#allocation13], [#allocation15]
    $region2: #{custom-call} parent=1
      #allocation16 [shape = 'u8[20480]{0}', space=vmem, size = 0x5000, scoped, tag = 'operand span for operand 0']
      #allocation17 [shape = 's32[5120]{0}', space=vmem, size = 0x5000, scoped, tag = 'scoped memory for custom-call']
      // Predicated region
      $region3: #{custom-call} parent=2 // pred_check
        _
      $region4: #{custom-call} parent=2 // pred_check_branch
        %24 = sbr.rel (0) target = $region6
      $region5: #{custom-call} parent=2 // pred_region
        // Predicated region
        $region7: #{custom-call} parent=5 // pred_check
          _
        $region8: #{custom-call} parent=5 // pred_check_branch
          %26 = sbr.rel (0) target = $region10
        $region9: #{custom-call} parent=5 // pred_region
          // Predicated region
          $region11: #{custom-call} parent=9 // pred_check
            _
          $region12: #{custom-call} parent=9 // pred_check_branch
            %28 = sbr.rel (0) target = $region14
          $region13: #{custom-call} parent=9 // pred_region
            %s29 = scalar_lea.vmem %s0, 32
            %s30 = scalar_lea.vmem [#allocation16], 32
            loop: start=0, step=1, limit=1
            $region15: #{custom-call} parent=13 // loop_pre_header
              _
            $region16: #{custom-call} parent=13 // loop_header
              %s32 = sphi 0, %s36
              %p33 = scmp.ge.s32.totalorder %s32, 1
              %s37 = sphi %s0, %s0
              %s38 = sphi [#allocation16], [#allocation16]
            $region17: #{custom-call} parent=13 // loop_header_branch
              %35 = sbr.rel (%p33) target = $region21
            $region18: #{custom-call} parent=13 // loop_body
              %v39 = vld [vmem:[%s37] sm:$0xff]
              %40 = vst [vmem:[%s38] sm:$0xff] %v39
              %v41 = vld [vmem:[%s37 + $0x8] sm:$0xff]
              %42 = vst [vmem:[%s38 + $0x8] sm:$0xff] %v41
              %v43 = vld [vmem:[%s37 + $0x10] sm:$0xff]
              %44 = vst [vmem:[%s38 + $0x10] sm:$0xff] %v43
              %v45 = vld [vmem:[%s37 + $0x18] sm:$0xff]
              %46 = vst [vmem:[%s38 + $0x18] sm:$0xff] %v45
            $region19: #{custom-call} parent=13 // loop_footer
              %s36 = sadd.s32 1, %s32
            $region20: #{custom-call} parent=13 // loop_footer_branch
              %31 = sbr.rel target = $region16
            $region21: #{custom-call} parent=13 // loop_exit
              _
            %s48 = ssub.s32 16, 1
            loop: start=0, step=1, limit=1
            $region22: #{custom-call} parent=13 // loop_pre_header
              _
            $region23: #{custom-call} parent=13 // loop_header
              %s50 = sphi 0, %s54
              %p51 = scmp.ge.s32.totalorder %s50, 1
              %s55 = sphi %s29, %s29
              %s56 = sphi %s30, %s30
            $region24: #{custom-call} parent=13 // loop_header_branch
              %53 = sbr.rel (%p51) target = $region28
            $region25: #{custom-call} parent=13 // loop_body
              %v57 = vld [vmem:[%s55] sm:%s48]
              %58 = vst [vmem:[%s56] sm:%s48] %v57
            $region26: #{custom-call} parent=13 // loop_footer
              %s54 = sadd.s32 1, %s50
            $region27: #{custom-call} parent=13 // loop_footer_branch
              %49 = sbr.rel target = $region23
            $region28: #{custom-call} parent=13 // loop_exit
              _
          $region14: #{custom-call} parent=9 // pred_fallthru
            _
        $region10: #{custom-call} parent=5 // pred_fallthru
          _
        %59 = vnop
      $region6: #{custom-call} parent=2 // pred_fallthru
        _
      // Predicated region
      $region29: #{custom-call} parent=2 // pred_check
        _
      $region30: #{custom-call} parent=2 // pred_check_branch
        %61 = sbr.rel (0) target = $region32
      $region31: #{custom-call} parent=2 // pred_region
        _
      $region32: #{custom-call} parent=2 // pred_fallthru
        _
      %v62 = vlaneseq
      %v63 = vand.u32 %v62, 127
      %v64 = vlaneseq
      %v65 = vshrl.u32 %v64, 7
      %v66 = vshrl.u32 %v65, 1
      %v67 = vand.u32 %v65, 1
      %v68 = vmul.u32 %v66, 128
      %v69 = vadd.s32 %v63, %v68
      %v71 = vld [vmem:[#allocation16] sm:$0xff]
      %vm72 = vcmp.lt.s32.totalorder %v71, 0
      %v73 = vsub.s32 2147483647, %v71
      %v74 = vsel %vm72, %v73, %v71
      %vm76 = vcmp.lt.s32.totalorder %v69, 2304
      %v77 = vsel %vm76, %v74, 2147483648
      %78 = vst [vmem:[#allocation16] sm:$0xff] %v77
      %s79 = scalar_lea.vmem [#allocation16], 8
      %v80 = vld [vmem:[%s79] sm:$0xff]
      %vm81 = vcmp.lt.s32.totalorder %v80, 0
      %v82 = vsub.s32 2147483647, %v80
      %v83 = vsel %vm81, %v82, %v80
      %v84 = vadd.s32 %v69, 512
      %vm85 = vcmp.lt.s32.totalorder %v84, 2304
      %v86 = vsel %vm85, %v83, 2147483648
      %87 = vst [vmem:[%s79] sm:$0xff] %v86
      %s88 = scalar_lea.vmem [#allocation16], 16
      %v89 = vld [vmem:[%s88] sm:$0xff]
      %vm90 = vcmp.lt.s32.totalorder %v89, 0
      %v91 = vsub.s32 2147483647, %v89
      %v92 = vsel %vm90, %v91, %v89
      %v93 = vadd.s32 %v69, 1024
      %vm94 = vcmp.lt.s32.totalorder %v93, 2304
      %v95 = vsel %vm94, %v92, 2147483648
      %96 = vst [vmem:[%s88] sm:$0xff] %v95
      %s97 = scalar_lea.vmem [#allocation16], 24
      %v98 = vld [vmem:[%s97] sm:$0xff]
      %vm99 = vcmp.lt.s32.totalorder %v98, 0
      %v100 = vsub.s32 2147483647, %v98
      %v101 = vsel %vm99, %v100, %v98
      %v102 = vadd.s32 %v69, 1536
      %vm103 = vcmp.lt.s32.totalorder %v102, 2304
      %v104 = vsel %vm103, %v101, 2147483648
      %105 = vst [vmem:[%s97] sm:$0xff] %v104
      %s106 = scalar_lea.vmem [#allocation16], 32
      %v107 = vld [vmem:[%s106] sm:$0xff]
      %vm108 = vcmp.lt.s32.totalorder %v107, 0
      %v109 = vsub.s32 2147483647, %v107
      %v110 = vsel %vm108, %v109, %v107
      %v111 = vadd.s32 %v69, 2048
      %vm112 = vcmp.lt.s32.totalorder %v111, 2304
      %v113 = vsel %vm112, %v110, 2147483648
      %114 = vst [vmem:[%s106] sm:$0xff] %v113
      %v115 = vlaneseq
      %v116 = vand.u32 %v115, 127
      %v117 = vlaneseq
      %v118 = vshrl.u32 %v117, 7
      %v119 = vshrl.u32 %v118, 1
      %v120 = vand.u32 %v118, 1
      %v121 = vmul.u32 %v119, 128
      %v122 = vadd.s32 %v116, %v121
      %125 = vst [vmem:[#allocation17] sm:$0xff] %v122
      %v126 = vadd.s32 %v122, 512
      %s127 = scalar_lea.vmem [#allocation17], 8
      %128 = vst [vmem:[%s127] sm:$0xff] %v126
      %v129 = vadd.s32 %v122, 1024
      %s130 = scalar_lea.vmem [#allocation17], 16
      %131 = vst [vmem:[%s130] sm:$0xff] %v129
      %v132 = vadd.s32 %v122, 1536
      %s133 = scalar_lea.vmem [#allocation17], 24
      %134 = vst [vmem:[%s133] sm:$0xff] %v132
      %v135 = vadd.s32 %v122, 2048
      %s136 = scalar_lea.vmem [#allocation17], 32
      %137 = vst [vmem:[%s136] sm:$0xff] %v135
      %138 = xla_tuple [#allocation16], [#allocation17]
      %139 = vst [vmem:[#allocation13] sm:$0xff] 2147483648
      %s140 = scalar_lea.vmem [#allocation13], 8
      %141 = vst [vmem:[%s140] sm:$0xff] 2147483648
      %s142 = scalar_lea.vmem [#allocation13], 16
      %143 = vst [vmem:[%s142] sm:$0xff] 2147483648
      %s144 = scalar_lea.vmem [#allocation13], 24
      %145 = vst [vmem:[%s144] sm:$0xff] 2147483648
      %146 = vst [vmem:[#allocation15] sm:$0xff] 2147483647
      %s147 = scalar_lea.vmem [#allocation15], 8
      %148 = vst [vmem:[%s147] sm:$0xff] 2147483647
      %s149 = scalar_lea.vmem [#allocation15], 16
      %150 = vst [vmem:[%s149] sm:$0xff] 2147483647
      %s151 = scalar_lea.vmem [#allocation15], 24
      %152 = vst [vmem:[%s151] sm:$0xff] 2147483647
      %153 = xla_tuple [#allocation13], [#allocation15]
      loop: start=0, step=1, limit=32
      $region33: #{custom-call} parent=2 // loop_pre_header
        _
      $region34: #{custom-call} parent=2 // loop_header
        %s155 = sphi 0, %s159
        %p156 = scmp.ge.s32.totalorder %s155, 32
      $region35: #{custom-call} parent=2 // loop_header_branch
        %158 = sbr.rel (%p156) target = $region39
      $region36: #{custom-call} parent=2 // loop_body
        %v160 = vld [vmem:[#allocation16] sm:$0xff]
        %v161 = vld [vmem:[#allocation17] sm:$0xff]
        %162 = xla_tuple %v160, %v161
        %s163 = scalar_lea.vmem [#allocation16], 8
        %v164 = vld [vmem:[%s163] sm:$0xff]
        %s165 = scalar_lea.vmem [#allocation17], 8
        %v166 = vld [vmem:[%s165] sm:$0xff]
        %167 = xla_tuple %v164, %v166
        %vm168 = vcmp.gt.s32.totalorder %v164, %v160
        %vm169 = vcmp.eq.s32.totalorder %v164, %v160
        %vm170 = vcmp.lt.s32.totalorder %v166, %v161
        %vm171 = vmand %vm169, %vm170
        %vm172 = vmor %vm168, %vm171
        %v173 = vsel %vm172, %v164, %v160
        %v174 = vsel %vm172, %v166, %v161
        %175 = xla_tuple %v173, %v174
        %s176 = scalar_lea.vmem [#allocation16], 16
        %v177 = vld [vmem:[%s176] sm:$0xff]
        %s178 = scalar_lea.vmem [#allocation17], 16
        %v179 = vld [vmem:[%s178] sm:$0xff]
        %180 = xla_tuple %v177, %v179
        %vm181 = vcmp.gt.s32.totalorder %v177, %v173
        %vm182 = vcmp.eq.s32.totalorder %v177, %v173
        %vm183 = vcmp.lt.s32.totalorder %v179, %v174
        %vm184 = vmand %vm182, %vm183
        %vm185 = vmor %vm181, %vm184
        %v186 = vsel %vm185, %v177, %v173
        %v187 = vsel %vm185, %v179, %v174
        %188 = xla_tuple %v186, %v187
        %s189 = scalar_lea.vmem [#allocation16], 24
        %v190 = vld [vmem:[%s189] sm:$0xff]
        %s191 = scalar_lea.vmem [#allocation17], 24
        %v192 = vld [vmem:[%s191] sm:$0xff]
        %193 = xla_tuple %v190, %v192
        %vm194 = vcmp.gt.s32.totalorder %v190, %v186
        %vm195 = vcmp.eq.s32.totalorder %v190, %v186
        %vm196 = vcmp.lt.s32.totalorder %v192, %v187
        %vm197 = vmand %vm195, %vm196
        %vm198 = vmor %vm194, %vm197
        %v199 = vsel %vm198, %v190, %v186
        %v200 = vsel %vm198, %v192, %v187
        %201 = xla_tuple %v199, %v200
        %s202 = scalar_lea.vmem [#allocation16], 32
        %v203 = vld [vmem:[%s202] sm:$0xff]
        %s204 = scalar_lea.vmem [#allocation17], 32
        %v205 = vld [vmem:[%s204] sm:$0xff]
        %206 = xla_tuple %v203, %v205
        %vm207 = vcmp.gt.s32.totalorder %v203, %v199
        %vm208 = vcmp.eq.s32.totalorder %v203, %v199
        %vm209 = vcmp.lt.s32.totalorder %v205, %v200
        %vm210 = vmand %vm208, %vm209
        %vm211 = vmor %vm207, %vm210
        %v212 = vsel %vm211, %v203, %v199
        %v213 = vsel %vm211, %v205, %v200
        %214 = xla_tuple %v212, %v213
        %v215 = vrot.slane %v212, 2
        %v216 = vrot.slane %v213, 2
        %217 = xla_tuple %v215, %v216
        %vm218 = vcmp.gt.s32.totalorder %v215, %v212
        %vm219 = vcmp.eq.s32.totalorder %v215, %v212
        %vm220 = vcmp.lt.s32.totalorder %v216, %v213
        %vm221 = vmand %vm219, %vm220
        %vm222 = vmor %vm218, %vm221
        %v223 = vsel %vm222, %v215, %v212
        %v224 = vsel %vm222, %v216, %v213
        %225 = xla_tuple %v223, %v224
        %v226 = vrot.slane %v223, 2
        %v227 = vrot.slane %v224, 2
        %228 = xla_tuple %v226, %v227
        %vm229 = vcmp.gt.s32.totalorder %v226, %v223
        %vm230 = vcmp.eq.s32.totalorder %v226, %v223
        %vm231 = vcmp.lt.s32.totalorder %v227, %v224
        %vm232 = vmand %vm230, %vm231
        %vm233 = vmor %vm229, %vm232
        %v234 = vsel %vm233, %v226, %v223
        %v235 = vsel %vm233, %v227, %v224
        %236 = xla_tuple %v234, %v235
        %v237 = vrot.slane %v234, 2
        %v238 = vrot.slane %v235, 2
        %239 = xla_tuple %v237, %v238
        %vm240 = vcmp.gt.s32.totalorder %v237, %v234
        %vm241 = vcmp.eq.s32.totalorder %v237, %v234
        %vm242 = vcmp.lt.s32.totalorder %v238, %v235
        %vm243 = vmand %vm241, %vm242
        %vm244 = vmor %vm240, %vm243
        %v245 = vsel %vm244, %v237, %v234
        %v246 = vsel %vm244, %v238, %v235
        %247 = xla_tuple %v245, %v246
        %248 = vxpose.xlu0.b32.start [1/16] %v245, 128
        %249 = vxpose.xlu0.b32.cont [2/16] %v245, 128
        %250 = vxpose.xlu0.b32.cont [3/16] %v245, 128
        %251 = vxpose.xlu0.b32.cont [4/16] %v245, 128
        %252 = vxpose.xlu0.b32.cont [5/16] %v245, 128
        %253 = vxpose.xlu0.b32.cont [6/16] %v245, 128
        %254 = vxpose.xlu0.b32.cont [7/16] %v245, 128
        %255 = vxpose.xlu0.b32.cont [8/16] %v245, 128
        %256 = vxpose.xlu0.b32.cont [9/16] %v245, 128
        %257 = vxpose.xlu0.b32.cont [10/16] %v245, 128
        %258 = vxpose.xlu0.b32.cont [11/16] %v245, 128
        %259 = vxpose.xlu0.b32.cont [12/16] %v245, 128
        %260 = vxpose.xlu0.b32.cont [13/16] %v245, 128
        %261 = vxpose.xlu0.b32.cont [14/16] %v245, 128
        %262 = vxpose.xlu0.b32.cont [15/16] %v245, 128
        %263 = vxpose.xlu0.b32.end [16/16] %v245, 128
        %v264 = vpop.trf.xlu0
        %v265 = vpop.trf.xlu0
        %v266 = vpop.trf.xlu0
        %v267 = vpop.trf.xlu0
        %v268 = vpop.trf.xlu0
        %v269 = vpop.trf.xlu0
        %v270 = vpop.trf.xlu0
        %v271 = vpop.trf.xlu0
        %v272 = vpop.trf.xlu0
        %v273 = vpop.trf.xlu0
        %v274 = vpop.trf.xlu0
        %v275 = vpop.trf.xlu0
        %v276 = vpop.trf.xlu0
        %v277 = vpop.trf.xlu0
        %v278 = vpop.trf.xlu0
        %v279 = vpop.trf.xlu0
        %280 = vxpose.xlu0.b32.start [1/16] %v246, 128
        %281 = vxpose.xlu0.b32.cont [2/16] %v246, 128
        %282 = vxpose.xlu0.b32.cont [3/16] %v246, 128
        %283 = vxpose.xlu0.b32.cont [4/16] %v246, 128
        %284 = vxpose.xlu0.b32.cont [5/16] %v246, 128
        %285 = vxpose.xlu0.b32.cont [6/16] %v246, 128
        %286 = vxpose.xlu0.b32.cont [7/16] %v246, 128
        %287 = vxpose.xlu0.b32.cont [8/16] %v246, 128
        %288 = vxpose.xlu0.b32.cont [9/16] %v246, 128
        %289 = vxpose.xlu0.b32.cont [10/16] %v246, 128
        %290 = vxpose.xlu0.b32.cont [11/16] %v246, 128
        %291 = vxpose.xlu0.b32.cont [12/16] %v246, 128
        %292 = vxpose.xlu0.b32.cont [13/16] %v246, 128
        %293 = vxpose.xlu0.b32.cont [14/16] %v246, 128
        %294 = vxpose.xlu0.b32.cont [15/16] %v246, 128
        %295 = vxpose.xlu0.b32.end [16/16] %v246, 128
        %v296 = vpop.trf.xlu0
        %v297 = vpop.trf.xlu0
        %v298 = vpop.trf.xlu0
        %v299 = vpop.trf.xlu0
        %v300 = vpop.trf.xlu0
        %v301 = vpop.trf.xlu0
        %v302 = vpop.trf.xlu0
        %v303 = vpop.trf.xlu0
        %v304 = vpop.trf.xlu0
        %v305 = vpop.trf.xlu0
        %v306 = vpop.trf.xlu0
        %v307 = vpop.trf.xlu0
        %v308 = vpop.trf.xlu0
        %v309 = vpop.trf.xlu0
        %v310 = vpop.trf.xlu0
        %v311 = vpop.trf.xlu0
        %312 = xla_tuple %v264, %v296
        %313 = xla_tuple %v265, %v297
        %vm314 = vcmp.gt.s32.totalorder %v265, %v264
        %vm315 = vcmp.eq.s32.totalorder %v265, %v264
        %vm316 = vcmp.lt.s32.totalorder %v297, %v296
        %vm317 = vmand %vm315, %vm316
        %vm318 = vmor %vm314, %vm317
        %v319 = vsel %vm318, %v265, %v264
        %v320 = vsel %vm318, %v297, %v296
        %321 = xla_tuple %v319, %v320
        %322 = xla_tuple %v266, %v298
        %vm323 = vcmp.gt.s32.totalorder %v266, %v319
        %vm324 = vcmp.eq.s32.totalorder %v266, %v319
        %vm325 = vcmp.lt.s32.totalorder %v298, %v320
        %vm326 = vmand %vm324, %vm325
        %vm327 = vmor %vm323, %vm326
        %v328 = vsel %vm327, %v266, %v319
        %v329 = vsel %vm327, %v298, %v320
        %330 = xla_tuple %v328, %v329
        %331 = xla_tuple %v267, %v299
        %vm332 = vcmp.gt.s32.totalorder %v267, %v328
        %vm333 = vcmp.eq.s32.totalorder %v267, %v328
        %vm334 = vcmp.lt.s32.totalorder %v299, %v329
        %vm335 = vmand %vm333, %vm334
        %vm336 = vmor %vm332, %vm335
        %v337 = vsel %vm336, %v267, %v328
        %v338 = vsel %vm336, %v299, %v329
        %339 = xla_tuple %v337, %v338
        %340 = xla_tuple %v268, %v300
        %vm341 = vcmp.gt.s32.totalorder %v268, %v337
        %vm342 = vcmp.eq.s32.totalorder %v268, %v337
        %vm343 = vcmp.lt.s32.totalorder %v300, %v338
        %vm344 = vmand %vm342, %vm343
        %vm345 = vmor %vm341, %vm344
        %v346 = vsel %vm345, %v268, %v337
        %v347 = vsel %vm345, %v300, %v338
        %348 = xla_tuple %v346, %v347
        %349 = xla_tuple %v269, %v301
        %vm350 = vcmp.gt.s32.totalorder %v269, %v346
        %vm351 = vcmp.eq.s32.totalorder %v269, %v346
        %vm352 = vcmp.lt.s32.totalorder %v301, %v347
        %vm353 = vmand %vm351, %vm352
        %vm354 = vmor %vm350, %vm353
        %v355 = vsel %vm354, %v269, %v346
        %v356 = vsel %vm354, %v301, %v347
        %357 = xla_tuple %v355, %v356
        %358 = xla_tuple %v270, %v302
        %vm359 = vcmp.gt.s32.totalorder %v270, %v355
        %vm360 = vcmp.eq.s32.totalorder %v270, %v355
        %vm361 = vcmp.lt.s32.totalorder %v302, %v356
        %vm362 = vmand %vm360, %vm361
        %vm363 = vmor %vm359, %vm362
        %v364 = vsel %vm363, %v270, %v355
        %v365 = vsel %vm363, %v302, %v356
        %366 = xla_tuple %v364, %v365
        %367 = xla_tuple %v271, %v303
        %vm368 = vcmp.gt.s32.totalorder %v271, %v364
        %vm369 = vcmp.eq.s32.totalorder %v271, %v364
        %vm370 = vcmp.lt.s32.totalorder %v303, %v365
        %vm371 = vmand %vm369, %vm370
        %vm372 = vmor %vm368, %vm371
        %v373 = vsel %vm372, %v271, %v364
        %v374 = vsel %vm372, %v303, %v365
        %375 = xla_tuple %v373, %v374
        %376 = xla_tuple %v272, %v304
        %vm377 = vcmp.gt.s32.totalorder %v272, %v373
        %vm378 = vcmp.eq.s32.totalorder %v272, %v373
        %vm379 = vcmp.lt.s32.totalorder %v304, %v374
        %vm380 = vmand %vm378, %vm379
        %vm381 = vmor %vm377, %vm380
        %v382 = vsel %vm381, %v272, %v373
        %v383 = vsel %vm381, %v304, %v374
        %384 = xla_tuple %v382, %v383
        %385 = xla_tuple %v273, %v305
        %vm386 = vcmp.gt.s32.totalorder %v273, %v382
        %vm387 = vcmp.eq.s32.totalorder %v273, %v382
        %vm388 = vcmp.lt.s32.totalorder %v305, %v383
        %vm389 = vmand %vm387, %vm388
        %vm390 = vmor %vm386, %vm389
        %v391 = vsel %vm390, %v273, %v382
        %v392 = vsel %vm390, %v305, %v383
        %393 = xla_tuple %v391, %v392
        %394 = xla_tuple %v274, %v306
        %vm395 = vcmp.gt.s32.totalorder %v274, %v391
        %vm396 = vcmp.eq.s32.totalorder %v274, %v391
        %vm397 = vcmp.lt.s32.totalorder %v306, %v392
        %vm398 = vmand %vm396, %vm397
        %vm399 = vmor %vm395, %vm398
        %v400 = vsel %vm399, %v274, %v391
        %v401 = vsel %vm399, %v306, %v392
        %402 = xla_tuple %v400, %v401
        %403 = xla_tuple %v275, %v307
        %vm404 = vcmp.gt.s32.totalorder %v275, %v400
        %vm405 = vcmp.eq.s32.totalorder %v275, %v400
        %vm406 = vcmp.lt.s32.totalorder %v307, %v401
        %vm407 = vmand %vm405, %vm406
        %vm408 = vmor %vm404, %vm407
        %v409 = vsel %vm408, %v275, %v400
        %v410 = vsel %vm408, %v307, %v401
        %411 = xla_tuple %v409, %v410
        %412 = xla_tuple %v276, %v308
        %vm413 = vcmp.gt.s32.totalorder %v276, %v409
        %vm414 = vcmp.eq.s32.totalorder %v276, %v409
        %vm415 = vcmp.lt.s32.totalorder %v308, %v410
        %vm416 = vmand %vm414, %vm415
        %vm417 = vmor %vm413, %vm416
        %v418 = vsel %vm417, %v276, %v409
        %v419 = vsel %vm417, %v308, %v410
        %420 = xla_tuple %v418, %v419
        %421 = xla_tuple %v277, %v309
        %vm422 = vcmp.gt.s32.totalorder %v277, %v418
        %vm423 = vcmp.eq.s32.totalorder %v277, %v418
        %vm424 = vcmp.lt.s32.totalorder %v309, %v419
        %vm425 = vmand %vm423, %vm424
        %vm426 = vmor %vm422, %vm425
        %v427 = vsel %vm426, %v277, %v418
        %v428 = vsel %vm426, %v309, %v419
        %429 = xla_tuple %v427, %v428
        %430 = xla_tuple %v278, %v310
        %vm431 = vcmp.gt.s32.totalorder %v278, %v427
        %vm432 = vcmp.eq.s32.totalorder %v278, %v427
        %vm433 = vcmp.lt.s32.totalorder %v310, %v428
        %vm434 = vmand %vm432, %vm433
        %vm435 = vmor %vm431, %vm434
        %v436 = vsel %vm435, %v278, %v427
        %v437 = vsel %vm435, %v310, %v428
        %438 = xla_tuple %v436, %v437
        %439 = xla_tuple %v279, %v311
        %vm440 = vcmp.gt.s32.totalorder %v279, %v436
        %vm441 = vcmp.eq.s32.totalorder %v279, %v436
        %vm442 = vcmp.lt.s32.totalorder %v311, %v437
        %vm443 = vmand %vm441, %vm442
        %vm444 = vmor %vm440, %vm443
        %v445 = vsel %vm444, %v279, %v436
        %v446 = vsel %vm444, %v311, %v437
        %447 = xla_tuple %v445, %v446
        %v448 = vrot.slane %v445, 1
        %v449 = vrot.slane %v446, 1
        %450 = xla_tuple %v448, %v449
        %vm451 = vcmp.gt.s32.totalorder %v448, %v445
        %vm452 = vcmp.eq.s32.totalorder %v448, %v445
        %vm453 = vcmp.lt.s32.totalorder %v449, %v446
        %vm454 = vmand %vm452, %vm453
        %vm455 = vmor %vm451, %vm454
        %v456 = vsel %vm455, %v448, %v445
        %v457 = vsel %vm455, %v449, %v446
        %458 = xla_tuple %v456, %v457
        %v459 = vrot.slane %v456, 1
        %v460 = vrot.slane %v457, 1
        %461 = xla_tuple %v459, %v460
        %vm462 = vcmp.gt.s32.totalorder %v459, %v456
        %vm463 = vcmp.eq.s32.totalorder %v459, %v456
        %vm464 = vcmp.lt.s32.totalorder %v460, %v457
        %vm465 = vmand %vm463, %vm464
        %vm466 = vmor %vm462, %vm465
        %v467 = vsel %vm466, %v459, %v456
        %v468 = vsel %vm466, %v460, %v457
        %469 = xla_tuple %v467, %v468
        %v470 = vrot.slane %v467, 1
        %v471 = vrot.slane %v468, 1
        %472 = xla_tuple %v470, %v471
        %vm473 = vcmp.gt.s32.totalorder %v470, %v467
        %vm474 = vcmp.eq.s32.totalorder %v470, %v467
        %vm475 = vcmp.lt.s32.totalorder %v471, %v468
        %vm476 = vmand %vm474, %vm475
        %vm477 = vmor %vm473, %vm476
        %v478 = vsel %vm477, %v470, %v467
        %v479 = vsel %vm477, %v471, %v468
        %480 = xla_tuple %v478, %v479
        %v481 = vrot.slane %v478, 1
        %v482 = vrot.slane %v479, 1
        %483 = xla_tuple %v481, %v482
        %vm484 = vcmp.gt.s32.totalorder %v481, %v478
        %vm485 = vcmp.eq.s32.totalorder %v481, %v478
        %vm486 = vcmp.lt.s32.totalorder %v482, %v479
        %vm487 = vmand %vm485, %vm486
        %vm488 = vmor %vm484, %vm487
        %v489 = vsel %vm488, %v481, %v478
        %v490 = vsel %vm488, %v482, %v479
        %491 = xla_tuple %v489, %v490
        %v492 = vrot.slane %v489, 1
        %v493 = vrot.slane %v490, 1
        %494 = xla_tuple %v492, %v493
        %vm495 = vcmp.gt.s32.totalorder %v492, %v489
        %vm496 = vcmp.eq.s32.totalorder %v492, %v489
        %vm497 = vcmp.lt.s32.totalorder %v493, %v490
        %vm498 = vmand %vm496, %vm497
        %vm499 = vmor %vm495, %vm498
        %v500 = vsel %vm499, %v492, %v489
        %v501 = vsel %vm499, %v493, %v490
        %502 = xla_tuple %v500, %v501
        %v503 = vrot.slane %v500, 1
        %v504 = vrot.slane %v501, 1
        %505 = xla_tuple %v503, %v504
        %vm506 = vcmp.gt.s32.totalorder %v503, %v500
        %vm507 = vcmp.eq.s32.totalorder %v503, %v500
        %vm508 = vcmp.lt.s32.totalorder %v504, %v501
        %vm509 = vmand %vm507, %vm508
        %vm510 = vmor %vm506, %vm509
        %v511 = vsel %vm510, %v503, %v500
        %v512 = vsel %vm510, %v504, %v501
        %513 = xla_tuple %v511, %v512
        %v514 = vrot.slane %v511, 1
        %v515 = vrot.slane %v512, 1
        %516 = xla_tuple %v514, %v515
        %vm517 = vcmp.gt.s32.totalorder %v514, %v511
        %vm518 = vcmp.eq.s32.totalorder %v514, %v511
        %vm519 = vcmp.lt.s32.totalorder %v515, %v512
        %vm520 = vmand %vm518, %vm519
        %vm521 = vmor %vm517, %vm520
        %v522 = vsel %vm521, %v514, %v511
        %v523 = vsel %vm521, %v515, %v512
        %524 = xla_tuple %v522, %v523
        %s525 = scalar_lea.vmem [#allocation13], %s155
        %526 = vst [vmem:[%s525] sm:$0x1] %v522
        %s527 = scalar_lea.vmem [#allocation15], %s155
        %528 = vst [vmem:[%s527] sm:$0x1] %v523
        %529 = xla_tuple %526, %528
        %530 = vxpose.xlu0.b32.start [1/16] %v523, 128
        %531 = vxpose.xlu0.b32.cont [2/16] 0.0, 128
        %532 = vxpose.xlu0.b32.cont [3/16] 0.0, 128
        %533 = vxpose.xlu0.b32.cont [4/16] 0.0, 128
        %534 = vxpose.xlu0.b32.cont [5/16] 0.0, 128
        %535 = vxpose.xlu0.b32.cont [6/16] 0.0, 128
        %536 = vxpose.xlu0.b32.cont [7/16] 0.0, 128
        %537 = vxpose.xlu0.b32.cont [8/16] 0.0, 128
        %538 = vxpose.xlu0.b32.cont [9/16] 0.0, 128
        %539 = vxpose.xlu0.b32.cont [10/16] 0.0, 128
        %540 = vxpose.xlu0.b32.cont [11/16] 0.0, 128
        %541 = vxpose.xlu0.b32.cont [12/16] 0.0, 128
        %542 = vxpose.xlu0.b32.cont [13/16] 0.0, 128
        %543 = vxpose.xlu0.b32.cont [14/16] 0.0, 128
        %544 = vxpose.xlu0.b32.cont [15/16] 0.0, 128
        %545 = vxpose.xlu0.b32.end [16/16] 0.0, 128
        %v546 = vpop.trf.xlu0
        %v547 = vpop.trf.xlu0
        %v548 = vpop.trf.xlu0
        %v549 = vpop.trf.xlu0
        %v550 = vpop.trf.xlu0
        %v551 = vpop.trf.xlu0
        %v552 = vpop.trf.xlu0
        %v553 = vpop.trf.xlu0
        %v554 = vpop.trf.xlu0
        %v555 = vpop.trf.xlu0
        %v556 = vpop.trf.xlu0
        %v557 = vpop.trf.xlu0
        %v558 = vpop.trf.xlu0
        %v559 = vpop.trf.xlu0
        %v560 = vpop.trf.xlu0
        %v561 = vpop.trf.xlu0
        %s562 = vtos %v546
        %s563 = sshrl.u32 %s562, 9
        %p564 = scmp.lt.s32.totalorder %s562, 0
        %s565 = ssub.s32 0, %s562
        %s566 = scalar_select %p564, %s565, %s562
        %s567 = sand.u32 %s566, 511
        %s568 = ssub.s32 0, %s567
        %s569 = scalar_select %p564, %s568, %s567
        %s570 = sshrl.u32 %s569, 7
        %s571 = smul.u32 %s570, 256
        %s572 = sand.u32 %s569, 127
        %s573 = sadd.s32 %s571, %s572
        %v574 = vlaneseq
        %v575 = vstv %s573
        %vm577 = vcmp.eq.s32.totalorder %v574, %v575
        %s578 = smul.addr %s563, 8
        %s579 = scalar_lea.vmem [#allocation16], %s578
        %580 = vst.msk [vmem:[%s579] sm:$0xff] %vm577, 2147483648
        %s581 = smul.addr %s563, 8
        %s582 = scalar_lea.vmem [#allocation17], %s581
        %583 = vst.msk [vmem:[%s582] sm:$0xff] %vm577, 2147483647
        %584 = xla_tuple %580, %583
        %v585 = vrot.slane %v546, 1
        %s586 = vtos %v585
        %s587 = sshrl.u32 %s586, 9
        %p588 = scmp.lt.s32.totalorder %s586, 0
        %s589 = ssub.s32 0, %s586
        %s590 = scalar_select %p588, %s589, %s586
        %s591 = sand.u32 %s590, 511
        %s592 = ssub.s32 0, %s591
        %s593 = scalar_select %p588, %s592, %s591
        %s594 = sshrl.u32 %s593, 7
        %s595 = smul.u32 %s594, 256
        %s596 = sand.u32 %s593, 127
        %s597 = sadd.s32 %s595, %s596
        %v598 = vlaneseq
        %v599 = vstv %s597
        %v600 = vadd.s32 %v599, 128
        %vm601 = vcmp.eq.s32.totalorder %v598, %v600
        %s602 = smul.addr %s587, 8
        %s603 = scalar_lea.vmem [#allocation16], %s602
        %604 = vst.msk [vmem:[%s603] sm:$0xff] %vm601, 2147483648
        %s605 = smul.addr %s587, 8
        %s606 = scalar_lea.vmem [#allocation17], %s605
        %607 = vst.msk [vmem:[%s606] sm:$0xff] %vm601, 2147483647
        %608 = xla_tuple %604, %607
        %v609 = vrot.slane %v585, 1
      $region37: #{custom-call} parent=2 // loop_footer
        %s159 = sadd.s32 1, %s155
      $region38: #{custom-call} parent=2 // loop_footer_branch
        %154 = sbr.rel target = $region34
      $region39: #{custom-call} parent=2 // loop_exit
        _
      %s610 = scalar_lea.vmem [#allocation13], 24
      %s611 = scalar_lea.vmem [#allocation13], 7
      %v612 = vld [vmem:[%s611] ss:$-1 sm:$0xff]
      %s613 = scalar_lea.vmem %s610, 7 [#allocation13]
      %v614 = vld [vmem:[%s613] ss:$-1 sm:$0xff]
      %615 = vst [vmem:[#allocation13] sm:$0xff] %v614
      %616 = vst [vmem:[%s610] sm:$0xff] %v612
      %s617 = scalar_lea.vmem [#allocation15], 24
      %s618 = scalar_lea.vmem [#allocation15], 7
      %v619 = vld [vmem:[%s618] ss:$-1 sm:$0xff]
      %s620 = scalar_lea.vmem %s617, 7 [#allocation15]
      %v621 = vld [vmem:[%s620] ss:$-1 sm:$0xff]
      %622 = vst [vmem:[#allocation15] sm:$0xff] %v621
      %623 = vst [vmem:[%s617] sm:$0xff] %v619
      %624 = xla_tuple %616, %623
      %s625 = scalar_lea.vmem [#allocation13], 8
      %s626 = scalar_lea.vmem [#allocation13], 16
      %s627 = scalar_lea.vmem %s625, 7 [#allocation13]
      %v628 = vld [vmem:[%s627] ss:$-1 sm:$0xff]
      %s629 = scalar_lea.vmem %s626, 7 [#allocation13]
      %v630 = vld [vmem:[%s629] ss:$-1 sm:$0xff]
      %631 = vst [vmem:[%s625] sm:$0xff] %v630
      %632 = vst [vmem:[%s626] sm:$0xff] %v628
      %s633 = scalar_lea.vmem [#allocation15], 8
      %s634 = scalar_lea.vmem [#allocation15], 16
      %s635 = scalar_lea.vmem %s633, 7 [#allocation15]
      %v636 = vld [vmem:[%s635] ss:$-1 sm:$0xff]
      %s637 = scalar_lea.vmem %s634, 7 [#allocation15]
      %v638 = vld [vmem:[%s637] ss:$-1 sm:$0xff]
      %639 = vst [vmem:[%s633] sm:$0xff] %v638
      %640 = vst [vmem:[%s634] sm:$0xff] %v636
      %641 = xla_tuple %632, %640
      %v642 = vld [vmem:[#allocation12] sm:$0xff]
      %v643 = vld [vmem:[#allocation14] sm:$0xff]
      %644 = xla_tuple %v642, %v643
      %v645 = vld [vmem:[#allocation13] sm:$0xff]
      %v646 = vld [vmem:[#allocation15] sm:$0xff]
      %647 = xla_tuple %v645, %v646
      %vm648 = vcmp.gt.s32.totalorder %v642, %v645
      %vm649 = vcmp.eq.s32.totalorder %v642, %v645
      %vm650 = vcmp.lt.s32.totalorder %v643, %v646
      %vm651 = vmand %vm649, %vm650
      %vm652 = vmor %vm648, %vm651
      %v653 = vsel %vm652, %v642, %v645
      %654 = vst [vmem:[#allocation12] sm:$0xff] %v653
      %v655 = vsel %vm652, %v645, %v642
      %656 = vst [vmem:[#allocation13] sm:$0xff] %v655
      %v657 = vsel %vm652, %v643, %v646
      %658 = vst [vmem:[#allocation14] sm:$0xff] %v657
      %v659 = vsel %vm652, %v646, %v643
      %660 = vst [vmem:[#allocation15] sm:$0xff] %v659
      %661 = xla_tuple %656, %660
      %s662 = scalar_lea.vmem [#allocation12], 8
      %v663 = vld [vmem:[%s662] sm:$0xff]
      %s664 = scalar_lea.vmem [#allocation14], 8
      %v665 = vld [vmem:[%s664] sm:$0xff]
      %666 = xla_tuple %v663, %v665
      %s667 = scalar_lea.vmem [#allocation13], 8
      %v668 = vld [vmem:[%s667] sm:$0xff]
      %s669 = scalar_lea.vmem [#allocation15], 8
      %v670 = vld [vmem:[%s669] sm:$0xff]
      %671 = xla_tuple %v668, %v670
      %vm672 = vcmp.gt.s32.totalorder %v663, %v668
      %vm673 = vcmp.eq.s32.totalorder %v663, %v668
      %vm674 = vcmp.lt.s32.totalorder %v665, %v670
      %vm675 = vmand %vm673, %vm674
      %vm676 = vmor %vm672, %vm675
      %s677 = scalar_lea.vmem [#allocation12], 8
      %v678 = vsel %vm676, %v663, %v668
      %679 = vst [vmem:[%s677] sm:$0xff] %v678
      %s680 = scalar_lea.vmem [#allocation13], 8
      %v681 = vsel %vm676, %v668, %v663
      %682 = vst [vmem:[%s680] sm:$0xff] %v681
      %s683 = scalar_lea.vmem [#allocation14], 8
      %v684 = vsel %vm676, %v665, %v670
      %685 = vst [vmem:[%s683] sm:$0xff] %v684
      %s686 = scalar_lea.vmem [#allocation15], 8
      %v687 = vsel %vm676, %v670, %v665
      %688 = vst [vmem:[%s686] sm:$0xff] %v687
      %689 = xla_tuple %682, %688
      %s690 = scalar_lea.vmem [#allocation12], 16
      %v691 = vld [vmem:[%s690] sm:$0xff]
      %s692 = scalar_lea.vmem [#allocation14], 16
      %v693 = vld [vmem:[%s692] sm:$0xff]
      %694 = xla_tuple %v691, %v693
      %s695 = scalar_lea.vmem [#allocation13], 16
      %v696 = vld [vmem:[%s695] sm:$0xff]
      %s697 = scalar_lea.vmem [#allocation15], 16
      %v698 = vld [vmem:[%s697] sm:$0xff]
      %699 = xla_tuple %v696, %v698
      %vm700 = vcmp.gt.s32.totalorder %v691, %v696
      %vm701 = vcmp.eq.s32.totalorder %v691, %v696
      %vm702 = vcmp.lt.s32.totalorder %v693, %v698
      %vm703 = vmand %vm701, %vm702
      %vm704 = vmor %vm700, %vm703
      %s705 = scalar_lea.vmem [#allocation12], 16
      %v706 = vsel %vm704, %v691, %v696
      %707 = vst [vmem:[%s705] sm:$0xff] %v706
      %s708 = scalar_lea.vmem [#allocation13], 16
      %v709 = vsel %vm704, %v696, %v691
      %710 = vst [vmem:[%s708] sm:$0xff] %v709
      %s711 = scalar_lea.vmem [#allocation14], 16
      %v712 = vsel %vm704, %v693, %v698
      %713 = vst [vmem:[%s711] sm:$0xff] %v712
      %s714 = scalar_lea.vmem [#allocation15], 16
      %v715 = vsel %vm704, %v698, %v693
      %716 = vst [vmem:[%s714] sm:$0xff] %v715
      %717 = xla_tuple %710, %716
      %s718 = scalar_lea.vmem [#allocation12], 24
      %v719 = vld [vmem:[%s718] sm:$0xff]
      %s720 = scalar_lea.vmem [#allocation14], 24
      %v721 = vld [vmem:[%s720] sm:$0xff]
      %722 = xla_tuple %v719, %v721
      %s723 = scalar_lea.vmem [#allocation13], 24
      %v724 = vld [vmem:[%s723] sm:$0xff]
      %s725 = scalar_lea.vmem [#allocation15], 24
      %v726 = vld [vmem:[%s725] sm:$0xff]
      %727 = xla_tuple %v724, %v726
      %vm728 = vcmp.gt.s32.totalorder %v719, %v724
      %vm729 = vcmp.eq.s32.totalorder %v719, %v724
      %vm730 = vcmp.lt.s32.totalorder %v721, %v726
      %vm731 = vmand %vm729, %vm730
      %vm732 = vmor %vm728, %vm731
      %s733 = scalar_lea.vmem [#allocation12], 24
      %v734 = vsel %vm732, %v719, %v724
      %735 = vst [vmem:[%s733] sm:$0xff] %v734
      %s736 = scalar_lea.vmem [#allocation13], 24
      %v737 = vsel %vm732, %v724, %v719
      %738 = vst [vmem:[%s736] sm:$0xff] %v737
      %s739 = scalar_lea.vmem [#allocation14], 24
      %v740 = vsel %vm732, %v721, %v726
      %741 = vst [vmem:[%s739] sm:$0xff] %v740
      %s742 = scalar_lea.vmem [#allocation15], 24
      %v743 = vsel %vm732, %v726, %v721
      %744 = vst [vmem:[%s742] sm:$0xff] %v743
      %745 = xla_tuple %738, %744
      %s746 = scalar_lea.vmem [#allocation12], 16
      %s747 = scalar_lea.vmem [#allocation14], 16
      %748 = xla_tuple %s746, %s747
      %v749 = vld [vmem:[#allocation12] sm:$0xff]
      %v750 = vld [vmem:[#allocation14] sm:$0xff]
      %751 = xla_tuple %v749, %v750
      %v752 = vld [vmem:[%s746] sm:$0xff]
      %v753 = vld [vmem:[%s747] sm:$0xff]
      %754 = xla_tuple %v752, %v753
      %vm755 = vcmp.gt.s32.totalorder %v749, %v752
      %vm756 = vcmp.eq.s32.totalorder %v749, %v752
      %vm757 = vcmp.lt.s32.totalorder %v750, %v753
      %vm758 = vmand %vm756, %vm757
      %vm759 = vmor %vm755, %vm758
      %v760 = vsel %vm759, %v749, %v752
      %761 = vst [vmem:[#allocation12] sm:$0xff] %v760
      %v762 = vsel %vm759, %v752, %v749
      %763 = vst [vmem:[%s746] sm:$0xff] %v762
      %v764 = vsel %vm759, %v750, %v753
      %765 = vst [vmem:[#allocation14] sm:$0xff] %v764
      %v766 = vsel %vm759, %v753, %v750
      %767 = vst [vmem:[%s747] sm:$0xff] %v766
      %768 = xla_tuple %763, %767
      %s769 = scalar_lea.vmem [#allocation12], 8
      %v770 = vld [vmem:[%s769] sm:$0xff]
      %s771 = scalar_lea.vmem [#allocation14], 8
      %v772 = vld [vmem:[%s771] sm:$0xff]
      %773 = xla_tuple %v770, %v772
      %s774 = scalar_lea.vmem %s746, 8 [#allocation12]
      %v775 = vld [vmem:[%s774] sm:$0xff]
      %s776 = scalar_lea.vmem %s747, 8 [#allocation14]
      %v777 = vld [vmem:[%s776] sm:$0xff]
      %778 = xla_tuple %v775, %v777
      %vm779 = vcmp.gt.s32.totalorder %v770, %v775
      %vm780 = vcmp.eq.s32.totalorder %v770, %v775
      %vm781 = vcmp.lt.s32.totalorder %v772, %v777
      %vm782 = vmand %vm780, %vm781
      %vm783 = vmor %vm779, %vm782
      %s784 = scalar_lea.vmem [#allocation12], 8
      %v785 = vsel %vm783, %v770, %v775
      %786 = vst [vmem:[%s784] sm:$0xff] %v785
      %s787 = scalar_lea.vmem %s746, 8 [#allocation12]
      %v788 = vsel %vm783, %v775, %v770
      %789 = vst [vmem:[%s787] sm:$0xff] %v788
      %s790 = scalar_lea.vmem [#allocation14], 8
      %v791 = vsel %vm783, %v772, %v777
      %792 = vst [vmem:[%s790] sm:$0xff] %v791
      %s793 = scalar_lea.vmem %s747, 8 [#allocation14]
      %v794 = vsel %vm783, %v777, %v772
      %795 = vst [vmem:[%s793] sm:$0xff] %v794
      %796 = xla_tuple %789, %795
      %s797 = scalar_lea.vmem [#allocation12], 8
      %s798 = scalar_lea.vmem [#allocation14], 8
      %799 = xla_tuple %s797, %s798
      %v800 = vld [vmem:[#allocation12] sm:$0xff]
      %v801 = vld [vmem:[#allocation14] sm:$0xff]
      %802 = xla_tuple %v800, %v801
      %v803 = vld [vmem:[%s797] sm:$0xff]
      %v804 = vld [vmem:[%s798] sm:$0xff]
      %805 = xla_tuple %v803, %v804
      %vm806 = vcmp.gt.s32.totalorder %v800, %v803
      %vm807 = vcmp.eq.s32.totalorder %v800, %v803
      %vm808 = vcmp.lt.s32.totalorder %v801, %v804
      %vm809 = vmand %vm807, %vm808
      %vm810 = vmor %vm806, %vm809
      %v811 = vsel %vm810, %v800, %v803
      %812 = vst [vmem:[#allocation12] sm:$0xff] %v811
      %v813 = vsel %vm810, %v803, %v800
      %814 = vst [vmem:[%s797] sm:$0xff] %v813
      %v815 = vsel %vm810, %v801, %v804
      %816 = vst [vmem:[#allocation14] sm:$0xff] %v815
      %v817 = vsel %vm810, %v804, %v801
      %818 = vst [vmem:[%s798] sm:$0xff] %v817
      %819 = xla_tuple %814, %818
      %820 = xla_tuple [#allocation12], [#allocation14]
      %v821 = vld [vmem:[#allocation12] sm:$0xff]
      %v822 = vld [vmem:[#allocation14] sm:$0xff]
      %823 = xla_tuple %v821, %v822
      %v825 = vunpack.c.l.s4 839939668
      %v826 = vunpack.c.0.s8 %v825
      %v827 = vperm.slane %v821, %v826
      %v829 = vunpack.c.l.s4 839939668
      %v830 = vunpack.c.0.s8 %v829
      %v831 = vperm.slane %v822, %v830
      %832 = xla_tuple %v827, %v831
      %vm833 = vcmp.gt.s32.totalorder %v821, %v827
      %vm834 = vcmp.eq.s32.totalorder %v821, %v827
      %vm835 = vcmp.lt.s32.totalorder %v822, %v831
      %vm836 = vmand %vm834, %vm835
      %vm837 = vmor %vm833, %vm836
      %v838 = vlaneseq
      %v839 = vshrl.u32 %v838, 7
      %v840 = vand.u32 %v839, 4
      %vm841 = vcmp.ne.s32.totalorder %v840, 0
      %vm842 = vmxor %vm837, %vm841
      %v843 = vsel %vm842, %v821, %v827
      %v844 = vsel %vm842, %v822, %v831
      %845 = xla_tuple %v843, %v844
      %v847 = vunpack.c.l.s4 1417023538
      %v848 = vunpack.c.0.s8 %v847
      %v849 = vperm.slane %v843, %v848
      %v851 = vunpack.c.l.s4 1417023538
      %v852 = vunpack.c.0.s8 %v851
      %v853 = vperm.slane %v844, %v852
      %854 = xla_tuple %v849, %v853
      %vm855 = vcmp.gt.s32.totalorder %v843, %v849
      %vm856 = vcmp.eq.s32.totalorder %v843, %v849
      %vm857 = vcmp.lt.s32.totalorder %v844, %v853
      %vm858 = vmand %vm856, %vm857
      %vm859 = vmor %vm855, %vm858
      %v860 = vlaneseq
      %v861 = vshrl.u32 %v860, 7
      %v862 = vand.u32 %v861, 2
      %vm863 = vcmp.ne.s32.totalorder %v862, 0
      %vm864 = vmxor %vm859, %vm863
      %v865 = vsel %vm864, %v843, %v849
      %v866 = vsel %vm864, %v844, %v853
      %867 = xla_tuple %v865, %v866
      %v869 = vunpack.c.l.s4 1732584193
      %v870 = vunpack.c.0.s8 %v869
      %v871 = vperm.slane %v865, %v870
      %v873 = vunpack.c.l.s4 1732584193
      %v874 = vunpack.c.0.s8 %v873
      %v875 = vperm.slane %v866, %v874
      %876 = xla_tuple %v871, %v875
      %vm877 = vcmp.gt.s32.totalorder %v865, %v871
      %vm878 = vcmp.eq.s32.totalorder %v865, %v871
      %vm879 = vcmp.lt.s32.totalorder %v866, %v875
      %vm880 = vmand %vm878, %vm879
      %vm881 = vmor %vm877, %vm880
      %v882 = vlaneseq
      %v883 = vshrl.u32 %v882, 7
      %v884 = vand.u32 %v883, 1
      %vm885 = vcmp.ne.s32.totalorder %v884, 0
      %vm886 = vmxor %vm881, %vm885
      %v887 = vsel %vm886, %v865, %v871
      %v888 = vsel %vm886, %v866, %v875
      %889 = xla_tuple %v887, %v888
      %890 = vst [vmem:[#allocation12] sm:$0xff] %v887
      %891 = vst [vmem:[#allocation14] sm:$0xff] %v888
      %892 = xla_tuple %890, %891
      %v893 = vld [vmem:[#allocation12] sm:$0xff]
      %v894 = vld [vmem:[#allocation14] sm:$0xff]
      %895 = xla_tuple %v893, %v894
      %v897 = vunpack.c.l.s4 839939668
      %v898 = vunpack.c.0.s8 %v897
      %v899 = vperm.slane %v893, %v898
      %v901 = vunpack.c.l.s4 839939668
      %v902 = vunpack.c.0.s8 %v901
      %v903 = vperm.slane %v894, %v902
      %904 = xla_tuple %v899, %v903
      %vm905 = vcmp.gt.s32.totalorder %v893, %v899
      %vm906 = vcmp.eq.s32.totalorder %v893, %v899
      %vm907 = vcmp.lt.s32.totalorder %v894, %v903
      %vm908 = vmand %vm906, %vm907
      %vm909 = vmor %vm905, %vm908
      %v910 = vlaneseq
      %v911 = vshrl.u32 %v910, 7
      %v912 = vand.u32 %v911, 4
      %vm913 = vcmp.ne.s32.totalorder %v912, 0
      %vm914 = vmxor %vm909, %vm913
      %v915 = vsel %vm914, %v893, %v899
      %v916 = vsel %vm914, %v894, %v903
      %917 = xla_tuple %v915, %v916
      %v919 = vunpack.c.l.s4 1417023538
      %v920 = vunpack.c.0.s8 %v919
      %v921 = vperm.slane %v915, %v920
      %v923 = vunpack.c.l.s4 1417023538
      %v924 = vunpack.c.0.s8 %v923
      %v925 = vperm.slane %v916, %v924
      %926 = xla_tuple %v921, %v925
      %vm927 = vcmp.gt.s32.totalorder %v915, %v921
      %vm928 = vcmp.eq.s32.totalorder %v915, %v921
      %vm929 = vcmp.lt.s32.totalorder %v916, %v925
      %vm930 = vmand %vm928, %vm929
      %vm931 = vmor %vm927, %vm930
      %v932 = vlaneseq
      %v933 = vshrl.u32 %v932, 7
      %v934 = vand.u32 %v933, 2
      %vm935 = vcmp.ne.s32.totalorder %v934, 0
      %vm936 = vmxor %vm931, %vm935
      %v937 = vsel %vm936, %v915, %v921
      %v938 = vsel %vm936, %v916, %v925
      %939 = xla_tuple %v937, %v938
      %v941 = vunpack.c.l.s4 1732584193
      %v942 = vunpack.c.0.s8 %v941
      %v943 = vperm.slane %v937, %v942
      %v945 = vunpack.c.l.s4 1732584193
      %v946 = vunpack.c.0.s8 %v945
      %v947 = vperm.slane %v938, %v946
      %948 = xla_tuple %v943, %v947
      %vm949 = vcmp.gt.s32.totalorder %v937, %v943
      %vm950 = vcmp.eq.s32.totalorder %v937, %v943
      %vm951 = vcmp.lt.s32.totalorder %v938, %v947
      %vm952 = vmand %vm950, %vm951
      %vm953 = vmor %vm949, %vm952
      %v954 = vlaneseq
      %v955 = vshrl.u32 %v954, 7
      %v956 = vand.u32 %v955, 1
      %vm957 = vcmp.ne.s32.totalorder %v956, 0
      %vm958 = vmxor %vm953, %vm957
      %v959 = vsel %vm958, %v937, %v943
      %v960 = vsel %vm958, %v938, %v947
      %961 = xla_tuple %v959, %v960
      %962 = vst [vmem:[#allocation12] sm:$0xff] %v959
      %963 = vst [vmem:[#allocation14] sm:$0xff] %v960
      %964 = xla_tuple %962, %963
      %965 = xla_tuple %s797, %s798
      %v966 = vld [vmem:[%s797] sm:$0xff]
      %v967 = vld [vmem:[%s798] sm:$0xff]
      %968 = xla_tuple %v966, %v967
      %v970 = vunpack.c.l.s4 839939668
      %v971 = vunpack.c.0.s8 %v970
      %v972 = vperm.slane %v966, %v971
      %v974 = vunpack.c.l.s4 839939668
      %v975 = vunpack.c.0.s8 %v974
      %v976 = vperm.slane %v967, %v975
      %977 = xla_tuple %v972, %v976
      %vm978 = vcmp.gt.s32.totalorder %v966, %v972
      %vm979 = vcmp.eq.s32.totalorder %v966, %v972
      %vm980 = vcmp.lt.s32.totalorder %v967, %v976
      %vm981 = vmand %vm979, %vm980
      %vm982 = vmor %vm978, %vm981
      %v983 = vlaneseq
      %v984 = vshrl.u32 %v983, 7
      %v985 = vand.u32 %v984, 4
      %vm986 = vcmp.ne.s32.totalorder %v985, 0
      %vm987 = vmxor %vm982, %vm986
      %v988 = vsel %vm987, %v966, %v972
      %v989 = vsel %vm987, %v967, %v976
      %990 = xla_tuple %v988, %v989
      %v992 = vunpack.c.l.s4 1417023538
      %v993 = vunpack.c.0.s8 %v992
      %v994 = vperm.slane %v988, %v993
      %v996 = vunpack.c.l.s4 1417023538
      %v997 = vunpack.c.0.s8 %v996
      %v998 = vperm.slane %v989, %v997
      %999 = xla_tuple %v994, %v998
      %vm1000 = vcmp.gt.s32.totalorder %v988, %v994
      %vm1001 = vcmp.eq.s32.totalorder %v988, %v994
      %vm1002 = vcmp.lt.s32.totalorder %v989, %v998
      %vm1003 = vmand %vm1001, %vm1002
      %vm1004 = vmor %vm1000, %vm1003
      %v1005 = vlaneseq
      %v1006 = vshrl.u32 %v1005, 7
      %v1007 = vand.u32 %v1006, 2
      %vm1008 = vcmp.ne.s32.totalorder %v1007, 0
      %vm1009 = vmxor %vm1004, %vm1008
      %v1010 = vsel %vm1009, %v988, %v994
      %v1011 = vsel %vm1009, %v989, %v998
      %1012 = xla_tuple %v1010, %v1011
      %v1014 = vunpack.c.l.s4 1732584193
      %v1015 = vunpack.c.0.s8 %v1014
      %v1016 = vperm.slane %v1010, %v1015
      %v1018 = vunpack.c.l.s4 1732584193
      %v1019 = vunpack.c.0.s8 %v1018
      %v1020 = vperm.slane %v1011, %v1019
      %1021 = xla_tuple %v1016, %v1020
      %vm1022 = vcmp.gt.s32.totalorder %v1010, %v1016
      %vm1023 = vcmp.eq.s32.totalorder %v1010, %v1016
      %vm1024 = vcmp.lt.s32.totalorder %v1011, %v1020
      %vm1025 = vmand %vm1023, %vm1024
      %vm1026 = vmor %vm1022, %vm1025
      %v1027 = vlaneseq
      %v1028 = vshrl.u32 %v1027, 7
      %v1029 = vand.u32 %v1028, 1
      %vm1030 = vcmp.ne.s32.totalorder %v1029, 0
      %vm1031 = vmxor %vm1026, %vm1030
      %v1032 = vsel %vm1031, %v1010, %v1016
      %v1033 = vsel %vm1031, %v1011, %v1020
      %1034 = xla_tuple %v1032, %v1033
      %1035 = vst [vmem:[%s797] sm:$0xff] %v1032
      %1036 = vst [vmem:[%s798] sm:$0xff] %v1033
      %1037 = xla_tuple %1035, %1036
      %v1038 = vld [vmem:[%s797] sm:$0xff]
      %v1039 = vld [vmem:[%s798] sm:$0xff]
      %1040 = xla_tuple %v1038, %v1039
      %v1042 = vunpack.c.l.s4 839939668
      %v1043 = vunpack.c.0.s8 %v1042
      %v1044 = vperm.slane %v1038, %v1043
      %v1046 = vunpack.c.l.s4 839939668
      %v1047 = vunpack.c.0.s8 %v1046
      %v1048 = vperm.slane %v1039, %v1047
      %1049 = xla_tuple %v1044, %v1048
      %vm1050 = vcmp.gt.s32.totalorder %v1038, %v1044
      %vm1051 = vcmp.eq.s32.totalorder %v1038, %v1044
      %vm1052 = vcmp.lt.s32.totalorder %v1039, %v1048
      %vm1053 = vmand %vm1051, %vm1052
      %vm1054 = vmor %vm1050, %vm1053
      %v1055 = vlaneseq
      %v1056 = vshrl.u32 %v1055, 7
      %v1057 = vand.u32 %v1056, 4
      %vm1058 = vcmp.ne.s32.totalorder %v1057, 0
      %vm1059 = vmxor %vm1054, %vm1058
      %v1060 = vsel %vm1059, %v1038, %v1044
      %v1061 = vsel %vm1059, %v1039, %v1048
      %1062 = xla_tuple %v1060, %v1061
      %v1064 = vunpack.c.l.s4 1417023538
      %v1065 = vunpack.c.0.s8 %v1064
      %v1066 = vperm.slane %v1060, %v1065
      %v1068 = vunpack.c.l.s4 1417023538
      %v1069 = vunpack.c.0.s8 %v1068
      %v1070 = vperm.slane %v1061, %v1069
      %1071 = xla_tuple %v1066, %v1070
      %vm1072 = vcmp.gt.s32.totalorder %v1060, %v1066
      %vm1073 = vcmp.eq.s32.totalorder %v1060, %v1066
      %vm1074 = vcmp.lt.s32.totalorder %v1061, %v1070
      %vm1075 = vmand %vm1073, %vm1074
      %vm1076 = vmor %vm1072, %vm1075
      %v1077 = vlaneseq
      %v1078 = vshrl.u32 %v1077, 7
      %v1079 = vand.u32 %v1078, 2
      %vm1080 = vcmp.ne.s32.totalorder %v1079, 0
      %vm1081 = vmxor %vm1076, %vm1080
      %v1082 = vsel %vm1081, %v1060, %v1066
      %v1083 = vsel %vm1081, %v1061, %v1070
      %1084 = xla_tuple %v1082, %v1083
      %v1086 = vunpack.c.l.s4 1732584193
      %v1087 = vunpack.c.0.s8 %v1086
      %v1088 = vperm.slane %v1082, %v1087
      %v1090 = vunpack.c.l.s4 1732584193
      %v1091 = vunpack.c.0.s8 %v1090
      %v1092 = vperm.slane %v1083, %v1091
      %1093 = xla_tuple %v1088, %v1092
      %vm1094 = vcmp.gt.s32.totalorder %v1082, %v1088
      %vm1095 = vcmp.eq.s32.totalorder %v1082, %v1088
      %vm1096 = vcmp.lt.s32.totalorder %v1083, %v1092
      %vm1097 = vmand %vm1095, %vm1096
      %vm1098 = vmor %vm1094, %vm1097
      %v1099 = vlaneseq
      %v1100 = vshrl.u32 %v1099, 7
      %v1101 = vand.u32 %v1100, 1
      %vm1102 = vcmp.ne.s32.totalorder %v1101, 0
      %vm1103 = vmxor %vm1098, %vm1102
      %v1104 = vsel %vm1103, %v1082, %v1088
      %v1105 = vsel %vm1103, %v1083, %v1092
      %1106 = xla_tuple %v1104, %v1105
      %1107 = vst [vmem:[%s797] sm:$0xff] %v1104
      %1108 = vst [vmem:[%s798] sm:$0xff] %v1105
      %1109 = xla_tuple %1107, %1108
      %s1110 = scalar_lea.vmem %s746, 8 [#allocation12]
      %s1111 = scalar_lea.vmem %s747, 8 [#allocation14]
      %1112 = xla_tuple %s1110, %s1111
      %v1113 = vld [vmem:[%s746] sm:$0xff]
      %v1114 = vld [vmem:[%s747] sm:$0xff]
      %1115 = xla_tuple %v1113, %v1114
      %v1116 = vld [vmem:[%s1110] sm:$0xff]
      %v1117 = vld [vmem:[%s1111] sm:$0xff]
      %1118 = xla_tuple %v1116, %v1117
      %vm1119 = vcmp.gt.s32.totalorder %v1113, %v1116
      %vm1120 = vcmp.eq.s32.totalorder %v1113, %v1116
      %vm1121 = vcmp.lt.s32.totalorder %v1114, %v1117
      %vm1122 = vmand %vm1120, %vm1121
      %vm1123 = vmor %vm1119, %vm1122
      %v1124 = vsel %vm1123, %v1113, %v1116
      %1125 = vst [vmem:[%s746] sm:$0xff] %v1124
      %v1126 = vsel %vm1123, %v1116, %v1113
      %1127 = vst [vmem:[%s1110] sm:$0xff] %v1126
      %v1128 = vsel %vm1123, %v1114, %v1117
      %1129 = vst [vmem:[%s747] sm:$0xff] %v1128
      %v1130 = vsel %vm1123, %v1117, %v1114
      %1131 = vst [vmem:[%s1111] sm:$0xff] %v1130
      %1132 = xla_tuple %1127, %1131
      %1133 = xla_tuple %s746, %s747
      %v1134 = vld [vmem:[%s746] sm:$0xff]
      %v1135 = vld [vmem:[%s747] sm:$0xff]
      %1136 = xla_tuple %v1134, %v1135
      %v1138 = vunpack.c.l.s4 839939668
      %v1139 = vunpack.c.0.s8 %v1138
      %v1140 = vperm.slane %v1134, %v1139
      %v1142 = vunpack.c.l.s4 839939668
      %v1143 = vunpack.c.0.s8 %v1142
      %v1144 = vperm.slane %v1135, %v1143
      %1145 = xla_tuple %v1140, %v1144
      %vm1146 = vcmp.gt.s32.totalorder %v1134, %v1140
      %vm1147 = vcmp.eq.s32.totalorder %v1134, %v1140
      %vm1148 = vcmp.lt.s32.totalorder %v1135, %v1144
      %vm1149 = vmand %vm1147, %vm1148
      %vm1150 = vmor %vm1146, %vm1149
      %v1151 = vlaneseq
      %v1152 = vshrl.u32 %v1151, 7
      %v1153 = vand.u32 %v1152, 4
      %vm1154 = vcmp.ne.s32.totalorder %v1153, 0
      %vm1155 = vmxor %vm1150, %vm1154
      %v1156 = vsel %vm1155, %v1134, %v1140
      %v1157 = vsel %vm1155, %v1135, %v1144
      %1158 = xla_tuple %v1156, %v1157
      %v1160 = vunpack.c.l.s4 1417023538
      %v1161 = vunpack.c.0.s8 %v1160
      %v1162 = vperm.slane %v1156, %v1161
      %v1164 = vunpack.c.l.s4 1417023538
      %v1165 = vunpack.c.0.s8 %v1164
      %v1166 = vperm.slane %v1157, %v1165
      %1167 = xla_tuple %v1162, %v1166
      %vm1168 = vcmp.gt.s32.totalorder %v1156, %v1162
      %vm1169 = vcmp.eq.s32.totalorder %v1156, %v1162
      %vm1170 = vcmp.lt.s32.totalorder %v1157, %v1166
      %vm1171 = vmand %vm1169, %vm1170
      %vm1172 = vmor %vm1168, %vm1171
      %v1173 = vlaneseq
      %v1174 = vshrl.u32 %v1173, 7
      %v1175 = vand.u32 %v1174, 2
      %vm1176 = vcmp.ne.s32.totalorder %v1175, 0
      %vm1177 = vmxor %vm1172, %vm1176
      %v1178 = vsel %vm1177, %v1156, %v1162
      %v1179 = vsel %vm1177, %v1157, %v1166
      %1180 = xla_tuple %v1178, %v1179
      %v1182 = vunpack.c.l.s4 1732584193
      %v1183 = vunpack.c.0.s8 %v1182
      %v1184 = vperm.slane %v1178, %v1183
      %v1186 = vunpack.c.l.s4 1732584193
      %v1187 = vunpack.c.0.s8 %v1186
      %v1188 = vperm.slane %v1179, %v1187
      %1189 = xla_tuple %v1184, %v1188
      %vm1190 = vcmp.gt.s32.totalorder %v1178, %v1184
      %vm1191 = vcmp.eq.s32.totalorder %v1178, %v1184
      %vm1192 = vcmp.lt.s32.totalorder %v1179, %v1188
      %vm1193 = vmand %vm1191, %vm1192
      %vm1194 = vmor %vm1190, %vm1193
      %v1195 = vlaneseq
      %v1196 = vshrl.u32 %v1195, 7
      %v1197 = vand.u32 %v1196, 1
      %vm1198 = vcmp.ne.s32.totalorder %v1197, 0
      %vm1199 = vmxor %vm1194, %vm1198
      %v1200 = vsel %vm1199, %v1178, %v1184
      %v1201 = vsel %vm1199, %v1179, %v1188
      %1202 = xla_tuple %v1200, %v1201
      %1203 = vst [vmem:[%s746] sm:$0xff] %v1200
      %1204 = vst [vmem:[%s747] sm:$0xff] %v1201
      %1205 = xla_tuple %1203, %1204
      %v1206 = vld [vmem:[%s746] sm:$0xff]
      %v1207 = vld [vmem:[%s747] sm:$0xff]
      %1208 = xla_tuple %v1206, %v1207
      %v1210 = vunpack.c.l.s4 839939668
      %v1211 = vunpack.c.0.s8 %v1210
      %v1212 = vperm.slane %v1206, %v1211
      %v1214 = vunpack.c.l.s4 839939668
      %v1215 = vunpack.c.0.s8 %v1214
      %v1216 = vperm.slane %v1207, %v1215
      %1217 = xla_tuple %v1212, %v1216
      %vm1218 = vcmp.gt.s32.totalorder %v1206, %v1212
      %vm1219 = vcmp.eq.s32.totalorder %v1206, %v1212
      %vm1220 = vcmp.lt.s32.totalorder %v1207, %v1216
      %vm1221 = vmand %vm1219, %vm1220
      %vm1222 = vmor %vm1218, %vm1221
      %v1223 = vlaneseq
      %v1224 = vshrl.u32 %v1223, 7
      %v1225 = vand.u32 %v1224, 4
      %vm1226 = vcmp.ne.s32.totalorder %v1225, 0
      %vm1227 = vmxor %vm1222, %vm1226
      %v1228 = vsel %vm1227, %v1206, %v1212
      %v1229 = vsel %vm1227, %v1207, %v1216
      %1230 = xla_tuple %v1228, %v1229
      %v1232 = vunpack.c.l.s4 1417023538
      %v1233 = vunpack.c.0.s8 %v1232
      %v1234 = vperm.slane %v1228, %v1233
      %v1236 = vunpack.c.l.s4 1417023538
      %v1237 = vunpack.c.0.s8 %v1236
      %v1238 = vperm.slane %v1229, %v1237
      %1239 = xla_tuple %v1234, %v1238
      %vm1240 = vcmp.gt.s32.totalorder %v1228, %v1234
      %vm1241 = vcmp.eq.s32.totalorder %v1228, %v1234
      %vm1242 = vcmp.lt.s32.totalorder %v1229, %v1238
      %vm1243 = vmand %vm1241, %vm1242
      %vm1244 = vmor %vm1240, %vm1243
      %v1245 = vlaneseq
      %v1246 = vshrl.u32 %v1245, 7
      %v1247 = vand.u32 %v1246, 2
      %vm1248 = vcmp.ne.s32.totalorder %v1247, 0
      %vm1249 = vmxor %vm1244, %vm1248
      %v1250 = vsel %vm1249, %v1228, %v1234
      %v1251 = vsel %vm1249, %v1229, %v1238
      %1252 = xla_tuple %v1250, %v1251
      %v1254 = vunpack.c.l.s4 1732584193
      %v1255 = vunpack.c.0.s8 %v1254
      %v1256 = vperm.slane %v1250, %v1255
      %v1258 = vunpack.c.l.s4 1732584193
      %v1259 = vunpack.c.0.s8 %v1258
      %v1260 = vperm.slane %v1251, %v1259
      %1261 = xla_tuple %v1256, %v1260
      %vm1262 = vcmp.gt.s32.totalorder %v1250, %v1256
      %vm1263 = vcmp.eq.s32.totalorder %v1250, %v1256
      %vm1264 = vcmp.lt.s32.totalorder %v1251, %v1260
      %vm1265 = vmand %vm1263, %vm1264
      %vm1266 = vmor %vm1262, %vm1265
      %v1267 = vlaneseq
      %v1268 = vshrl.u32 %v1267, 7
      %v1269 = vand.u32 %v1268, 1
      %vm1270 = vcmp.ne.s32.totalorder %v1269, 0
      %vm1271 = vmxor %vm1266, %vm1270
      %v1272 = vsel %vm1271, %v1250, %v1256
      %v1273 = vsel %vm1271, %v1251, %v1260
      %1274 = xla_tuple %v1272, %v1273
      %1275 = vst [vmem:[%s746] sm:$0xff] %v1272
      %1276 = vst [vmem:[%s747] sm:$0xff] %v1273
      %1277 = xla_tuple %1275, %1276
      %1278 = xla_tuple %s1110, %s1111
      %v1279 = vld [vmem:[%s1110] sm:$0xff]
      %v1280 = vld [vmem:[%s1111] sm:$0xff]
      %1281 = xla_tuple %v1279, %v1280
      %v1283 = vunpack.c.l.s4 839939668
      %v1284 = vunpack.c.0.s8 %v1283
      %v1285 = vperm.slane %v1279, %v1284
      %v1287 = vunpack.c.l.s4 839939668
      %v1288 = vunpack.c.0.s8 %v1287
      %v1289 = vperm.slane %v1280, %v1288
      %1290 = xla_tuple %v1285, %v1289
      %vm1291 = vcmp.gt.s32.totalorder %v1279, %v1285
      %vm1292 = vcmp.eq.s32.totalorder %v1279, %v1285
      %vm1293 = vcmp.lt.s32.totalorder %v1280, %v1289
      %vm1294 = vmand %vm1292, %vm1293
      %vm1295 = vmor %vm1291, %vm1294
      %v1296 = vlaneseq
      %v1297 = vshrl.u32 %v1296, 7
      %v1298 = vand.u32 %v1297, 4
      %vm1299 = vcmp.ne.s32.totalorder %v1298, 0
      %vm1300 = vmxor %vm1295, %vm1299
      %v1301 = vsel %vm1300, %v1279, %v1285
      %v1302 = vsel %vm1300, %v1280, %v1289
      %1303 = xla_tuple %v1301, %v1302
      %v1305 = vunpack.c.l.s4 1417023538
      %v1306 = vunpack.c.0.s8 %v1305
      %v1307 = vperm.slane %v1301, %v1306
      %v1309 = vunpack.c.l.s4 1417023538
      %v1310 = vunpack.c.0.s8 %v1309
      %v1311 = vperm.slane %v1302, %v1310
      %1312 = xla_tuple %v1307, %v1311
      %vm1313 = vcmp.gt.s32.totalorder %v1301, %v1307
      %vm1314 = vcmp.eq.s32.totalorder %v1301, %v1307
      %vm1315 = vcmp.lt.s32.totalorder %v1302, %v1311
      %vm1316 = vmand %vm1314, %vm1315
      %vm1317 = vmor %vm1313, %vm1316
      %v1318 = vlaneseq
      %v1319 = vshrl.u32 %v1318, 7
      %v1320 = vand.u32 %v1319, 2
      %vm1321 = vcmp.ne.s32.totalorder %v1320, 0
      %vm1322 = vmxor %vm1317, %vm1321
      %v1323 = vsel %vm1322, %v1301, %v1307
      %v1324 = vsel %vm1322, %v1302, %v1311
      %1325 = xla_tuple %v1323, %v1324
      %v1327 = vunpack.c.l.s4 1732584193
      %v1328 = vunpack.c.0.s8 %v1327
      %v1329 = vperm.slane %v1323, %v1328
      %v1331 = vunpack.c.l.s4 1732584193
      %v1332 = vunpack.c.0.s8 %v1331
      %v1333 = vperm.slane %v1324, %v1332
      %1334 = xla_tuple %v1329, %v1333
      %vm1335 = vcmp.gt.s32.totalorder %v1323, %v1329
      %vm1336 = vcmp.eq.s32.totalorder %v1323, %v1329
      %vm1337 = vcmp.lt.s32.totalorder %v1324, %v1333
      %vm1338 = vmand %vm1336, %vm1337
      %vm1339 = vmor %vm1335, %vm1338
      %v1340 = vlaneseq
      %v1341 = vshrl.u32 %v1340, 7
      %v1342 = vand.u32 %v1341, 1
      %vm1343 = vcmp.ne.s32.totalorder %v1342, 0
      %vm1344 = vmxor %vm1339, %vm1343
      %v1345 = vsel %vm1344, %v1323, %v1329
      %v1346 = vsel %vm1344, %v1324, %v1333
      %1347 = xla_tuple %v1345, %v1346
      %1348 = vst [vmem:[%s1110] sm:$0xff] %v1345
      %1349 = vst [vmem:[%s1111] sm:$0xff] %v1346
      %1350 = xla_tuple %1348, %1349
      %v1351 = vld [vmem:[%s1110] sm:$0xff]
      %v1352 = vld [vmem:[%s1111] sm:$0xff]
      %1353 = xla_tuple %v1351, %v1352
      %v1355 = vunpack.c.l.s4 839939668
      %v1356 = vunpack.c.0.s8 %v1355
      %v1357 = vperm.slane %v1351, %v1356
      %v1359 = vunpack.c.l.s4 839939668
      %v1360 = vunpack.c.0.s8 %v1359
      %v1361 = vperm.slane %v1352, %v1360
      %1362 = xla_tuple %v1357, %v1361
      %vm1363 = vcmp.gt.s32.totalorder %v1351, %v1357
      %vm1364 = vcmp.eq.s32.totalorder %v1351, %v1357
      %vm1365 = vcmp.lt.s32.totalorder %v1352, %v1361
      %vm1366 = vmand %vm1364, %vm1365
      %vm1367 = vmor %vm1363, %vm1366
      %v1368 = vlaneseq
      %v1369 = vshrl.u32 %v1368, 7
      %v1370 = vand.u32 %v1369, 4
      %vm1371 = vcmp.ne.s32.totalorder %v1370, 0
      %vm1372 = vmxor %vm1367, %vm1371
      %v1373 = vsel %vm1372, %v1351, %v1357
      %v1374 = vsel %vm1372, %v1352, %v1361
      %1375 = xla_tuple %v1373, %v1374
      %v1377 = vunpack.c.l.s4 1417023538
      %v1378 = vunpack.c.0.s8 %v1377
      %v1379 = vperm.slane %v1373, %v1378
      %v1381 = vunpack.c.l.s4 1417023538
      %v1382 = vunpack.c.0.s8 %v1381
      %v1383 = vperm.slane %v1374, %v1382
      %1384 = xla_tuple %v1379, %v1383
      %vm1385 = vcmp.gt.s32.totalorder %v1373, %v1379
      %vm1386 = vcmp.eq.s32.totalorder %v1373, %v1379
      %vm1387 = vcmp.lt.s32.totalorder %v1374, %v1383
      %vm1388 = vmand %vm1386, %vm1387
      %vm1389 = vmor %vm1385, %vm1388
      %v1390 = vlaneseq
      %v1391 = vshrl.u32 %v1390, 7
      %v1392 = vand.u32 %v1391, 2
      %vm1393 = vcmp.ne.s32.totalorder %v1392, 0
      %vm1394 = vmxor %vm1389, %vm1393
      %v1395 = vsel %vm1394, %v1373, %v1379
      %v1396 = vsel %vm1394, %v1374, %v1383
      %1397 = xla_tuple %v1395, %v1396
      %v1399 = vunpack.c.l.s4 1732584193
      %v1400 = vunpack.c.0.s8 %v1399
      %v1401 = vperm.slane %v1395, %v1400
      %v1403 = vunpack.c.l.s4 1732584193
      %v1404 = vunpack.c.0.s8 %v1403
      %v1405 = vperm.slane %v1396, %v1404
      %1406 = xla_tuple %v1401, %v1405
      %vm1407 = vcmp.gt.s32.totalorder %v1395, %v1401
      %vm1408 = vcmp.eq.s32.totalorder %v1395, %v1401
      %vm1409 = vcmp.lt.s32.totalorder %v1396, %v1405
      %vm1410 = vmand %vm1408, %vm1409
      %vm1411 = vmor %vm1407, %vm1410
      %v1412 = vlaneseq
      %v1413 = vshrl.u32 %v1412, 7
      %v1414 = vand.u32 %v1413, 1
      %vm1415 = vcmp.ne.s32.totalorder %v1414, 0
      %vm1416 = vmxor %vm1411, %vm1415
      %v1417 = vsel %vm1416, %v1395, %v1401
      %v1418 = vsel %vm1416, %v1396, %v1405
      %1419 = xla_tuple %v1417, %v1418
      %1420 = vst [vmem:[%s1110] sm:$0xff] %v1417
      %1421 = vst [vmem:[%s1111] sm:$0xff] %v1418
      %1422 = xla_tuple %1420, %1421
      %s1423 = scalar_lea.vmem [#allocation13], 16
      %s1424 = scalar_lea.vmem [#allocation15], 16
      %1425 = xla_tuple %s1423, %s1424
      %v1426 = vld [vmem:[#allocation13] sm:$0xff]
      %v1427 = vld [vmem:[#allocation15] sm:$0xff]
      %1428 = xla_tuple %v1426, %v1427
      %v1429 = vld [vmem:[%s1423] sm:$0xff]
      %v1430 = vld [vmem:[%s1424] sm:$0xff]
      %1431 = xla_tuple %v1429, %v1430
      %vm1432 = vcmp.gt.s32.totalorder %v1426, %v1429
      %vm1433 = vcmp.eq.s32.totalorder %v1426, %v1429
      %vm1434 = vcmp.lt.s32.totalorder %v1427, %v1430
      %vm1435 = vmand %vm1433, %vm1434
      %vm1436 = vmor %vm1432, %vm1435
      %v1437 = vsel %vm1436, %v1426, %v1429
      %1438 = vst [vmem:[#allocation13] sm:$0xff] %v1437
      %v1439 = vsel %vm1436, %v1429, %v1426
      %1440 = vst [vmem:[%s1423] sm:$0xff] %v1439
      %v1441 = vsel %vm1436, %v1427, %v1430
      %1442 = vst [vmem:[#allocation15] sm:$0xff] %v1441
      %v1443 = vsel %vm1436, %v1430, %v1427
      %1444 = vst [vmem:[%s1424] sm:$0xff] %v1443
      %1445 = xla_tuple %1440, %1444
      %s1446 = scalar_lea.vmem [#allocation13], 8
      %v1447 = vld [vmem:[%s1446] sm:$0xff]
      %s1448 = scalar_lea.vmem [#allocation15], 8
      %v1449 = vld [vmem:[%s1448] sm:$0xff]
      %1450 = xla_tuple %v1447, %v1449
      %s1451 = scalar_lea.vmem %s1423, 8 [#allocation13]
      %v1452 = vld [vmem:[%s1451] sm:$0xff]
      %s1453 = scalar_lea.vmem %s1424, 8 [#allocation15]
      %v1454 = vld [vmem:[%s1453] sm:$0xff]
      %1455 = xla_tuple %v1452, %v1454
      %vm1456 = vcmp.gt.s32.totalorder %v1447, %v1452
      %vm1457 = vcmp.eq.s32.totalorder %v1447, %v1452
      %vm1458 = vcmp.lt.s32.totalorder %v1449, %v1454
      %vm1459 = vmand %vm1457, %vm1458
      %vm1460 = vmor %vm1456, %vm1459
      %s1461 = scalar_lea.vmem [#allocation13], 8
      %v1462 = vsel %vm1460, %v1447, %v1452
      %1463 = vst [vmem:[%s1461] sm:$0xff] %v1462
      %s1464 = scalar_lea.vmem %s1423, 8 [#allocation13]
      %v1465 = vsel %vm1460, %v1452, %v1447
      %1466 = vst [vmem:[%s1464] sm:$0xff] %v1465
      %s1467 = scalar_lea.vmem [#allocation15], 8
      %v1468 = vsel %vm1460, %v1449, %v1454
      %1469 = vst [vmem:[%s1467] sm:$0xff] %v1468
      %s1470 = scalar_lea.vmem %s1424, 8 [#allocation15]
      %v1471 = vsel %vm1460, %v1454, %v1449
      %1472 = vst [vmem:[%s1470] sm:$0xff] %v1471
      %1473 = xla_tuple %1466, %1472
      %s1474 = scalar_lea.vmem [#allocation13], 8
      %s1475 = scalar_lea.vmem [#allocation15], 8
      %1476 = xla_tuple %s1474, %s1475
      %v1477 = vld [vmem:[#allocation13] sm:$0xff]
      %v1478 = vld [vmem:[#allocation15] sm:$0xff]
      %1479 = xla_tuple %v1477, %v1478
      %v1480 = vld [vmem:[%s1474] sm:$0xff]
      %v1481 = vld [vmem:[%s1475] sm:$0xff]
      %1482 = xla_tuple %v1480, %v1481
      %vm1483 = vcmp.gt.s32.totalorder %v1477, %v1480
      %vm1484 = vcmp.eq.s32.totalorder %v1477, %v1480
      %vm1485 = vcmp.lt.s32.totalorder %v1478, %v1481
      %vm1486 = vmand %vm1484, %vm1485
      %vm1487 = vmor %vm1483, %vm1486
      %v1488 = vsel %vm1487, %v1477, %v1480
      %1489 = vst [vmem:[#allocation13] sm:$0xff] %v1488
      %v1490 = vsel %vm1487, %v1480, %v1477
      %1491 = vst [vmem:[%s1474] sm:$0xff] %v1490
      %v1492 = vsel %vm1487, %v1478, %v1481
      %1493 = vst [vmem:[#allocation15] sm:$0xff] %v1492
      %v1494 = vsel %vm1487, %v1481, %v1478
      %1495 = vst [vmem:[%s1475] sm:$0xff] %v1494
      %1496 = xla_tuple %1491, %1495
      %1497 = xla_tuple [#allocation13], [#allocation15]
      %v1498 = vld [vmem:[#allocation13] sm:$0xff]
      %v1499 = vld [vmem:[#allocation15] sm:$0xff]
      %1500 = xla_tuple %v1498, %v1499
      %v1502 = vunpack.c.l.s4 839939668
      %v1503 = vunpack.c.0.s8 %v1502
      %v1504 = vperm.slane %v1498, %v1503
      %v1506 = vunpack.c.l.s4 839939668
      %v1507 = vunpack.c.0.s8 %v1506
      %v1508 = vperm.slane %v1499, %v1507
      %1509 = xla_tuple %v1504, %v1508
      %vm1510 = vcmp.gt.s32.totalorder %v1498, %v1504
      %vm1511 = vcmp.eq.s32.totalorder %v1498, %v1504
      %vm1512 = vcmp.lt.s32.totalorder %v1499, %v1508
      %vm1513 = vmand %vm1511, %vm1512
      %vm1514 = vmor %vm1510, %vm1513
      %v1515 = vlaneseq
      %v1516 = vshrl.u32 %v1515, 7
      %v1517 = vand.u32 %v1516, 4
      %vm1518 = vcmp.ne.s32.totalorder %v1517, 0
      %vm1519 = vmxor %vm1514, %vm1518
      %v1520 = vsel %vm1519, %v1498, %v1504
      %v1521 = vsel %vm1519, %v1499, %v1508
      %1522 = xla_tuple %v1520, %v1521
      %v1524 = vunpack.c.l.s4 1417023538
      %v1525 = vunpack.c.0.s8 %v1524
      %v1526 = vperm.slane %v1520, %v1525
      %v1528 = vunpack.c.l.s4 1417023538
      %v1529 = vunpack.c.0.s8 %v1528
      %v1530 = vperm.slane %v1521, %v1529
      %1531 = xla_tuple %v1526, %v1530
      %vm1532 = vcmp.gt.s32.totalorder %v1520, %v1526
      %vm1533 = vcmp.eq.s32.totalorder %v1520, %v1526
      %vm1534 = vcmp.lt.s32.totalorder %v1521, %v1530
      %vm1535 = vmand %vm1533, %vm1534
      %vm1536 = vmor %vm1532, %vm1535
      %v1537 = vlaneseq
      %v1538 = vshrl.u32 %v1537, 7
      %v1539 = vand.u32 %v1538, 2
      %vm1540 = vcmp.ne.s32.totalorder %v1539, 0
      %vm1541 = vmxor %vm1536, %vm1540
      %v1542 = vsel %vm1541, %v1520, %v1526
      %v1543 = vsel %vm1541, %v1521, %v1530
      %1544 = xla_tuple %v1542, %v1543
      %v1546 = vunpack.c.l.s4 1732584193
      %v1547 = vunpack.c.0.s8 %v1546
      %v1548 = vperm.slane %v1542, %v1547
      %v1550 = vunpack.c.l.s4 1732584193
      %v1551 = vunpack.c.0.s8 %v1550
      %v1552 = vperm.slane %v1543, %v1551
      %1553 = xla_tuple %v1548, %v1552
      %vm1554 = vcmp.gt.s32.totalorder %v1542, %v1548
      %vm1555 = vcmp.eq.s32.totalorder %v1542, %v1548
      %vm1556 = vcmp.lt.s32.totalorder %v1543, %v1552
      %vm1557 = vmand %vm1555, %vm1556
      %vm1558 = vmor %vm1554, %vm1557
      %v1559 = vlaneseq
      %v1560 = vshrl.u32 %v1559, 7
      %v1561 = vand.u32 %v1560, 1
      %vm1562 = vcmp.ne.s32.totalorder %v1561, 0
      %vm1563 = vmxor %vm1558, %vm1562
      %v1564 = vsel %vm1563, %v1542, %v1548
      %v1565 = vsel %vm1563, %v1543, %v1552
      %1566 = xla_tuple %v1564, %v1565
      %1567 = vst [vmem:[#allocation13] sm:$0xff] %v1564
      %1568 = vst [vmem:[#allocation15] sm:$0xff] %v1565
      %1569 = xla_tuple %1567, %1568
      %v1570 = vld [vmem:[#allocation13] sm:$0xff]
      %v1571 = vld [vmem:[#allocation15] sm:$0xff]
      %1572 = xla_tuple %v1570, %v1571
      %v1574 = vunpack.c.l.s4 839939668
      %v1575 = vunpack.c.0.s8 %v1574
      %v1576 = vperm.slane %v1570, %v1575
      %v1578 = vunpack.c.l.s4 839939668
      %v1579 = vunpack.c.0.s8 %v1578
      %v1580 = vperm.slane %v1571, %v1579
      %1581 = xla_tuple %v1576, %v1580
      %vm1582 = vcmp.gt.s32.totalorder %v1570, %v1576
      %vm1583 = vcmp.eq.s32.totalorder %v1570, %v1576
      %vm1584 = vcmp.lt.s32.totalorder %v1571, %v1580
      %vm1585 = vmand %vm1583, %vm1584
      %vm1586 = vmor %vm1582, %vm1585
      %v1587 = vlaneseq
      %v1588 = vshrl.u32 %v1587, 7
      %v1589 = vand.u32 %v1588, 4
      %vm1590 = vcmp.ne.s32.totalorder %v1589, 0
      %vm1591 = vmxor %vm1586, %vm1590
      %v1592 = vsel %vm1591, %v1570, %v1576
      %v1593 = vsel %vm1591, %v1571, %v1580
      %1594 = xla_tuple %v1592, %v1593
      %v1596 = vunpack.c.l.s4 1417023538
      %v1597 = vunpack.c.0.s8 %v1596
      %v1598 = vperm.slane %v1592, %v1597
      %v1600 = vunpack.c.l.s4 1417023538
      %v1601 = vunpack.c.0.s8 %v1600
      %v1602 = vperm.slane %v1593, %v1601
      %1603 = xla_tuple %v1598, %v1602
      %vm1604 = vcmp.gt.s32.totalorder %v1592, %v1598
      %vm1605 = vcmp.eq.s32.totalorder %v1592, %v1598
      %vm1606 = vcmp.lt.s32.totalorder %v1593, %v1602
      %vm1607 = vmand %vm1605, %vm1606
      %vm1608 = vmor %vm1604, %vm1607
      %v1609 = vlaneseq
      %v1610 = vshrl.u32 %v1609, 7
      %v1611 = vand.u32 %v1610, 2
      %vm1612 = vcmp.ne.s32.totalorder %v1611, 0
      %vm1613 = vmxor %vm1608, %vm1612
      %v1614 = vsel %vm1613, %v1592, %v1598
      %v1615 = vsel %vm1613, %v1593, %v1602
      %1616 = xla_tuple %v1614, %v1615
      %v1618 = vunpack.c.l.s4 1732584193
      %v1619 = vunpack.c.0.s8 %v1618
      %v1620 = vperm.slane %v1614, %v1619
      %v1622 = vunpack.c.l.s4 1732584193
      %v1623 = vunpack.c.0.s8 %v1622
      %v1624 = vperm.slane %v1615, %v1623
      %1625 = xla_tuple %v1620, %v1624
      %vm1626 = vcmp.gt.s32.totalorder %v1614, %v1620
      %vm1627 = vcmp.eq.s32.totalorder %v1614, %v1620
      %vm1628 = vcmp.lt.s32.totalorder %v1615, %v1624
      %vm1629 = vmand %vm1627, %vm1628
      %vm1630 = vmor %vm1626, %vm1629
      %v1631 = vlaneseq
      %v1632 = vshrl.u32 %v1631, 7
      %v1633 = vand.u32 %v1632, 1
      %vm1634 = vcmp.ne.s32.totalorder %v1633, 0
      %vm1635 = vmxor %vm1630, %vm1634
      %v1636 = vsel %vm1635, %v1614, %v1620
      %v1637 = vsel %vm1635, %v1615, %v1624
      %1638 = xla_tuple %v1636, %v1637
      %1639 = vst [vmem:[#allocation13] sm:$0xff] %v1636
      %1640 = vst [vmem:[#allocation15] sm:$0xff] %v1637
      %1641 = xla_tuple %1639, %1640
      %1642 = xla_tuple %s1474, %s1475
      %v1643 = vld [vmem:[%s1474] sm:$0xff]
      %v1644 = vld [vmem:[%s1475] sm:$0xff]
      %1645 = xla_tuple %v1643, %v1644
      %v1647 = vunpack.c.l.s4 839939668
      %v1648 = vunpack.c.0.s8 %v1647
      %v1649 = vperm.slane %v1643, %v1648
      %v1651 = vunpack.c.l.s4 839939668
      %v1652 = vunpack.c.0.s8 %v1651
      %v1653 = vperm.slane %v1644, %v1652
      %1654 = xla_tuple %v1649, %v1653
      %vm1655 = vcmp.gt.s32.totalorder %v1643, %v1649
      %vm1656 = vcmp.eq.s32.totalorder %v1643, %v1649
      %vm1657 = vcmp.lt.s32.totalorder %v1644, %v1653
      %vm1658 = vmand %vm1656, %vm1657
      %vm1659 = vmor %vm1655, %vm1658
      %v1660 = vlaneseq
      %v1661 = vshrl.u32 %v1660, 7
      %v1662 = vand.u32 %v1661, 4
      %vm1663 = vcmp.ne.s32.totalorder %v1662, 0
      %vm1664 = vmxor %vm1659, %vm1663
      %v1665 = vsel %vm1664, %v1643, %v1649
      %v1666 = vsel %vm1664, %v1644, %v1653
      %1667 = xla_tuple %v1665, %v1666
      %v1669 = vunpack.c.l.s4 1417023538
      %v1670 = vunpack.c.0.s8 %v1669
      %v1671 = vperm.slane %v1665, %v1670
      %v1673 = vunpack.c.l.s4 1417023538
      %v1674 = vunpack.c.0.s8 %v1673
      %v1675 = vperm.slane %v1666, %v1674
      %1676 = xla_tuple %v1671, %v1675
      %vm1677 = vcmp.gt.s32.totalorder %v1665, %v1671
      %vm1678 = vcmp.eq.s32.totalorder %v1665, %v1671
      %vm1679 = vcmp.lt.s32.totalorder %v1666, %v1675
      %vm1680 = vmand %vm1678, %vm1679
      %vm1681 = vmor %vm1677, %vm1680
      %v1682 = vlaneseq
      %v1683 = vshrl.u32 %v1682, 7
      %v1684 = vand.u32 %v1683, 2
      %vm1685 = vcmp.ne.s32.totalorder %v1684, 0
      %vm1686 = vmxor %vm1681, %vm1685
      %v1687 = vsel %vm1686, %v1665, %v1671
      %v1688 = vsel %vm1686, %v1666, %v1675
      %1689 = xla_tuple %v1687, %v1688
      %v1691 = vunpack.c.l.s4 1732584193
      %v1692 = vunpack.c.0.s8 %v1691
      %v1693 = vperm.slane %v1687, %v1692
      %v1695 = vunpack.c.l.s4 1732584193
      %v1696 = vunpack.c.0.s8 %v1695
      %v1697 = vperm.slane %v1688, %v1696
      %1698 = xla_tuple %v1693, %v1697
      %vm1699 = vcmp.gt.s32.totalorder %v1687, %v1693
      %vm1700 = vcmp.eq.s32.totalorder %v1687, %v1693
      %vm1701 = vcmp.lt.s32.totalorder %v1688, %v1697
      %vm1702 = vmand %vm1700, %vm1701
      %vm1703 = vmor %vm1699, %vm1702
      %v1704 = vlaneseq
      %v1705 = vshrl.u32 %v1704, 7
      %v1706 = vand.u32 %v1705, 1
      %vm1707 = vcmp.ne.s32.totalorder %v1706, 0
      %vm1708 = vmxor %vm1703, %vm1707
      %v1709 = vsel %vm1708, %v1687, %v1693
      %v1710 = vsel %vm1708, %v1688, %v1697
      %1711 = xla_tuple %v1709, %v1710
      %1712 = vst [vmem:[%s1474] sm:$0xff] %v1709
      %1713 = vst [vmem:[%s1475] sm:$0xff] %v1710
      %1714 = xla_tuple %1712, %1713
      %v1715 = vld [vmem:[%s1474] sm:$0xff]
      %v1716 = vld [vmem:[%s1475] sm:$0xff]
      %1717 = xla_tuple %v1715, %v1716
      %v1719 = vunpack.c.l.s4 839939668
      %v1720 = vunpack.c.0.s8 %v1719
      %v1721 = vperm.slane %v1715, %v1720
      %v1723 = vunpack.c.l.s4 839939668
      %v1724 = vunpack.c.0.s8 %v1723
      %v1725 = vperm.slane %v1716, %v1724
      %1726 = xla_tuple %v1721, %v1725
      %vm1727 = vcmp.gt.s32.totalorder %v1715, %v1721
      %vm1728 = vcmp.eq.s32.totalorder %v1715, %v1721
      %vm1729 = vcmp.lt.s32.totalorder %v1716, %v1725
      %vm1730 = vmand %vm1728, %vm1729
      %vm1731 = vmor %vm1727, %vm1730
      %v1732 = vlaneseq
      %v1733 = vshrl.u32 %v1732, 7
      %v1734 = vand.u32 %v1733, 4
      %vm1735 = vcmp.ne.s32.totalorder %v1734, 0
      %vm1736 = vmxor %vm1731, %vm1735
      %v1737 = vsel %vm1736, %v1715, %v1721
      %v1738 = vsel %vm1736, %v1716, %v1725
      %1739 = xla_tuple %v1737, %v1738
      %v1741 = vunpack.c.l.s4 1417023538
      %v1742 = vunpack.c.0.s8 %v1741
      %v1743 = vperm.slane %v1737, %v1742
      %v1745 = vunpack.c.l.s4 1417023538
      %v1746 = vunpack.c.0.s8 %v1745
      %v1747 = vperm.slane %v1738, %v1746
      %1748 = xla_tuple %v1743, %v1747
      %vm1749 = vcmp.gt.s32.totalorder %v1737, %v1743
      %vm1750 = vcmp.eq.s32.totalorder %v1737, %v1743
      %vm1751 = vcmp.lt.s32.totalorder %v1738, %v1747
      %vm1752 = vmand %vm1750, %vm1751
      %vm1753 = vmor %vm1749, %vm1752
      %v1754 = vlaneseq
      %v1755 = vshrl.u32 %v1754, 7
      %v1756 = vand.u32 %v1755, 2
      %vm1757 = vcmp.ne.s32.totalorder %v1756, 0
      %vm1758 = vmxor %vm1753, %vm1757
      %v1759 = vsel %vm1758, %v1737, %v1743
      %v1760 = vsel %vm1758, %v1738, %v1747
      %1761 = xla_tuple %v1759, %v1760
      %v1763 = vunpack.c.l.s4 1732584193
      %v1764 = vunpack.c.0.s8 %v1763
      %v1765 = vperm.slane %v1759, %v1764
      %v1767 = vunpack.c.l.s4 1732584193
      %v1768 = vunpack.c.0.s8 %v1767
      %v1769 = vperm.slane %v1760, %v1768
      %1770 = xla_tuple %v1765, %v1769
      %vm1771 = vcmp.gt.s32.totalorder %v1759, %v1765
      %vm1772 = vcmp.eq.s32.totalorder %v1759, %v1765
      %vm1773 = vcmp.lt.s32.totalorder %v1760, %v1769
      %vm1774 = vmand %vm1772, %vm1773
      %vm1775 = vmor %vm1771, %vm1774
      %v1776 = vlaneseq
      %v1777 = vshrl.u32 %v1776, 7
      %v1778 = vand.u32 %v1777, 1
      %vm1779 = vcmp.ne.s32.totalorder %v1778, 0
      %vm1780 = vmxor %vm1775, %vm1779
      %v1781 = vsel %vm1780, %v1759, %v1765
      %v1782 = vsel %vm1780, %v1760, %v1769
      %1783 = xla_tuple %v1781, %v1782
      %1784 = vst [vmem:[%s1474] sm:$0xff] %v1781
      %1785 = vst [vmem:[%s1475] sm:$0xff] %v1782
      %1786 = xla_tuple %1784, %1785
      %s1787 = scalar_lea.vmem %s1423, 8 [#allocation13]
      %s1788 = scalar_lea.vmem %s1424, 8 [#allocation15]
      %1789 = xla_tuple %s1787, %s1788
      %v1790 = vld [vmem:[%s1423] sm:$0xff]
      %v1791 = vld [vmem:[%s1424] sm:$0xff]
      %1792 = xla_tuple %v1790, %v1791
      %v1793 = vld [vmem:[%s1787] sm:$0xff]
      %v1794 = vld [vmem:[%s1788] sm:$0xff]
      %1795 = xla_tuple %v1793, %v1794
      %vm1796 = vcmp.gt.s32.totalorder %v1790, %v1793
      %vm1797 = vcmp.eq.s32.totalorder %v1790, %v1793
      %vm1798 = vcmp.lt.s32.totalorder %v1791, %v1794
      %vm1799 = vmand %vm1797, %vm1798
      %vm1800 = vmor %vm1796, %vm1799
      %v1801 = vsel %vm1800, %v1790, %v1793
      %1802 = vst [vmem:[%s1423] sm:$0xff] %v1801
      %v1803 = vsel %vm1800, %v1793, %v1790
      %1804 = vst [vmem:[%s1787] sm:$0xff] %v1803
      %v1805 = vsel %vm1800, %v1791, %v1794
      %1806 = vst [vmem:[%s1424] sm:$0xff] %v1805
      %v1807 = vsel %vm1800, %v1794, %v1791
      %1808 = vst [vmem:[%s1788] sm:$0xff] %v1807
      %1809 = xla_tuple %1804, %1808
      %1810 = xla_tuple %s1423, %s1424
      %v1811 = vld [vmem:[%s1423] sm:$0xff]
      %v1812 = vld [vmem:[%s1424] sm:$0xff]
      %1813 = xla_tuple %v1811, %v1812
      %v1815 = vunpack.c.l.s4 839939668
      %v1816 = vunpack.c.0.s8 %v1815
      %v1817 = vperm.slane %v1811, %v1816
      %v1819 = vunpack.c.l.s4 839939668
      %v1820 = vunpack.c.0.s8 %v1819
      %v1821 = vperm.slane %v1812, %v1820
      %1822 = xla_tuple %v1817, %v1821
      %vm1823 = vcmp.gt.s32.totalorder %v1811, %v1817
      %vm1824 = vcmp.eq.s32.totalorder %v1811, %v1817
      %vm1825 = vcmp.lt.s32.totalorder %v1812, %v1821
      %vm1826 = vmand %vm1824, %vm1825
      %vm1827 = vmor %vm1823, %vm1826
      %v1828 = vlaneseq
      %v1829 = vshrl.u32 %v1828, 7
      %v1830 = vand.u32 %v1829, 4
      %vm1831 = vcmp.ne.s32.totalorder %v1830, 0
      %vm1832 = vmxor %vm1827, %vm1831
      %v1833 = vsel %vm1832, %v1811, %v1817
      %v1834 = vsel %vm1832, %v1812, %v1821
      %1835 = xla_tuple %v1833, %v1834
      %v1837 = vunpack.c.l.s4 1417023538
      %v1838 = vunpack.c.0.s8 %v1837
      %v1839 = vperm.slane %v1833, %v1838
      %v1841 = vunpack.c.l.s4 1417023538
      %v1842 = vunpack.c.0.s8 %v1841
      %v1843 = vperm.slane %v1834, %v1842
      %1844 = xla_tuple %v1839, %v1843
      %vm1845 = vcmp.gt.s32.totalorder %v1833, %v1839
      %vm1846 = vcmp.eq.s32.totalorder %v1833, %v1839
      %vm1847 = vcmp.lt.s32.totalorder %v1834, %v1843
      %vm1848 = vmand %vm1846, %vm1847
      %vm1849 = vmor %vm1845, %vm1848
      %v1850 = vlaneseq
      %v1851 = vshrl.u32 %v1850, 7
      %v1852 = vand.u32 %v1851, 2
      %vm1853 = vcmp.ne.s32.totalorder %v1852, 0
      %vm1854 = vmxor %vm1849, %vm1853
      %v1855 = vsel %vm1854, %v1833, %v1839
      %v1856 = vsel %vm1854, %v1834, %v1843
      %1857 = xla_tuple %v1855, %v1856
      %v1859 = vunpack.c.l.s4 1732584193
      %v1860 = vunpack.c.0.s8 %v1859
      %v1861 = vperm.slane %v1855, %v1860
      %v1863 = vunpack.c.l.s4 1732584193
      %v1864 = vunpack.c.0.s8 %v1863
      %v1865 = vperm.slane %v1856, %v1864
      %1866 = xla_tuple %v1861, %v1865
      %vm1867 = vcmp.gt.s32.totalorder %v1855, %v1861
      %vm1868 = vcmp.eq.s32.totalorder %v1855, %v1861
      %vm1869 = vcmp.lt.s32.totalorder %v1856, %v1865
      %vm1870 = vmand %vm1868, %vm1869
      %vm1871 = vmor %vm1867, %vm1870
      %v1872 = vlaneseq
      %v1873 = vshrl.u32 %v1872, 7
      %v1874 = vand.u32 %v1873, 1
      %vm1875 = vcmp.ne.s32.totalorder %v1874, 0
      %vm1876 = vmxor %vm1871, %vm1875
      %v1877 = vsel %vm1876, %v1855, %v1861
      %v1878 = vsel %vm1876, %v1856, %v1865
      %1879 = xla_tuple %v1877, %v1878
      %1880 = vst [vmem:[%s1423] sm:$0xff] %v1877
      %1881 = vst [vmem:[%s1424] sm:$0xff] %v1878
      %1882 = xla_tuple %1880, %1881
      %v1883 = vld [vmem:[%s1423] sm:$0xff]
      %v1884 = vld [vmem:[%s1424] sm:$0xff]
      %1885 = xla_tuple %v1883, %v1884
      %v1887 = vunpack.c.l.s4 839939668
      %v1888 = vunpack.c.0.s8 %v1887
      %v1889 = vperm.slane %v1883, %v1888
      %v1891 = vunpack.c.l.s4 839939668
      %v1892 = vunpack.c.0.s8 %v1891
      %v1893 = vperm.slane %v1884, %v1892
      %1894 = xla_tuple %v1889, %v1893
      %vm1895 = vcmp.gt.s32.totalorder %v1883, %v1889
      %vm1896 = vcmp.eq.s32.totalorder %v1883, %v1889
      %vm1897 = vcmp.lt.s32.totalorder %v1884, %v1893
      %vm1898 = vmand %vm1896, %vm1897
      %vm1899 = vmor %vm1895, %vm1898
      %v1900 = vlaneseq
      %v1901 = vshrl.u32 %v1900, 7
      %v1902 = vand.u32 %v1901, 4
      %vm1903 = vcmp.ne.s32.totalorder %v1902, 0
      %vm1904 = vmxor %vm1899, %vm1903
      %v1905 = vsel %vm1904, %v1883, %v1889
      %v1906 = vsel %vm1904, %v1884, %v1893
      %1907 = xla_tuple %v1905, %v1906
      %v1909 = vunpack.c.l.s4 1417023538
      %v1910 = vunpack.c.0.s8 %v1909
      %v1911 = vperm.slane %v1905, %v1910
      %v1913 = vunpack.c.l.s4 1417023538
      %v1914 = vunpack.c.0.s8 %v1913
      %v1915 = vperm.slane %v1906, %v1914
      %1916 = xla_tuple %v1911, %v1915
      %vm1917 = vcmp.gt.s32.totalorder %v1905, %v1911
      %vm1918 = vcmp.eq.s32.totalorder %v1905, %v1911
      %vm1919 = vcmp.lt.s32.totalorder %v1906, %v1915
      %vm1920 = vmand %vm1918, %vm1919
      %vm1921 = vmor %vm1917, %vm1920
      %v1922 = vlaneseq
      %v1923 = vshrl.u32 %v1922, 7
      %v1924 = vand.u32 %v1923, 2
      %vm1925 = vcmp.ne.s32.totalorder %v1924, 0
      %vm1926 = vmxor %vm1921, %vm1925
      %v1927 = vsel %vm1926, %v1905, %v1911
      %v1928 = vsel %vm1926, %v1906, %v1915
      %1929 = xla_tuple %v1927, %v1928
      %v1931 = vunpack.c.l.s4 1732584193
      %v1932 = vunpack.c.0.s8 %v1931
      %v1933 = vperm.slane %v1927, %v1932
      %v1935 = vunpack.c.l.s4 1732584193
      %v1936 = vunpack.c.0.s8 %v1935
      %v1937 = vperm.slane %v1928, %v1936
      %1938 = xla_tuple %v1933, %v1937
      %vm1939 = vcmp.gt.s32.totalorder %v1927, %v1933
      %vm1940 = vcmp.eq.s32.totalorder %v1927, %v1933
      %vm1941 = vcmp.lt.s32.totalorder %v1928, %v1937
      %vm1942 = vmand %vm1940, %vm1941
      %vm1943 = vmor %vm1939, %vm1942
      %v1944 = vlaneseq
      %v1945 = vshrl.u32 %v1944, 7
      %v1946 = vand.u32 %v1945, 1
      %vm1947 = vcmp.ne.s32.totalorder %v1946, 0
      %vm1948 = vmxor %vm1943, %vm1947
      %v1949 = vsel %vm1948, %v1927, %v1933
      %v1950 = vsel %vm1948, %v1928, %v1937
      %1951 = xla_tuple %v1949, %v1950
      %1952 = vst [vmem:[%s1423] sm:$0xff] %v1949
      %1953 = vst [vmem:[%s1424] sm:$0xff] %v1950
      %1954 = xla_tuple %1952, %1953
      %1955 = xla_tuple %s1787, %s1788
      %v1956 = vld [vmem:[%s1787] sm:$0xff]
      %v1957 = vld [vmem:[%s1788] sm:$0xff]
      %1958 = xla_tuple %v1956, %v1957
      %v1960 = vunpack.c.l.s4 839939668
      %v1961 = vunpack.c.0.s8 %v1960
      %v1962 = vperm.slane %v1956, %v1961
      %v1964 = vunpack.c.l.s4 839939668
      %v1965 = vunpack.c.0.s8 %v1964
      %v1966 = vperm.slane %v1957, %v1965
      %1967 = xla_tuple %v1962, %v1966
      %vm1968 = vcmp.gt.s32.totalorder %v1956, %v1962
      %vm1969 = vcmp.eq.s32.totalorder %v1956, %v1962
      %vm1970 = vcmp.lt.s32.totalorder %v1957, %v1966
      %vm1971 = vmand %vm1969, %vm1970
      %vm1972 = vmor %vm1968, %vm1971
      %v1973 = vlaneseq
      %v1974 = vshrl.u32 %v1973, 7
      %v1975 = vand.u32 %v1974, 4
      %vm1976 = vcmp.ne.s32.totalorder %v1975, 0
      %vm1977 = vmxor %vm1972, %vm1976
      %v1978 = vsel %vm1977, %v1956, %v1962
      %v1979 = vsel %vm1977, %v1957, %v1966
      %1980 = xla_tuple %v1978, %v1979
      %v1982 = vunpack.c.l.s4 1417023538
      %v1983 = vunpack.c.0.s8 %v1982
      %v1984 = vperm.slane %v1978, %v1983
      %v1986 = vunpack.c.l.s4 1417023538
      %v1987 = vunpack.c.0.s8 %v1986
      %v1988 = vperm.slane %v1979, %v1987
      %1989 = xla_tuple %v1984, %v1988
      %vm1990 = vcmp.gt.s32.totalorder %v1978, %v1984
      %vm1991 = vcmp.eq.s32.totalorder %v1978, %v1984
      %vm1992 = vcmp.lt.s32.totalorder %v1979, %v1988
      %vm1993 = vmand %vm1991, %vm1992
      %vm1994 = vmor %vm1990, %vm1993
      %v1995 = vlaneseq
      %v1996 = vshrl.u32 %v1995, 7
      %v1997 = vand.u32 %v1996, 2
      %vm1998 = vcmp.ne.s32.totalorder %v1997, 0
      %vm1999 = vmxor %vm1994, %vm1998
      %v2000 = vsel %vm1999, %v1978, %v1984
      %v2001 = vsel %vm1999, %v1979, %v1988
      %2002 = xla_tuple %v2000, %v2001
      %v2004 = vunpack.c.l.s4 1732584193
      %v2005 = vunpack.c.0.s8 %v2004
      %v2006 = vperm.slane %v2000, %v2005
      %v2008 = vunpack.c.l.s4 1732584193
      %v2009 = vunpack.c.0.s8 %v2008
      %v2010 = vperm.slane %v2001, %v2009
      %2011 = xla_tuple %v2006, %v2010
      %vm2012 = vcmp.gt.s32.totalorder %v2000, %v2006
      %vm2013 = vcmp.eq.s32.totalorder %v2000, %v2006
      %vm2014 = vcmp.lt.s32.totalorder %v2001, %v2010
      %vm2015 = vmand %vm2013, %vm2014
      %vm2016 = vmor %vm2012, %vm2015
      %v2017 = vlaneseq
      %v2018 = vshrl.u32 %v2017, 7
      %v2019 = vand.u32 %v2018, 1
      %vm2020 = vcmp.ne.s32.totalorder %v2019, 0
      %vm2021 = vmxor %vm2016, %vm2020
      %v2022 = vsel %vm2021, %v2000, %v2006
      %v2023 = vsel %vm2021, %v2001, %v2010
      %2024 = xla_tuple %v2022, %v2023
      %2025 = vst [vmem:[%s1787] sm:$0xff] %v2022
      %2026 = vst [vmem:[%s1788] sm:$0xff] %v2023
      %2027 = xla_tuple %2025, %2026
      %v2028 = vld [vmem:[%s1787] sm:$0xff]
      %v2029 = vld [vmem:[%s1788] sm:$0xff]
      %2030 = xla_tuple %v2028, %v2029
      %v2032 = vunpack.c.l.s4 839939668
      %v2033 = vunpack.c.0.s8 %v2032
      %v2034 = vperm.slane %v2028, %v2033
      %v2036 = vunpack.c.l.s4 839939668
      %v2037 = vunpack.c.0.s8 %v2036
      %v2038 = vperm.slane %v2029, %v2037
      %2039 = xla_tuple %v2034, %v2038
      %vm2040 = vcmp.gt.s32.totalorder %v2028, %v2034
      %vm2041 = vcmp.eq.s32.totalorder %v2028, %v2034
      %vm2042 = vcmp.lt.s32.totalorder %v2029, %v2038
      %vm2043 = vmand %vm2041, %vm2042
      %vm2044 = vmor %vm2040, %vm2043
      %v2045 = vlaneseq
      %v2046 = vshrl.u32 %v2045, 7
      %v2047 = vand.u32 %v2046, 4
      %vm2048 = vcmp.ne.s32.totalorder %v2047, 0
      %vm2049 = vmxor %vm2044, %vm2048
      %v2050 = vsel %vm2049, %v2028, %v2034
      %v2051 = vsel %vm2049, %v2029, %v2038
      %2052 = xla_tuple %v2050, %v2051
      %v2054 = vunpack.c.l.s4 1417023538
      %v2055 = vunpack.c.0.s8 %v2054
      %v2056 = vperm.slane %v2050, %v2055
      %v2058 = vunpack.c.l.s4 1417023538
      %v2059 = vunpack.c.0.s8 %v2058
      %v2060 = vperm.slane %v2051, %v2059
      %2061 = xla_tuple %v2056, %v2060
      %vm2062 = vcmp.gt.s32.totalorder %v2050, %v2056
      %vm2063 = vcmp.eq.s32.totalorder %v2050, %v2056
      %vm2064 = vcmp.lt.s32.totalorder %v2051, %v2060
      %vm2065 = vmand %vm2063, %vm2064
      %vm2066 = vmor %vm2062, %vm2065
      %v2067 = vlaneseq
      %v2068 = vshrl.u32 %v2067, 7
      %v2069 = vand.u32 %v2068, 2
      %vm2070 = vcmp.ne.s32.totalorder %v2069, 0
      %vm2071 = vmxor %vm2066, %vm2070
      %v2072 = vsel %vm2071, %v2050, %v2056
      %v2073 = vsel %vm2071, %v2051, %v2060
      %2074 = xla_tuple %v2072, %v2073
      %v2076 = vunpack.c.l.s4 1732584193
      %v2077 = vunpack.c.0.s8 %v2076
      %v2078 = vperm.slane %v2072, %v2077
      %v2080 = vunpack.c.l.s4 1732584193
      %v2081 = vunpack.c.0.s8 %v2080
      %v2082 = vperm.slane %v2073, %v2081
      %2083 = xla_tuple %v2078, %v2082
      %vm2084 = vcmp.gt.s32.totalorder %v2072, %v2078
      %vm2085 = vcmp.eq.s32.totalorder %v2072, %v2078
      %vm2086 = vcmp.lt.s32.totalorder %v2073, %v2082
      %vm2087 = vmand %vm2085, %vm2086
      %vm2088 = vmor %vm2084, %vm2087
      %v2089 = vlaneseq
      %v2090 = vshrl.u32 %v2089, 7
      %v2091 = vand.u32 %v2090, 1
      %vm2092 = vcmp.ne.s32.totalorder %v2091, 0
      %vm2093 = vmxor %vm2088, %vm2092
      %v2094 = vsel %vm2093, %v2072, %v2078
      %v2095 = vsel %vm2093, %v2073, %v2082
      %2096 = xla_tuple %v2094, %v2095
      %2097 = vst [vmem:[%s1787] sm:$0xff] %v2094
      %2098 = vst [vmem:[%s1788] sm:$0xff] %v2095
      %2099 = xla_tuple %2097, %2098
    %v2100 = vld [vmem:[#allocation12] sm:$0xff]
    %vm2101 = vcmp.lt.s32.totalorder %v2100, 0
    %v2102 = vsub.s32 2147483647, %v2100
    %v2103 = vsel %vm2101, %v2102, %v2100
    %2104 = vst [vmem:[#allocation12] sm:$0xff] %v2103
    %s2105 = scalar_lea.vmem [#allocation12], 8
    %v2106 = vld [vmem:[%s2105] sm:$0xff]
    %vm2107 = vcmp.lt.s32.totalorder %v2106, 0
    %v2108 = vsub.s32 2147483647, %v2106
    %v2109 = vsel %vm2107, %v2108, %v2106
    %2110 = vst [vmem:[%s2105] sm:$0xff] %v2109
    %s2111 = scalar_lea.vmem [#allocation12], 16
    %v2112 = vld [vmem:[%s2111] sm:$0xff]
    %vm2113 = vcmp.lt.s32.totalorder %v2112, 0
    %v2114 = vsub.s32 2147483647, %v2112
    %v2115 = vsel %vm2113, %v2114, %v2112
    %2116 = vst [vmem:[%s2111] sm:$0xff] %v2115
    %s2117 = scalar_lea.vmem [#allocation12], 24
    %v2118 = vld [vmem:[%s2117] sm:$0xff]
    %vm2119 = vcmp.lt.s32.totalorder %v2118, 0
    %v2120 = vsub.s32 2147483647, %v2118
    %v2121 = vsel %vm2119, %v2120, %v2118
    %2122 = vst [vmem:[%s2117] sm:$0xff] %v2121
    %v2123 = vld [vmem:[#allocation12] sm:$0xff]
    %s2124 = scalar_lea.vmem [#allocation12], 8
    %v2125 = vld [vmem:[%s2124] sm:$0xff]
    %s2126 = scalar_lea.vmem [#allocation12], 16
    %v2127 = vld [vmem:[%s2126] sm:$0xff]
    %s2128 = scalar_lea.vmem [#allocation12], 24
    %v2129 = vld [vmem:[%s2128] sm:$0xff]
    %2130 = vxpose.xlu0.b32.start [1/4] (short) %v2123, 128
    %2131 = vxpose.xlu0.b32.cont [2/4] (short) %v2125, 128
    %2132 = vxpose.xlu0.b32.cont [3/4] (short) %v2127, 128
    %2133 = vxpose.xlu0.b32.end [4/4] (short) %v2129, 128
    %v2134 = vpop.trf.xlu0
    %v2135 = vpop.trf.xlu0
    %v2136 = vpop.trf.xlu0
    %v2137 = vpop.trf.xlu0
    %v2138 = vpop.trf.xlu0
    %v2139 = vpop.trf.xlu0
    %v2140 = vpop.trf.xlu0
    %v2141 = vpop.trf.xlu0
    %v2142 = vpop.trf.xlu0
    %v2143 = vpop.trf.xlu0
    %v2144 = vpop.trf.xlu0
    %v2145 = vpop.trf.xlu0
    %v2146 = vpop.trf.xlu0
    %v2147 = vpop.trf.xlu0
    %v2148 = vpop.trf.xlu0
    %v2149 = vpop.trf.xlu0
    %2150 = vst [vmem:[#allocation7] sm:$0xff] %v2134
    %v2151 = vld [vmem:[#allocation14] sm:$0xff]
    %s2152 = scalar_lea.vmem [#allocation14], 8
    %v2153 = vld [vmem:[%s2152] sm:$0xff]
    %s2154 = scalar_lea.vmem [#allocation14], 16
    %v2155 = vld [vmem:[%s2154] sm:$0xff]
    %s2156 = scalar_lea.vmem [#allocation14], 24
    %v2157 = vld [vmem:[%s2156] sm:$0xff]
    %2158 = vxpose.xlu0.b32.start [1/4] (short) %v2151, 128
    %2159 = vxpose.xlu0.b32.cont [2/4] (short) %v2153, 128
    %2160 = vxpose.xlu0.b32.cont [3/4] (short) %v2155, 128
    %2161 = vxpose.xlu0.b32.end [4/4] (short) %v2157, 128
    %v2162 = vpop.trf.xlu0
    %v2163 = vpop.trf.xlu0
    %v2164 = vpop.trf.xlu0
    %v2165 = vpop.trf.xlu0
    %v2166 = vpop.trf.xlu0
    %v2167 = vpop.trf.xlu0
    %v2168 = vpop.trf.xlu0
    %v2169 = vpop.trf.xlu0
    %v2170 = vpop.trf.xlu0
    %v2171 = vpop.trf.xlu0
    %v2172 = vpop.trf.xlu0
    %v2173 = vpop.trf.xlu0
    %v2174 = vpop.trf.xlu0
    %v2175 = vpop.trf.xlu0
    %v2176 = vpop.trf.xlu0
    %v2177 = vpop.trf.xlu0
    %2178 = vst [vmem:[#allocation10] sm:$0xff] %v2162
    %s2180 = ssub.s32 4, 1
    %v2181 = vld [vmem:[#allocation7] sm:%s2180]
    %s2183 = ssub.s32 4, 1
    %2184 = vst [vmem:[#allocation8] sm:%s2183] %v2181
    %s2186 = ssub.s32 4, 1
    %v2187 = vld [vmem:[#allocation10] sm:%s2186]
    %s2189 = ssub.s32 4, 1
    %2190 = vst [vmem:[#allocation11] sm:%s2189] %v2187
    %2192 = vsyncadd [#allocation9], 0
    %s2194 = sshll.u32 [#allocation8], 4
    %s2195 = int_to_ptr.vmem [resolvable:$true] %s2194
    %s2196 = sshll.u32 %s1, 4
    %s2197 = int_to_ptr.hbm [resolvable:$true] %s2196
    %2199 = dma.vmem_to_hbm [thread:$0]  %s2195, 32, %s2197, [#allocation9]
    // Predicated region
    $region40: #{custom-call} parent=1 // pred_check
      _
    $region41: #{custom-call} parent=1 // pred_check_branch
      %2201 = sbr.rel (0) target = $region43
    $region42: #{custom-call} parent=1 // pred_region
      // Predicated region
      $region44: #{custom-call} parent=42 // pred_check
        _
      $region45: #{custom-call} parent=42 // pred_check_branch
        %2203 = sbr.rel target = $region47
      $region46: #{custom-call} parent=42 // pred_region
        // Predicated region
        $region59: #{custom-call} parent=46 // pred_check
          _
        $region60: #{custom-call} parent=46 // pred_check_branch
          %2219 = sbr.rel (0) target = $region62
        $region61: #{custom-call} parent=46 // pred_region
          %s2221 = ssub.s32 4, 1
          loop: start=0, step=1, limit=1
          $region63: #{custom-call} parent=61 // loop_pre_header
            _
          $region64: #{custom-call} parent=61 // loop_header
            %s2223 = sphi 0, %s2227
            %p2224 = scmp.ge.s32.totalorder %s2223, 1
            %s2228 = sphi [#allocation11], [#allocation11]
            %s2229 = sphi %s2, %s2
          $region65: #{custom-call} parent=61 // loop_header_branch
            %2226 = sbr.rel (%p2224) target = $region69
          $region66: #{custom-call} parent=61 // loop_body
            %v2230 = vld [vmem:[%s2228] sm:%s2221]
            %2231 = vst [vmem:[%s2229] sm:%s2221] %v2230
          $region67: #{custom-call} parent=61 // loop_footer
            %s2227 = sadd.s32 1, %s2223
          $region68: #{custom-call} parent=61 // loop_footer_branch
            %2222 = sbr.rel target = $region64
          $region69: #{custom-call} parent=61 // loop_exit
            _
        $region62: #{custom-call} parent=46 // pred_fallthru
          _
      $region47: #{custom-call} parent=42 // pred_fallthru
        _
      // Predicated region
      $region48: #{custom-call} parent=42 // pred_check
        _
      $region49: #{custom-call} parent=42 // pred_check_branch
        %2205 = sbr.rel (0) target = $region51
      $region50: #{custom-call} parent=42 // pred_region
        %s2207 = ssub.s32 4, 1
        loop: start=0, step=1, limit=1
        $region52: #{custom-call} parent=50 // loop_pre_header
          _
        $region53: #{custom-call} parent=50 // loop_header
          %s2209 = sphi 0, %s2213
          %p2210 = scmp.ge.s32.totalorder %s2209, 1
          %s2214 = sphi [#allocation11], [#allocation11]
          %s2215 = sphi %s2, %s2
        $region54: #{custom-call} parent=50 // loop_header_branch
          %2212 = sbr.rel (%p2210) target = $region58
        $region55: #{custom-call} parent=50 // loop_body
          %v2216 = vld [vmem:[%s2214] sm:%s2207]
          %2217 = vst [vmem:[%s2215] sm:%s2207] %v2216
        $region56: #{custom-call} parent=50 // loop_footer
          %s2213 = sadd.s32 1, %s2209
        $region57: #{custom-call} parent=50 // loop_footer_branch
          %2208 = sbr.rel target = $region53
        $region58: #{custom-call} parent=50 // loop_exit
          _
      $region51: #{custom-call} parent=42 // pred_fallthru
        _
    $region43: #{custom-call} parent=1 // pred_fallthru
      _
    %2232 = vnop
    %2234 = dma.done [#allocation9], 32
    %2235 = vsyncpa [#allocation9], 1

// kernel: faster_rcnn_forward.5
$region0: #{faster_rcnn_forward.5}
  #allocation0 [shape = 'u32[]', space=smem, size = 0x4, offset = 0x4, fixed_abs, tag = 'smem constant byte address 0x4 - core index']
  #allocation1 [shape = 'u32[72,128]{1,0:T(1,128)}', space=vmem, size = 0x9000, scoped, tag = 'internal scratch']
  %s0 = inlined_call_operand.vmem [shape: bf16[64,1568], index: 0, kind: input, shape index: {}]
  %s1 = inlined_call_operand.vmem [shape: bf16[1568,128], index: 1, kind: input, shape index: {}]
  %s2 = inlined_call_operand.vmem [shape: f32[1,128], index: 2, kind: input, shape index: {}]
  %s3 = inlined_call_operand.vmem [shape: bf16[128,128], index: 3, kind: input, shape index: {}]
  %s4 = inlined_call_operand.vmem [shape: f32[1,128], index: 4, kind: input, shape index: {}]
  %s5 = inlined_call_operand.vmem [shape: bf16[128,128], index: 5, kind: input, shape index: {}]
  %s6 = inlined_call_operand.vmem [shape: f32[1,128], index: 6, kind: input, shape index: {}]
  %s7 = inlined_call_operand.vmem [shape: f32[64,128], index: 7, kind: output, shape index: {}]
  %s8 = sld [smem:[#allocation0]]
  $region38: #{faster_rcnn_forward.5} parent=0
    _
  %s10 = ssub.s32 1, %s8
  %s11 = scalar_select 0, %s10, %s8
  // Predicated region
  $region2: #{faster_rcnn_forward.5} parent=0 // pred_check
    _
  $region3: #{faster_rcnn_forward.5} parent=0 // pred_check_branch
    %13 = sbr.rel (0) target = $region5
  $region4: #{faster_rcnn_forward.5} parent=0 // pred_region
    _
  $region5: #{faster_rcnn_forward.5} parent=0 // pred_fallthru
    _
  // Predicated region
  $region6: #{faster_rcnn_forward.5} parent=0 // pred_check
    _
  $region7: #{faster_rcnn_forward.5} parent=0 // pred_check_branch
    %15 = sbr.rel (0) target = $region9
  $region8: #{faster_rcnn_forward.5} parent=0 // pred_region
    _
  $region9: #{faster_rcnn_forward.5} parent=0 // pred_fallthru
    _
  // Predicated region
  $region10: #{faster_rcnn_forward.5} parent=0 // pred_check
    _
  $region11: #{faster_rcnn_forward.5} parent=0 // pred_check_branch
    %17 = sbr.rel (0) target = $region13
  $region12: #{faster_rcnn_forward.5} parent=0 // pred_region
    _
  $region13: #{faster_rcnn_forward.5} parent=0 // pred_fallthru
    _
  // Predicated region
  $region14: #{faster_rcnn_forward.5} parent=0 // pred_check
    _
  $region15: #{faster_rcnn_forward.5} parent=0 // pred_check_branch
    %19 = sbr.rel (0) target = $region17
  $region16: #{faster_rcnn_forward.5} parent=0 // pred_region
    _
  $region17: #{faster_rcnn_forward.5} parent=0 // pred_fallthru
    _
  // Predicated region
  $region18: #{faster_rcnn_forward.5} parent=0 // pred_check
    _
  $region19: #{faster_rcnn_forward.5} parent=0 // pred_check_branch
    %21 = sbr.rel (0) target = $region21
  $region20: #{faster_rcnn_forward.5} parent=0 // pred_region
    _
  $region21: #{faster_rcnn_forward.5} parent=0 // pred_fallthru
    _
  // Predicated region
  $region22: #{faster_rcnn_forward.5} parent=0 // pred_check
    _
  $region23: #{faster_rcnn_forward.5} parent=0 // pred_check_branch
    %23 = sbr.rel (0) target = $region25
  $region24: #{faster_rcnn_forward.5} parent=0 // pred_region
    _
  $region25: #{faster_rcnn_forward.5} parent=0 // pred_fallthru
    _
  // Predicated region
  $region26: #{faster_rcnn_forward.5} parent=0 // pred_check
    _
  $region27: #{faster_rcnn_forward.5} parent=0 // pred_check_branch
    %25 = sbr.rel (0) target = $region29
  $region28: #{faster_rcnn_forward.5} parent=0 // pred_region
    _
  $region29: #{faster_rcnn_forward.5} parent=0 // pred_fallthru
    _
  %v27 = vld [vmem:[%s0] sm:$0xff]
  %v28 = vld [vmem:[%s0 + $0x8] sm:$0xff]
  %v29 = vld [vmem:[%s0 + $0x10] sm:$0xff]
  %v30 = vld [vmem:[%s0 + $0x18] sm:$0xff]
  %v31 = vld [vmem:[%s0 + $0x20] sm:$0xff]
  %v32 = vld [vmem:[%s0 + $0x28] sm:$0xff]
  %v33 = vld [vmem:[%s0 + $0x30] sm:$0xf]
  %v34 = vld [vmem:[%s0 + $0x34] sm:$0xff]
  %v35 = vld [vmem:[%s0 + $0x3c] sm:$0xff]
  %v36 = vld [vmem:[%s0 + $0x44] sm:$0xff]
  %v37 = vld [vmem:[%s0 + $0x4c] sm:$0xff]
  %v38 = vld [vmem:[%s0 + $0x54] sm:$0xff]
  %v39 = vld [vmem:[%s0 + $0x5c] sm:$0xff]
  %v40 = vld [vmem:[%s0 + $0x64] sm:$0xf]
  %v41 = vld [vmem:[%s0 + $0x68] sm:$0xff]
  %v42 = vld [vmem:[%s0 + $0x70] sm:$0xff]
  %v43 = vld [vmem:[%s0 + $0x78] sm:$0xff]
  %v44 = vld [vmem:[%s0 + $0x80] sm:$0xff]
  %v45 = vld [vmem:[%s0 + $0x88] sm:$0xff]
  %v46 = vld [vmem:[%s0 + $0x90] sm:$0xff]
  %v47 = vld [vmem:[%s0 + $0x98] sm:$0xf]
  %v48 = vld [vmem:[%s0 + $0x9c] sm:$0xff]
  %v49 = vld [vmem:[%s0 + $0xa4] sm:$0xff]
  %v50 = vld [vmem:[%s0 + $0xac] sm:$0xff]
  %v51 = vld [vmem:[%s0 + $0xb4] sm:$0xff]
  %v52 = vld [vmem:[%s0 + $0xbc] sm:$0xff]
  %v53 = vld [vmem:[%s0 + $0xc4] sm:$0xff]
  %v54 = vld [vmem:[%s0 + $0xcc] sm:$0xf]
  %v55 = vld [vmem:[%s0 + $0xd0] sm:$0xff]
  %v56 = vld [vmem:[%s0 + $0xd8] sm:$0xff]
  %v57 = vld [vmem:[%s0 + $0xe0] sm:$0xff]
  %v58 = vld [vmem:[%s0 + $0xe8] sm:$0xff]
  %v59 = vld [vmem:[%s0 + $0xf0] sm:$0xff]
  %v60 = vld [vmem:[%s0 + $0xf8] sm:$0xff]
  %v61 = vld [vmem:[%s0 + $0x100] sm:$0xf]
  %v62 = vld [vmem:[%s0 + $0x104] sm:$0xff]
  %v63 = vld [vmem:[%s0 + $0x10c] sm:$0xff]
  %v64 = vld [vmem:[%s0 + $0x114] sm:$0xff]
  %v65 = vld [vmem:[%s0 + $0x11c] sm:$0xff]
  %v66 = vld [vmem:[%s0 + $0x124] sm:$0xff]
  %v67 = vld [vmem:[%s0 + $0x12c] sm:$0xff]
  %v68 = vld [vmem:[%s0 + $0x134] sm:$0xf]
  %v69 = vld [vmem:[%s0 + $0x138] sm:$0xff]
  %v70 = vld [vmem:[%s0 + $0x140] sm:$0xff]
  %v71 = vld [vmem:[%s0 + $0x148] sm:$0xff]
  %v72 = vld [vmem:[%s0 + $0x150] sm:$0xff]
  %v73 = vld [vmem:[%s0 + $0x158] sm:$0xff]
  %v74 = vld [vmem:[%s0 + $0x160] sm:$0xff]
  %v75 = vld [vmem:[%s0 + $0x168] sm:$0xf]
  %v76 = vld [vmem:[%s0 + $0x16c] sm:$0xff]
  %v77 = vld [vmem:[%s0 + $0x174] sm:$0xff]
  %v78 = vld [vmem:[%s0 + $0x17c] sm:$0xff]
  %v79 = vld [vmem:[%s0 + $0x184] sm:$0xff]
  %v80 = vld [vmem:[%s0 + $0x18c] sm:$0xff]
  %v81 = vld [vmem:[%s0 + $0x194] sm:$0xff]
  %v82 = vld [vmem:[%s0 + $0x19c] sm:$0xf]
  %v83 = vld [vmem:[%s1] sm:$0xf]
  %v84 = vld [vmem:[%s1 + $0x4] sm:$0xf]
  %v85 = vld [vmem:[%s1 + $0x8] sm:$0xf]
  %v86 = vld [vmem:[%s1 + $0xc] sm:$0xf]
  %v87 = vld [vmem:[%s1 + $0x10] sm:$0xf]
  %v88 = vld [vmem:[%s1 + $0x14] sm:$0xf]
  %v89 = vld [vmem:[%s1 + $0x18] sm:$0xf]
  %v90 = vld [vmem:[%s1 + $0x1c] sm:$0xf]
  %v91 = vld [vmem:[%s1 + $0x20] sm:$0xf]
  %v92 = vld [vmem:[%s1 + $0x24] sm:$0xf]
  %v93 = vld [vmem:[%s1 + $0x28] sm:$0xf]
  %v94 = vld [vmem:[%s1 + $0x2c] sm:$0xf]
  %v95 = vld [vmem:[%s1 + $0x30] sm:$0xf]
  %v96 = vld [vmem:[%s1 + $0x34] sm:$0xf]
  %v97 = vld [vmem:[%s1 + $0x38] sm:$0xf]
  %v98 = vld [vmem:[%s1 + $0x3c] sm:$0xf]
  %v99 = vld [vmem:[%s1 + $0x40] sm:$0xf]
  %v100 = vld [vmem:[%s1 + $0x44] sm:$0xf]
  %v101 = vld [vmem:[%s1 + $0x48] sm:$0xf]
  %v102 = vld [vmem:[%s1 + $0x4c] sm:$0xf]
  %v103 = vld [vmem:[%s1 + $0x50] sm:$0xf]
  %v104 = vld [vmem:[%s1 + $0x54] sm:$0xf]
  %v105 = vld [vmem:[%s1 + $0x58] sm:$0xf]
  %v106 = vld [vmem:[%s1 + $0x5c] sm:$0xf]
  %v107 = vld [vmem:[%s1 + $0x60] sm:$0xf]
  %v108 = vld [vmem:[%s1 + $0x64] sm:$0xf]
  %v109 = vld [vmem:[%s1 + $0x68] sm:$0xf]
  %v110 = vld [vmem:[%s1 + $0x6c] sm:$0xf]
  %v111 = vld [vmem:[%s1 + $0x70] sm:$0xf]
  %v112 = vld [vmem:[%s1 + $0x74] sm:$0xf]
  %v113 = vld [vmem:[%s1 + $0x78] sm:$0xf]
  %v114 = vld [vmem:[%s1 + $0x7c] sm:$0xf]
  %v115 = vld [vmem:[%s1 + $0x80] sm:$0xf]
  %v116 = vld [vmem:[%s1 + $0x84] sm:$0xf]
  %v117 = vld [vmem:[%s1 + $0x88] sm:$0xf]
  %v118 = vld [vmem:[%s1 + $0x8c] sm:$0xf]
  %v119 = vld [vmem:[%s1 + $0x90] sm:$0xf]
  %v120 = vld [vmem:[%s1 + $0x94] sm:$0xf]
  %v121 = vld [vmem:[%s1 + $0x98] sm:$0xf]
  %v122 = vld [vmem:[%s1 + $0x9c] sm:$0xf]
  %v123 = vld [vmem:[%s1 + $0xa0] sm:$0xf]
  %v124 = vld [vmem:[%s1 + $0xa4] sm:$0xf]
  %v125 = vld [vmem:[%s1 + $0xa8] sm:$0xf]
  %v126 = vld [vmem:[%s1 + $0xac] sm:$0xf]
  %v127 = vld [vmem:[%s1 + $0xb0] sm:$0xf]
  %v128 = vld [vmem:[%s1 + $0xb4] sm:$0xf]
  %v129 = vld [vmem:[%s1 + $0xb8] sm:$0xf]
  %v130 = vld [vmem:[%s1 + $0xbc] sm:$0xf]
  %v131 = vld [vmem:[%s1 + $0xc0] sm:$0xf]
  %v132 = vld [vmem:[%s1 + $0xc4] sm:$0xf]
  %v133 = vld [vmem:[%s1 + $0xc8] sm:$0xf]
  %v134 = vld [vmem:[%s1 + $0xcc] sm:$0xf]
  %v135 = vld [vmem:[%s1 + $0xd0] sm:$0xf]
  %v136 = vld [vmem:[%s1 + $0xd4] sm:$0xf]
  %v137 = vld [vmem:[%s1 + $0xd8] sm:$0xf]
  %v138 = vld [vmem:[%s1 + $0xdc] sm:$0xf]
  %v139 = vld [vmem:[%s1 + $0xe0] sm:$0xf]
  %v140 = vld [vmem:[%s1 + $0xe4] sm:$0xf]
  %v141 = vld [vmem:[%s1 + $0xe8] sm:$0xf]
  %v142 = vld [vmem:[%s1 + $0xec] sm:$0xf]
  %v143 = vld [vmem:[%s1 + $0xf0] sm:$0xf]
  %v144 = vld [vmem:[%s1 + $0xf4] sm:$0xf]
  %v145 = vld [vmem:[%s1 + $0xf8] sm:$0xf]
  %v146 = vld [vmem:[%s1 + $0xfc] sm:$0xf]
  %v147 = vld [vmem:[%s1 + $0x100] sm:$0xf]
  %v148 = vld [vmem:[%s1 + $0x104] sm:$0xf]
  %v149 = vld [vmem:[%s1 + $0x108] sm:$0xf]
  %v150 = vld [vmem:[%s1 + $0x10c] sm:$0xf]
  %v151 = vld [vmem:[%s1 + $0x110] sm:$0xf]
  %v152 = vld [vmem:[%s1 + $0x114] sm:$0xf]
  %v153 = vld [vmem:[%s1 + $0x118] sm:$0xf]
  %v154 = vld [vmem:[%s1 + $0x11c] sm:$0xf]
  %v155 = vld [vmem:[%s1 + $0x120] sm:$0xf]
  %v156 = vld [vmem:[%s1 + $0x124] sm:$0xf]
  %v157 = vld [vmem:[%s1 + $0x128] sm:$0xf]
  %v158 = vld [vmem:[%s1 + $0x12c] sm:$0xf]
  %v159 = vld [vmem:[%s1 + $0x130] sm:$0xf]
  %v160 = vld [vmem:[%s1 + $0x134] sm:$0xf]
  %v161 = vld [vmem:[%s1 + $0x138] sm:$0xf]
  %v162 = vld [vmem:[%s1 + $0x13c] sm:$0xf]
  %v163 = vld [vmem:[%s1 + $0x140] sm:$0xf]
  %v164 = vld [vmem:[%s1 + $0x144] sm:$0xf]
  %v165 = vld [vmem:[%s1 + $0x148] sm:$0xf]
  %v166 = vld [vmem:[%s1 + $0x14c] sm:$0xf]
  %v167 = vld [vmem:[%s1 + $0x150] sm:$0xf]
  %v168 = vld [vmem:[%s1 + $0x154] sm:$0xf]
  %v169 = vld [vmem:[%s1 + $0x158] sm:$0xf]
  %v170 = vld [vmem:[%s1 + $0x15c] sm:$0xf]
  %v171 = vld [vmem:[%s1 + $0x160] sm:$0xf]
  %v172 = vld [vmem:[%s1 + $0x164] sm:$0xf]
  %v173 = vld [vmem:[%s1 + $0x168] sm:$0xf]
  %v174 = vld [vmem:[%s1 + $0x16c] sm:$0xf]
  %v175 = vld [vmem:[%s1 + $0x170] sm:$0xf]
  %v176 = vld [vmem:[%s1 + $0x174] sm:$0xf]
  %v177 = vld [vmem:[%s1 + $0x178] sm:$0xf]
  %v178 = vld [vmem:[%s1 + $0x17c] sm:$0xf]
  %v179 = vld [vmem:[%s1 + $0x180] sm:$0xf]
  %v180 = vld [vmem:[%s1 + $0x184] sm:$0xf]
  %v181 = vld [vmem:[%s1 + $0x188] sm:$0xf]
  %v182 = vld [vmem:[%s1 + $0x18c] sm:$0xf]
  %v183 = vld [vmem:[%s1 + $0x190] sm:$0xf]
  %v184 = vld [vmem:[%s1 + $0x194] sm:$0xf]
  %v185 = vld [vmem:[%s1 + $0x198] sm:$0xf]
  %v186 = vld [vmem:[%s1 + $0x19c] sm:$0xf]
  %v187 = vld [vmem:[%s1 + $0x1a0] sm:$0xf]
  %v188 = vld [vmem:[%s1 + $0x1a4] sm:$0xf]
  %v189 = vld [vmem:[%s1 + $0x1a8] sm:$0xf]
  %v190 = vld [vmem:[%s1 + $0x1ac] sm:$0xf]
  %v191 = vld [vmem:[%s1 + $0x1b0] sm:$0xf]
  %v192 = vld [vmem:[%s1 + $0x1b4] sm:$0xf]
  %v193 = vld [vmem:[%s1 + $0x1b8] sm:$0xf]
  %v194 = vld [vmem:[%s1 + $0x1bc] sm:$0xf]
  %v195 = vld [vmem:[%s1 + $0x1c0] sm:$0xf]
  %v196 = vld [vmem:[%s1 + $0x1c4] sm:$0xf]
  %v197 = vld [vmem:[%s1 + $0x1c8] sm:$0xf]
  %v198 = vld [vmem:[%s1 + $0x1cc] sm:$0xf]
  %v199 = vld [vmem:[%s1 + $0x1d0] sm:$0xf]
  %v200 = vld [vmem:[%s1 + $0x1d4] sm:$0xf]
  %v201 = vld [vmem:[%s1 + $0x1d8] sm:$0xf]
  %v202 = vld [vmem:[%s1 + $0x1dc] sm:$0xf]
  %v203 = vld [vmem:[%s1 + $0x1e0] sm:$0xf]
  %v204 = vld [vmem:[%s1 + $0x1e4] sm:$0xf]
  %v205 = vld [vmem:[%s1 + $0x1e8] sm:$0xf]
  %v206 = vld [vmem:[%s1 + $0x1ec] sm:$0xf]
  %v207 = vld [vmem:[%s1 + $0x1f0] sm:$0xf]
  %v208 = vld [vmem:[%s1 + $0x1f4] sm:$0xf]
  %v209 = vld [vmem:[%s1 + $0x1f8] sm:$0xf]
  %v210 = vld [vmem:[%s1 + $0x1fc] sm:$0xf]
  %v211 = vld [vmem:[%s1 + $0x200] sm:$0xf]
  %v212 = vld [vmem:[%s1 + $0x204] sm:$0xf]
  %v213 = vld [vmem:[%s1 + $0x208] sm:$0xf]
  %v214 = vld [vmem:[%s1 + $0x20c] sm:$0xf]
  %v215 = vld [vmem:[%s1 + $0x210] sm:$0xf]
  %v216 = vld [vmem:[%s1 + $0x214] sm:$0xf]
  %v217 = vld [vmem:[%s1 + $0x218] sm:$0xf]
  %v218 = vld [vmem:[%s1 + $0x21c] sm:$0xf]
  %v219 = vld [vmem:[%s1 + $0x220] sm:$0xf]
  %v220 = vld [vmem:[%s1 + $0x224] sm:$0xf]
  %v221 = vld [vmem:[%s1 + $0x228] sm:$0xf]
  %v222 = vld [vmem:[%s1 + $0x22c] sm:$0xf]
  %v223 = vld [vmem:[%s1 + $0x230] sm:$0xf]
  %v224 = vld [vmem:[%s1 + $0x234] sm:$0xf]
  %v225 = vld [vmem:[%s1 + $0x238] sm:$0xf]
  %v226 = vld [vmem:[%s1 + $0x23c] sm:$0xf]
  %v227 = vld [vmem:[%s1 + $0x240] sm:$0xf]
  %v228 = vld [vmem:[%s1 + $0x244] sm:$0xf]
  %v229 = vld [vmem:[%s1 + $0x248] sm:$0xf]
  %v230 = vld [vmem:[%s1 + $0x24c] sm:$0xf]
  %v231 = vld [vmem:[%s1 + $0x250] sm:$0xf]
  %v232 = vld [vmem:[%s1 + $0x254] sm:$0xf]
  %v233 = vld [vmem:[%s1 + $0x258] sm:$0xf]
  %v234 = vld [vmem:[%s1 + $0x25c] sm:$0xf]
  %v235 = vld [vmem:[%s1 + $0x260] sm:$0xf]
  %v236 = vld [vmem:[%s1 + $0x264] sm:$0xf]
  %v237 = vld [vmem:[%s1 + $0x268] sm:$0xf]
  %v238 = vld [vmem:[%s1 + $0x26c] sm:$0xf]
  %v239 = vld [vmem:[%s1 + $0x270] sm:$0xf]
  %v240 = vld [vmem:[%s1 + $0x274] sm:$0xf]
  %v241 = vld [vmem:[%s1 + $0x278] sm:$0xf]
  %v242 = vld [vmem:[%s1 + $0x27c] sm:$0xf]
  %v243 = vld [vmem:[%s1 + $0x280] sm:$0xf]
  %v244 = vld [vmem:[%s1 + $0x284] sm:$0xf]
  %v245 = vld [vmem:[%s1 + $0x288] sm:$0xf]
  %v246 = vld [vmem:[%s1 + $0x28c] sm:$0xf]
  %v247 = vld [vmem:[%s1 + $0x290] sm:$0xf]
  %v248 = vld [vmem:[%s1 + $0x294] sm:$0xf]
  %v249 = vld [vmem:[%s1 + $0x298] sm:$0xf]
  %v250 = vld [vmem:[%s1 + $0x29c] sm:$0xf]
  %v251 = vld [vmem:[%s1 + $0x2a0] sm:$0xf]
  %v252 = vld [vmem:[%s1 + $0x2a4] sm:$0xf]
  %v253 = vld [vmem:[%s1 + $0x2a8] sm:$0xf]
  %v254 = vld [vmem:[%s1 + $0x2ac] sm:$0xf]
  %v255 = vld [vmem:[%s1 + $0x2b0] sm:$0xf]
  %v256 = vld [vmem:[%s1 + $0x2b4] sm:$0xf]
  %v257 = vld [vmem:[%s1 + $0x2b8] sm:$0xf]
  %v258 = vld [vmem:[%s1 + $0x2bc] sm:$0xf]
  %v259 = vld [vmem:[%s1 + $0x2c0] sm:$0xf]
  %v260 = vld [vmem:[%s1 + $0x2c4] sm:$0xf]
  %v261 = vld [vmem:[%s1 + $0x2c8] sm:$0xf]
  %v262 = vld [vmem:[%s1 + $0x2cc] sm:$0xf]
  %v263 = vld [vmem:[%s1 + $0x2d0] sm:$0xf]
  %v264 = vld [vmem:[%s1 + $0x2d4] sm:$0xf]
  %v265 = vld [vmem:[%s1 + $0x2d8] sm:$0xf]
  %v266 = vld [vmem:[%s1 + $0x2dc] sm:$0xf]
  %v267 = vld [vmem:[%s1 + $0x2e0] sm:$0xf]
  %v268 = vld [vmem:[%s1 + $0x2e4] sm:$0xf]
  %v269 = vld [vmem:[%s1 + $0x2e8] sm:$0xf]
  %v270 = vld [vmem:[%s1 + $0x2ec] sm:$0xf]
  %v271 = vld [vmem:[%s1 + $0x2f0] sm:$0xf]
  %v272 = vld [vmem:[%s1 + $0x2f4] sm:$0xf]
  %v273 = vld [vmem:[%s1 + $0x2f8] sm:$0xf]
  %v274 = vld [vmem:[%s1 + $0x2fc] sm:$0xf]
  %v275 = vld [vmem:[%s1 + $0x300] sm:$0xf]
  %v276 = vld [vmem:[%s1 + $0x304] sm:$0xf]
  %v277 = vld [vmem:[%s1 + $0x308] sm:$0xf]
  %v278 = vld [vmem:[%s1 + $0x30c] sm:$0xf]
  %v279 = vld [vmem:[%s2] sm:$0x1]
  %v281 = vperm.slane %v279, 0
  %v339 = vunpack.c.l.b16 %v27
  %v340 = vunpack.c.h.b16 %v27
  %v341 = vunpack.c.l.b16 %v28
  %v342 = vunpack.c.h.b16 %v28
  %v343 = vunpack.c.l.b16 %v29
  %v344 = vunpack.c.h.b16 %v29
  %v345 = vunpack.c.l.b16 %v30
  %v346 = vunpack.c.h.b16 %v30
  %v347 = vunpack.c.l.b16 %v31
  %v348 = vunpack.c.h.b16 %v31
  %v349 = vunpack.c.l.b16 %v32
  %v350 = vunpack.c.h.b16 %v32
  %v351 = vunpack.c.l.b16 %v33
  %v352 = vunpack.c.l.b16 %v34
  %v353 = vunpack.c.h.b16 %v34
  %v354 = vunpack.c.l.b16 %v35
  %v355 = vunpack.c.h.b16 %v35
  %v356 = vunpack.c.l.b16 %v36
  %v357 = vunpack.c.h.b16 %v36
  %v358 = vunpack.c.l.b16 %v37
  %v359 = vunpack.c.h.b16 %v37
  %v360 = vunpack.c.l.b16 %v38
  %v361 = vunpack.c.h.b16 %v38
  %v362 = vunpack.c.l.b16 %v39
  %v363 = vunpack.c.h.b16 %v39
  %v364 = vunpack.c.l.b16 %v40
  %v365 = vunpack.c.l.b16 %v41
  %v366 = vunpack.c.h.b16 %v41
  %v367 = vunpack.c.l.b16 %v42
  %v368 = vunpack.c.h.b16 %v42
  %v369 = vunpack.c.l.b16 %v43
  %v370 = vunpack.c.h.b16 %v43
  %v371 = vunpack.c.l.b16 %v44
  %v372 = vunpack.c.h.b16 %v44
  %v373 = vunpack.c.l.b16 %v45
  %v374 = vunpack.c.h.b16 %v45
  %v375 = vunpack.c.l.b16 %v46
  %v376 = vunpack.c.h.b16 %v46
  %v377 = vunpack.c.l.b16 %v47
  %v378 = vunpack.c.l.b16 %v48
  %v379 = vunpack.c.h.b16 %v48
  %v380 = vunpack.c.l.b16 %v49
  %v381 = vunpack.c.h.b16 %v49
  %v382 = vunpack.c.l.b16 %v50
  %v383 = vunpack.c.h.b16 %v50
  %v384 = vunpack.c.l.b16 %v51
  %v385 = vunpack.c.h.b16 %v51
  %v386 = vunpack.c.l.b16 %v52
  %v387 = vunpack.c.h.b16 %v52
  %v388 = vunpack.c.l.b16 %v53
  %v389 = vunpack.c.h.b16 %v53
  %v390 = vunpack.c.l.b16 %v54
  %v391 = vunpack.c.l.b16 %v55
  %v392 = vunpack.c.h.b16 %v55
  %v393 = vunpack.c.l.b16 %v56
  %v394 = vunpack.c.h.b16 %v56
  %v395 = vunpack.c.l.b16 %v57
  %v396 = vunpack.c.h.b16 %v57
  %v397 = vunpack.c.l.b16 %v58
  %v398 = vunpack.c.h.b16 %v58
  %v399 = vunpack.c.l.b16 %v59
  %v400 = vunpack.c.h.b16 %v59
  %v401 = vunpack.c.l.b16 %v60
  %v402 = vunpack.c.h.b16 %v60
  %v403 = vunpack.c.l.b16 %v61
  %v404 = vunpack.c.l.b16 %v62
  %v405 = vunpack.c.h.b16 %v62
  %v406 = vunpack.c.l.b16 %v63
  %v407 = vunpack.c.h.b16 %v63
  %v408 = vunpack.c.l.b16 %v64
  %v409 = vunpack.c.h.b16 %v64
  %v410 = vunpack.c.l.b16 %v65
  %v411 = vunpack.c.h.b16 %v65
  %v412 = vunpack.c.l.b16 %v66
  %v413 = vunpack.c.h.b16 %v66
  %v414 = vunpack.c.l.b16 %v67
  %v415 = vunpack.c.h.b16 %v67
  %v416 = vunpack.c.l.b16 %v68
  %v417 = vunpack.c.l.b16 %v69
  %v418 = vunpack.c.h.b16 %v69
  %v419 = vunpack.c.l.b16 %v70
  %v420 = vunpack.c.h.b16 %v70
  %v421 = vunpack.c.l.b16 %v71
  %v422 = vunpack.c.h.b16 %v71
  %v423 = vunpack.c.l.b16 %v72
  %v424 = vunpack.c.h.b16 %v72
  %v425 = vunpack.c.l.b16 %v73
  %v426 = vunpack.c.h.b16 %v73
  %v427 = vunpack.c.l.b16 %v74
  %v428 = vunpack.c.h.b16 %v74
  %v429 = vunpack.c.l.b16 %v75
  %v430 = vunpack.c.l.b16 %v76
  %v431 = vunpack.c.h.b16 %v76
  %v432 = vunpack.c.l.b16 %v77
  %v433 = vunpack.c.h.b16 %v77
  %v434 = vunpack.c.l.b16 %v78
  %v435 = vunpack.c.h.b16 %v78
  %v436 = vunpack.c.l.b16 %v79
  %v437 = vunpack.c.h.b16 %v79
  %v438 = vunpack.c.l.b16 %v80
  %v439 = vunpack.c.h.b16 %v80
  %v440 = vunpack.c.l.b16 %v81
  %v441 = vunpack.c.h.b16 %v81
  %v442 = vunpack.c.l.b16 %v82
  %v443 = vpack.c.b16 %v352, %v339
  %v444 = vpack.c.b16 %v353, %v340
  %v445 = vpack.c.b16 %v354, %v341
  %v446 = vpack.c.b16 %v355, %v342
  %v447 = vpack.c.b16 %v356, %v343
  %v448 = vpack.c.b16 %v357, %v344
  %v449 = vpack.c.b16 %v358, %v345
  %v450 = vpack.c.b16 %v359, %v346
  %v451 = vpack.c.b16 %v360, %v347
  %v452 = vpack.c.b16 %v361, %v348
  %v453 = vpack.c.b16 %v362, %v349
  %v454 = vpack.c.b16 %v363, %v350
  %v455 = vpack.c.b16 %v364, %v351
  %v456 = vpack.c.b16 %v378, %v365
  %v457 = vpack.c.b16 %v379, %v366
  %v458 = vpack.c.b16 %v380, %v367
  %v459 = vpack.c.b16 %v381, %v368
  %v460 = vpack.c.b16 %v382, %v369
  %v461 = vpack.c.b16 %v383, %v370
  %v462 = vpack.c.b16 %v384, %v371
  %v463 = vpack.c.b16 %v385, %v372
  %v464 = vpack.c.b16 %v386, %v373
  %v465 = vpack.c.b16 %v387, %v374
  %v466 = vpack.c.b16 %v388, %v375
  %v467 = vpack.c.b16 %v389, %v376
  %v468 = vpack.c.b16 %v390, %v377
  %v469 = vpack.c.b16 %v404, %v391
  %v470 = vpack.c.b16 %v405, %v392
  %v471 = vpack.c.b16 %v406, %v393
  %v472 = vpack.c.b16 %v407, %v394
  %v473 = vpack.c.b16 %v408, %v395
  %v474 = vpack.c.b16 %v409, %v396
  %v475 = vpack.c.b16 %v410, %v397
  %v476 = vpack.c.b16 %v411, %v398
  %v477 = vpack.c.b16 %v412, %v399
  %v478 = vpack.c.b16 %v413, %v400
  %v479 = vpack.c.b16 %v414, %v401
  %v480 = vpack.c.b16 %v415, %v402
  %v481 = vpack.c.b16 %v416, %v403
  %v482 = vpack.c.b16 %v430, %v417
  %v483 = vpack.c.b16 %v431, %v418
  %v484 = vpack.c.b16 %v432, %v419
  %v485 = vpack.c.b16 %v433, %v420
  %v486 = vpack.c.b16 %v434, %v421
  %v487 = vpack.c.b16 %v435, %v422
  %v488 = vpack.c.b16 %v436, %v423
  %v489 = vpack.c.b16 %v437, %v424
  %v490 = vpack.c.b16 %v438, %v425
  %v491 = vpack.c.b16 %v439, %v426
  %v492 = vpack.c.b16 %v440, %v427
  %v493 = vpack.c.b16 %v441, %v428
  %v494 = vpack.c.b16 %v442, %v429
  %v739 = vunpack.c.l.b16 %v83
  %v740 = vunpack.c.l.b16 %v84
  %v741 = vunpack.c.l.b16 %v85
  %v742 = vunpack.c.l.b16 %v86
  %v743 = vunpack.c.l.b16 %v87
  %v744 = vunpack.c.l.b16 %v88
  %v745 = vunpack.c.l.b16 %v89
  %v746 = vunpack.c.l.b16 %v90
  %v747 = vunpack.c.l.b16 %v91
  %v748 = vunpack.c.l.b16 %v92
  %v749 = vunpack.c.l.b16 %v93
  %v750 = vunpack.c.l.b16 %v94
  %v751 = vunpack.c.l.b16 %v95
  %v752 = vunpack.c.l.b16 %v96
  %v753 = vunpack.c.l.b16 %v97
  %v754 = vunpack.c.l.b16 %v98
  %v755 = vunpack.c.l.b16 %v99
  %v756 = vunpack.c.l.b16 %v100
  %v757 = vunpack.c.l.b16 %v101
  %v758 = vunpack.c.l.b16 %v102
  %v759 = vunpack.c.l.b16 %v103
  %v760 = vunpack.c.l.b16 %v104
  %v761 = vunpack.c.l.b16 %v105
  %v762 = vunpack.c.l.b16 %v106
  %v763 = vunpack.c.l.b16 %v107
  %v764 = vunpack.c.l.b16 %v108
  %v765 = vunpack.c.l.b16 %v109
  %v766 = vunpack.c.l.b16 %v110
  %v767 = vunpack.c.l.b16 %v111
  %v768 = vunpack.c.l.b16 %v112
  %v769 = vunpack.c.l.b16 %v113
  %v770 = vunpack.c.l.b16 %v114
  %v771 = vunpack.c.l.b16 %v115
  %v772 = vunpack.c.l.b16 %v116
  %v773 = vunpack.c.l.b16 %v117
  %v774 = vunpack.c.l.b16 %v118
  %v775 = vunpack.c.l.b16 %v119
  %v776 = vunpack.c.l.b16 %v120
  %v777 = vunpack.c.l.b16 %v121
  %v778 = vunpack.c.l.b16 %v122
  %v779 = vunpack.c.l.b16 %v123
  %v780 = vunpack.c.l.b16 %v124
  %v781 = vunpack.c.l.b16 %v125
  %v782 = vunpack.c.l.b16 %v126
  %v783 = vunpack.c.l.b16 %v127
  %v784 = vunpack.c.l.b16 %v128
  %v785 = vunpack.c.l.b16 %v129
  %v786 = vunpack.c.l.b16 %v130
  %v787 = vunpack.c.l.b16 %v131
  %v788 = vunpack.c.l.b16 %v132
  %v789 = vunpack.c.l.b16 %v133
  %v790 = vunpack.c.l.b16 %v134
  %v791 = vunpack.c.l.b16 %v135
  %v792 = vunpack.c.l.b16 %v136
  %v793 = vunpack.c.l.b16 %v137
  %v794 = vunpack.c.l.b16 %v138
  %v795 = vunpack.c.l.b16 %v139
  %v796 = vunpack.c.l.b16 %v140
  %v797 = vunpack.c.l.b16 %v141
  %v798 = vunpack.c.l.b16 %v142
  %v799 = vunpack.c.l.b16 %v143
  %v800 = vunpack.c.l.b16 %v144
  %v801 = vunpack.c.l.b16 %v145
  %v802 = vunpack.c.l.b16 %v146
  %v803 = vunpack.c.l.b16 %v147
  %v804 = vunpack.c.l.b16 %v148
  %v805 = vunpack.c.l.b16 %v149
  %v806 = vunpack.c.l.b16 %v150
  %v807 = vunpack.c.l.b16 %v151
  %v808 = vunpack.c.l.b16 %v152
  %v809 = vunpack.c.l.b16 %v153
  %v810 = vunpack.c.l.b16 %v154
  %v811 = vunpack.c.l.b16 %v155
  %v812 = vunpack.c.l.b16 %v156
  %v813 = vunpack.c.l.b16 %v157
  %v814 = vunpack.c.l.b16 %v158
  %v815 = vunpack.c.l.b16 %v159
  %v816 = vunpack.c.l.b16 %v160
  %v817 = vunpack.c.l.b16 %v161
  %v818 = vunpack.c.l.b16 %v162
  %v819 = vunpack.c.l.b16 %v163
  %v820 = vunpack.c.l.b16 %v164
  %v821 = vunpack.c.l.b16 %v165
  %v822 = vunpack.c.l.b16 %v166
  %v823 = vunpack.c.l.b16 %v167
  %v824 = vunpack.c.l.b16 %v168
  %v825 = vunpack.c.l.b16 %v169
  %v826 = vunpack.c.l.b16 %v170
  %v827 = vunpack.c.l.b16 %v171
  %v828 = vunpack.c.l.b16 %v172
  %v829 = vunpack.c.l.b16 %v173
  %v830 = vunpack.c.l.b16 %v174
  %v831 = vunpack.c.l.b16 %v175
  %v832 = vunpack.c.l.b16 %v176
  %v833 = vunpack.c.l.b16 %v177
  %v834 = vunpack.c.l.b16 %v178
  %v835 = vunpack.c.l.b16 %v179
  %v836 = vunpack.c.l.b16 %v180
  %v837 = vunpack.c.l.b16 %v181
  %v838 = vunpack.c.l.b16 %v182
  %v839 = vunpack.c.l.b16 %v183
  %v840 = vunpack.c.l.b16 %v184
  %v841 = vunpack.c.l.b16 %v185
  %v842 = vunpack.c.l.b16 %v186
  %v843 = vunpack.c.l.b16 %v187
  %v844 = vunpack.c.l.b16 %v188
  %v845 = vunpack.c.l.b16 %v189
  %v846 = vunpack.c.l.b16 %v190
  %v847 = vunpack.c.l.b16 %v191
  %v848 = vunpack.c.l.b16 %v192
  %v849 = vunpack.c.l.b16 %v193
  %v850 = vunpack.c.l.b16 %v194
  %v851 = vunpack.c.l.b16 %v195
  %v852 = vunpack.c.l.b16 %v196
  %v853 = vunpack.c.l.b16 %v197
  %v854 = vunpack.c.l.b16 %v198
  %v855 = vunpack.c.l.b16 %v199
  %v856 = vunpack.c.l.b16 %v200
  %v857 = vunpack.c.l.b16 %v201
  %v858 = vunpack.c.l.b16 %v202
  %v859 = vunpack.c.l.b16 %v203
  %v860 = vunpack.c.l.b16 %v204
  %v861 = vunpack.c.l.b16 %v205
  %v862 = vunpack.c.l.b16 %v206
  %v863 = vunpack.c.l.b16 %v207
  %v864 = vunpack.c.l.b16 %v208
  %v865 = vunpack.c.l.b16 %v209
  %v866 = vunpack.c.l.b16 %v210
  %v867 = vunpack.c.l.b16 %v211
  %v868 = vunpack.c.l.b16 %v212
  %v869 = vunpack.c.l.b16 %v213
  %v870 = vunpack.c.l.b16 %v214
  %v871 = vunpack.c.l.b16 %v215
  %v872 = vunpack.c.l.b16 %v216
  %v873 = vunpack.c.l.b16 %v217
  %v874 = vunpack.c.l.b16 %v218
  %v875 = vunpack.c.l.b16 %v219
  %v876 = vunpack.c.l.b16 %v220
  %v877 = vunpack.c.l.b16 %v221
  %v878 = vunpack.c.l.b16 %v222
  %v879 = vunpack.c.l.b16 %v223
  %v880 = vunpack.c.l.b16 %v224
  %v881 = vunpack.c.l.b16 %v225
  %v882 = vunpack.c.l.b16 %v226
  %v883 = vunpack.c.l.b16 %v227
  %v884 = vunpack.c.l.b16 %v228
  %v885 = vunpack.c.l.b16 %v229
  %v886 = vunpack.c.l.b16 %v230
  %v887 = vunpack.c.l.b16 %v231
  %v888 = vunpack.c.l.b16 %v232
  %v889 = vunpack.c.l.b16 %v233
  %v890 = vunpack.c.l.b16 %v234
  %v891 = vunpack.c.l.b16 %v235
  %v892 = vunpack.c.l.b16 %v236
  %v893 = vunpack.c.l.b16 %v237
  %v894 = vunpack.c.l.b16 %v238
  %v895 = vunpack.c.l.b16 %v239
  %v896 = vunpack.c.l.b16 %v240
  %v897 = vunpack.c.l.b16 %v241
  %v898 = vunpack.c.l.b16 %v242
  %v899 = vunpack.c.l.b16 %v243
  %v900 = vunpack.c.l.b16 %v244
  %v901 = vunpack.c.l.b16 %v245
  %v902 = vunpack.c.l.b16 %v246
  %v903 = vunpack.c.l.b16 %v247
  %v904 = vunpack.c.l.b16 %v248
  %v905 = vunpack.c.l.b16 %v249
  %v906 = vunpack.c.l.b16 %v250
  %v907 = vunpack.c.l.b16 %v251
  %v908 = vunpack.c.l.b16 %v252
  %v909 = vunpack.c.l.b16 %v253
  %v910 = vunpack.c.l.b16 %v254
  %v911 = vunpack.c.l.b16 %v255
  %v912 = vunpack.c.l.b16 %v256
  %v913 = vunpack.c.l.b16 %v257
  %v914 = vunpack.c.l.b16 %v258
  %v915 = vunpack.c.l.b16 %v259
  %v916 = vunpack.c.l.b16 %v260
  %v917 = vunpack.c.l.b16 %v261
  %v918 = vunpack.c.l.b16 %v262
  %v919 = vunpack.c.l.b16 %v263
  %v920 = vunpack.c.l.b16 %v264
  %v921 = vunpack.c.l.b16 %v265
  %v922 = vunpack.c.l.b16 %v266
  %v923 = vunpack.c.l.b16 %v267
  %v924 = vunpack.c.l.b16 %v268
  %v925 = vunpack.c.l.b16 %v269
  %v926 = vunpack.c.l.b16 %v270
  %v927 = vunpack.c.l.b16 %v271
  %v928 = vunpack.c.l.b16 %v272
  %v929 = vunpack.c.l.b16 %v273
  %v930 = vunpack.c.l.b16 %v274
  %v931 = vunpack.c.l.b16 %v275
  %v932 = vunpack.c.l.b16 %v276
  %v933 = vunpack.c.l.b16 %v277
  %v934 = vunpack.c.l.b16 %v278
  %v935 = vpack.c.b16 %v740, %v739
  %v936 = vpack.c.b16 %v742, %v741
  %v937 = vpack.c.b16 %v744, %v743
  %v938 = vpack.c.b16 %v746, %v745
  %v939 = vpack.c.b16 %v748, %v747
  %v940 = vpack.c.b16 %v750, %v749
  %v941 = vpack.c.b16 %v752, %v751
  %v942 = vpack.c.b16 %v754, %v753
  %v943 = vpack.c.b16 %v756, %v755
  %v944 = vpack.c.b16 %v758, %v757
  %v945 = vpack.c.b16 %v760, %v759
  %v946 = vpack.c.b16 %v762, %v761
  %v947 = vpack.c.b16 %v764, %v763
  %v948 = vpack.c.b16 %v766, %v765
  %v949 = vpack.c.b16 %v768, %v767
  %v950 = vpack.c.b16 %v770, %v769
  %v951 = vpack.c.b16 %v772, %v771
  %v952 = vpack.c.b16 %v774, %v773
  %v953 = vpack.c.b16 %v776, %v775
  %v954 = vpack.c.b16 %v778, %v777
  %v955 = vpack.c.b16 %v780, %v779
  %v956 = vpack.c.b16 %v782, %v781
  %v957 = vpack.c.b16 %v784, %v783
  %v958 = vpack.c.b16 %v786, %v785
  %v959 = vpack.c.b16 %v788, %v787
  %v960 = vpack.c.b16 %v790, %v789
  %v961 = vpack.c.b16 %v792, %v791
  %v962 = vpack.c.b16 %v794, %v793
  %v963 = vpack.c.b16 %v796, %v795
  %v964 = vpack.c.b16 %v798, %v797
  %v965 = vpack.c.b16 %v800, %v799
  %v966 = vpack.c.b16 %v802, %v801
  %v967 = vpack.c.b16 %v804, %v803
  %v968 = vpack.c.b16 %v806, %v805
  %v969 = vpack.c.b16 %v808, %v807
  %v970 = vpack.c.b16 %v810, %v809
  %v971 = vpack.c.b16 %v812, %v811
  %v972 = vpack.c.b16 %v814, %v813
  %v973 = vpack.c.b16 %v816, %v815
  %v974 = vpack.c.b16 %v818, %v817
  %v975 = vpack.c.b16 %v820, %v819
  %v976 = vpack.c.b16 %v822, %v821
  %v977 = vpack.c.b16 %v824, %v823
  %v978 = vpack.c.b16 %v826, %v825
  %v979 = vpack.c.b16 %v828, %v827
  %v980 = vpack.c.b16 %v830, %v829
  %v981 = vpack.c.b16 %v832, %v831
  %v982 = vpack.c.b16 %v834, %v833
  %v983 = vpack.c.b16 %v836, %v835
  %v984 = vpack.c.b16 %v838, %v837
  %v985 = vpack.c.b16 %v840, %v839
  %v986 = vpack.c.b16 %v842, %v841
  %v987 = vpack.c.b16 %v844, %v843
  %v988 = vpack.c.b16 %v846, %v845
  %v989 = vpack.c.b16 %v848, %v847
  %v990 = vpack.c.b16 %v850, %v849
  %v991 = vpack.c.b16 %v852, %v851
  %v992 = vpack.c.b16 %v854, %v853
  %v993 = vpack.c.b16 %v856, %v855
  %v994 = vpack.c.b16 %v858, %v857
  %v995 = vpack.c.b16 %v860, %v859
  %v996 = vpack.c.b16 %v862, %v861
  %v997 = vpack.c.b16 %v864, %v863
  %v998 = vpack.c.b16 %v866, %v865
  %v999 = vpack.c.b16 %v868, %v867
  %v1000 = vpack.c.b16 %v870, %v869
  %v1001 = vpack.c.b16 %v872, %v871
  %v1002 = vpack.c.b16 %v874, %v873
  %v1003 = vpack.c.b16 %v876, %v875
  %v1004 = vpack.c.b16 %v878, %v877
  %v1005 = vpack.c.b16 %v880, %v879
  %v1006 = vpack.c.b16 %v882, %v881
  %v1007 = vpack.c.b16 %v884, %v883
  %v1008 = vpack.c.b16 %v886, %v885
  %v1009 = vpack.c.b16 %v888, %v887
  %v1010 = vpack.c.b16 %v890, %v889
  %v1011 = vpack.c.b16 %v892, %v891
  %v1012 = vpack.c.b16 %v894, %v893
  %v1013 = vpack.c.b16 %v896, %v895
  %v1014 = vpack.c.b16 %v898, %v897
  %v1015 = vpack.c.b16 %v900, %v899
  %v1016 = vpack.c.b16 %v902, %v901
  %v1017 = vpack.c.b16 %v904, %v903
  %v1018 = vpack.c.b16 %v906, %v905
  %v1019 = vpack.c.b16 %v908, %v907
  %v1020 = vpack.c.b16 %v910, %v909
  %v1021 = vpack.c.b16 %v912, %v911
  %v1022 = vpack.c.b16 %v914, %v913
  %v1023 = vpack.c.b16 %v916, %v915
  %v1024 = vpack.c.b16 %v918, %v917
  %v1025 = vpack.c.b16 %v920, %v919
  %v1026 = vpack.c.b16 %v922, %v921
  %v1027 = vpack.c.b16 %v924, %v923
  %v1028 = vpack.c.b16 %v926, %v925
  %v1029 = vpack.c.b16 %v928, %v927
  %v1030 = vpack.c.b16 %v930, %v929
  %v1031 = vpack.c.b16 %v932, %v931
  %v1032 = vpack.c.b16 %v934, %v933
  %vm1131 = vcmask 261120
  %v1133 = vsel %vm1131, %v455, 0
  %v1136 = vsel %vm1131, %v468, 0
  %v1139 = vsel %vm1131, %v481, 0
  %v1142 = vsel %vm1131, %v494, 0
  %1144 = vmatpush.bf16.msra.mxu0 %v942
  %1145 = vmatpush.bf16.msra.mxu0 %v941
  %1146 = vmatpush.bf16.msra.mxu0 %v940
  %1147 = vmatpush.bf16.msra.mxu0 %v939
  %1148 = vmatpush.bf16.msra.mxu0 %v938
  %1149 = vmatpush.bf16.msra.mxu0 %v937
  %1150 = vmatpush.bf16.msra.mxu0 %v936
  %1151 = vmatpush.bf16.msra.mxu0 %v935
  %1152 = vmatmul.bf16.gmra.mxu0 %v443
  %v1153 = vpop.f32.mrf.mxu0
  %v1154 = vadd.f32 %v281, %v1153
  %v1155 = vpop.f32.mrf.mxu0
  %v1156 = vadd.f32 %v281, %v1155
  %1157 = vmatmul.bf16.gmra.mxu0 %v456
  %v1158 = vpop.f32.mrf.mxu0
  %v1159 = vadd.f32 %v281, %v1158
  %v1160 = vpop.f32.mrf.mxu0
  %v1161 = vadd.f32 %v281, %v1160
  %1162 = vmatmul.bf16.gmra.mxu0 %v469
  %v1163 = vpop.f32.mrf.mxu0
  %v1164 = vadd.f32 %v281, %v1163
  %v1165 = vpop.f32.mrf.mxu0
  %v1166 = vadd.f32 %v281, %v1165
  %1167 = vmatmul.bf16.gmra.mxu0 %v482
  %v1168 = vpop.f32.mrf.mxu0
  %v1169 = vadd.f32 %v281, %v1168
  %v1170 = vpop.f32.mrf.mxu0
  %v1171 = vadd.f32 %v281, %v1170
  %1172 = vdwg.mxu0
  %1173 = vmatpush.bf16.msra.mxu0 %v950
  %1174 = vmatpush.bf16.msra.mxu0 %v949
  %1175 = vmatpush.bf16.msra.mxu0 %v948
  %1176 = vmatpush.bf16.msra.mxu0 %v947
  %1177 = vmatpush.bf16.msra.mxu0 %v946
  %1178 = vmatpush.bf16.msra.mxu0 %v945
  %1179 = vmatpush.bf16.msra.mxu0 %v944
  %1180 = vmatpush.bf16.msra.mxu0 %v943
  %1181 = vmatmul.bf16.gmra.mxu0 %v444
  %v1182 = vpop.f32.mrf.mxu0
  %v1183 = vadd.f32 %v1154, %v1182
  %v1184 = vpop.f32.mrf.mxu0
  %v1185 = vadd.f32 %v1156, %v1184
  %1186 = vmatmul.bf16.gmra.mxu0 %v457
  %v1187 = vpop.f32.mrf.mxu0
  %v1188 = vadd.f32 %v1159, %v1187
  %v1189 = vpop.f32.mrf.mxu0
  %v1190 = vadd.f32 %v1161, %v1189
  %1191 = vmatmul.bf16.gmra.mxu0 %v470
  %v1192 = vpop.f32.mrf.mxu0
  %v1193 = vadd.f32 %v1164, %v1192
  %v1194 = vpop.f32.mrf.mxu0
  %v1195 = vadd.f32 %v1166, %v1194
  %1196 = vmatmul.bf16.gmra.mxu0 %v483
  %v1197 = vpop.f32.mrf.mxu0
  %v1198 = vadd.f32 %v1169, %v1197
  %v1199 = vpop.f32.mrf.mxu0
  %v1200 = vadd.f32 %v1171, %v1199
  %1201 = vdwg.mxu0
  %1202 = vmatpush.bf16.msra.mxu0 %v958
  %1203 = vmatpush.bf16.msra.mxu0 %v957
  %1204 = vmatpush.bf16.msra.mxu0 %v956
  %1205 = vmatpush.bf16.msra.mxu0 %v955
  %1206 = vmatpush.bf16.msra.mxu0 %v954
  %1207 = vmatpush.bf16.msra.mxu0 %v953
  %1208 = vmatpush.bf16.msra.mxu0 %v952
  %1209 = vmatpush.bf16.msra.mxu0 %v951
  %1210 = vmatmul.bf16.gmra.mxu0 %v445
  %v1211 = vpop.f32.mrf.mxu0
  %v1212 = vadd.f32 %v1183, %v1211
  %v1213 = vpop.f32.mrf.mxu0
  %v1214 = vadd.f32 %v1185, %v1213
  %1215 = vmatmul.bf16.gmra.mxu0 %v458
  %v1216 = vpop.f32.mrf.mxu0
  %v1217 = vadd.f32 %v1188, %v1216
  %v1218 = vpop.f32.mrf.mxu0
  %v1219 = vadd.f32 %v1190, %v1218
  %1220 = vmatmul.bf16.gmra.mxu0 %v471
  %v1221 = vpop.f32.mrf.mxu0
  %v1222 = vadd.f32 %v1193, %v1221
  %v1223 = vpop.f32.mrf.mxu0
  %v1224 = vadd.f32 %v1195, %v1223
  %1225 = vmatmul.bf16.gmra.mxu0 %v484
  %v1226 = vpop.f32.mrf.mxu0
  %v1227 = vadd.f32 %v1198, %v1226
  %v1228 = vpop.f32.mrf.mxu0
  %v1229 = vadd.f32 %v1200, %v1228
  %1230 = vdwg.mxu0
  %1231 = vmatpush.bf16.msra.mxu0 %v966
  %1232 = vmatpush.bf16.msra.mxu0 %v965
  %1233 = vmatpush.bf16.msra.mxu0 %v964
  %1234 = vmatpush.bf16.msra.mxu0 %v963
  %1235 = vmatpush.bf16.msra.mxu0 %v962
  %1236 = vmatpush.bf16.msra.mxu0 %v961
  %1237 = vmatpush.bf16.msra.mxu0 %v960
  %1238 = vmatpush.bf16.msra.mxu0 %v959
  %1239 = vmatmul.bf16.gmra.mxu0 %v446
  %v1240 = vpop.f32.mrf.mxu0
  %v1241 = vadd.f32 %v1212, %v1240
  %v1242 = vpop.f32.mrf.mxu0
  %v1243 = vadd.f32 %v1214, %v1242
  %1244 = vmatmul.bf16.gmra.mxu0 %v459
  %v1245 = vpop.f32.mrf.mxu0
  %v1246 = vadd.f32 %v1217, %v1245
  %v1247 = vpop.f32.mrf.mxu0
  %v1248 = vadd.f32 %v1219, %v1247
  %1249 = vmatmul.bf16.gmra.mxu0 %v472
  %v1250 = vpop.f32.mrf.mxu0
  %v1251 = vadd.f32 %v1222, %v1250
  %v1252 = vpop.f32.mrf.mxu0
  %v1253 = vadd.f32 %v1224, %v1252
  %1254 = vmatmul.bf16.gmra.mxu0 %v485
  %v1255 = vpop.f32.mrf.mxu0
  %v1256 = vadd.f32 %v1227, %v1255
  %v1257 = vpop.f32.mrf.mxu0
  %v1258 = vadd.f32 %v1229, %v1257
  %1259 = vdwg.mxu0
  %1260 = vmatpush.bf16.msra.mxu0 %v974
  %1261 = vmatpush.bf16.msra.mxu0 %v973
  %1262 = vmatpush.bf16.msra.mxu0 %v972
  %1263 = vmatpush.bf16.msra.mxu0 %v971
  %1264 = vmatpush.bf16.msra.mxu0 %v970
  %1265 = vmatpush.bf16.msra.mxu0 %v969
  %1266 = vmatpush.bf16.msra.mxu0 %v968
  %1267 = vmatpush.bf16.msra.mxu0 %v967
  %1268 = vmatmul.bf16.gmra.mxu0 %v447
  %v1269 = vpop.f32.mrf.mxu0
  %v1270 = vadd.f32 %v1241, %v1269
  %v1271 = vpop.f32.mrf.mxu0
  %v1272 = vadd.f32 %v1243, %v1271
  %1273 = vmatmul.bf16.gmra.mxu0 %v460
  %v1274 = vpop.f32.mrf.mxu0
  %v1275 = vadd.f32 %v1246, %v1274
  %v1276 = vpop.f32.mrf.mxu0
  %v1277 = vadd.f32 %v1248, %v1276
  %1278 = vmatmul.bf16.gmra.mxu0 %v473
  %v1279 = vpop.f32.mrf.mxu0
  %v1280 = vadd.f32 %v1251, %v1279
  %v1281 = vpop.f32.mrf.mxu0
  %v1282 = vadd.f32 %v1253, %v1281
  %1283 = vmatmul.bf16.gmra.mxu0 %v486
  %v1284 = vpop.f32.mrf.mxu0
  %v1285 = vadd.f32 %v1256, %v1284
  %v1286 = vpop.f32.mrf.mxu0
  %v1287 = vadd.f32 %v1258, %v1286
  %1288 = vdwg.mxu0
  %1289 = vmatpush.bf16.msra.mxu0 %v982
  %1290 = vmatpush.bf16.msra.mxu0 %v981
  %1291 = vmatpush.bf16.msra.mxu0 %v980
  %1292 = vmatpush.bf16.msra.mxu0 %v979
  %1293 = vmatpush.bf16.msra.mxu0 %v978
  %1294 = vmatpush.bf16.msra.mxu0 %v977
  %1295 = vmatpush.bf16.msra.mxu0 %v976
  %1296 = vmatpush.bf16.msra.mxu0 %v975
  %1297 = vmatmul.bf16.gmra.mxu0 %v448
  %v1298 = vpop.f32.mrf.mxu0
  %v1299 = vadd.f32 %v1270, %v1298
  %v1300 = vpop.f32.mrf.mxu0
  %v1301 = vadd.f32 %v1272, %v1300
  %1302 = vmatmul.bf16.gmra.mxu0 %v461
  %v1303 = vpop.f32.mrf.mxu0
  %v1304 = vadd.f32 %v1275, %v1303
  %v1305 = vpop.f32.mrf.mxu0
  %v1306 = vadd.f32 %v1277, %v1305
  %1307 = vmatmul.bf16.gmra.mxu0 %v474
  %v1308 = vpop.f32.mrf.mxu0
  %v1309 = vadd.f32 %v1280, %v1308
  %v1310 = vpop.f32.mrf.mxu0
  %v1311 = vadd.f32 %v1282, %v1310
  %1312 = vmatmul.bf16.gmra.mxu0 %v487
  %v1313 = vpop.f32.mrf.mxu0
  %v1314 = vadd.f32 %v1285, %v1313
  %v1315 = vpop.f32.mrf.mxu0
  %v1316 = vadd.f32 %v1287, %v1315
  %1317 = vdwg.mxu0
  %1318 = vmatpush.bf16.msra.mxu0 %v990
  %1319 = vmatpush.bf16.msra.mxu0 %v989
  %1320 = vmatpush.bf16.msra.mxu0 %v988
  %1321 = vmatpush.bf16.msra.mxu0 %v987
  %1322 = vmatpush.bf16.msra.mxu0 %v986
  %1323 = vmatpush.bf16.msra.mxu0 %v985
  %1324 = vmatpush.bf16.msra.mxu0 %v984
  %1325 = vmatpush.bf16.msra.mxu0 %v983
  %1326 = vmatmul.bf16.gmra.mxu0 %v449
  %v1327 = vpop.f32.mrf.mxu0
  %v1328 = vadd.f32 %v1299, %v1327
  %v1329 = vpop.f32.mrf.mxu0
  %v1330 = vadd.f32 %v1301, %v1329
  %1331 = vmatmul.bf16.gmra.mxu0 %v462
  %v1332 = vpop.f32.mrf.mxu0
  %v1333 = vadd.f32 %v1304, %v1332
  %v1334 = vpop.f32.mrf.mxu0
  %v1335 = vadd.f32 %v1306, %v1334
  %1336 = vmatmul.bf16.gmra.mxu0 %v475
  %v1337 = vpop.f32.mrf.mxu0
  %v1338 = vadd.f32 %v1309, %v1337
  %v1339 = vpop.f32.mrf.mxu0
  %v1340 = vadd.f32 %v1311, %v1339
  %1341 = vmatmul.bf16.gmra.mxu0 %v488
  %v1342 = vpop.f32.mrf.mxu0
  %v1343 = vadd.f32 %v1314, %v1342
  %v1344 = vpop.f32.mrf.mxu0
  %v1345 = vadd.f32 %v1316, %v1344
  %1346 = vdwg.mxu0
  %1347 = vmatpush.bf16.msra.mxu0 %v998
  %1348 = vmatpush.bf16.msra.mxu0 %v997
  %1349 = vmatpush.bf16.msra.mxu0 %v996
  %1350 = vmatpush.bf16.msra.mxu0 %v995
  %1351 = vmatpush.bf16.msra.mxu0 %v994
  %1352 = vmatpush.bf16.msra.mxu0 %v993
  %1353 = vmatpush.bf16.msra.mxu0 %v992
  %1354 = vmatpush.bf16.msra.mxu0 %v991
  %1355 = vmatmul.bf16.gmra.mxu0 %v450
  %v1356 = vpop.f32.mrf.mxu0
  %v1357 = vadd.f32 %v1328, %v1356
  %v1358 = vpop.f32.mrf.mxu0
  %v1359 = vadd.f32 %v1330, %v1358
  %1360 = vmatmul.bf16.gmra.mxu0 %v463
  %v1361 = vpop.f32.mrf.mxu0
  %v1362 = vadd.f32 %v1333, %v1361
  %v1363 = vpop.f32.mrf.mxu0
  %v1364 = vadd.f32 %v1335, %v1363
  %1365 = vmatmul.bf16.gmra.mxu0 %v476
  %v1366 = vpop.f32.mrf.mxu0
  %v1367 = vadd.f32 %v1338, %v1366
  %v1368 = vpop.f32.mrf.mxu0
  %v1369 = vadd.f32 %v1340, %v1368
  %1370 = vmatmul.bf16.gmra.mxu0 %v489
  %v1371 = vpop.f32.mrf.mxu0
  %v1372 = vadd.f32 %v1343, %v1371
  %v1373 = vpop.f32.mrf.mxu0
  %v1374 = vadd.f32 %v1345, %v1373
  %1375 = vdwg.mxu0
  %1376 = vmatpush.bf16.msra.mxu0 %v1006
  %1377 = vmatpush.bf16.msra.mxu0 %v1005
  %1378 = vmatpush.bf16.msra.mxu0 %v1004
  %1379 = vmatpush.bf16.msra.mxu0 %v1003
  %1380 = vmatpush.bf16.msra.mxu0 %v1002
  %1381 = vmatpush.bf16.msra.mxu0 %v1001
  %1382 = vmatpush.bf16.msra.mxu0 %v1000
  %1383 = vmatpush.bf16.msra.mxu0 %v999
  %1384 = vmatmul.bf16.gmra.mxu0 %v451
  %v1385 = vpop.f32.mrf.mxu0
  %v1386 = vadd.f32 %v1357, %v1385
  %v1387 = vpop.f32.mrf.mxu0
  %v1388 = vadd.f32 %v1359, %v1387
  %1389 = vmatmul.bf16.gmra.mxu0 %v464
  %v1390 = vpop.f32.mrf.mxu0
  %v1391 = vadd.f32 %v1362, %v1390
  %v1392 = vpop.f32.mrf.mxu0
  %v1393 = vadd.f32 %v1364, %v1392
  %1394 = vmatmul.bf16.gmra.mxu0 %v477
  %v1395 = vpop.f32.mrf.mxu0
  %v1396 = vadd.f32 %v1367, %v1395
  %v1397 = vpop.f32.mrf.mxu0
  %v1398 = vadd.f32 %v1369, %v1397
  %1399 = vmatmul.bf16.gmra.mxu0 %v490
  %v1400 = vpop.f32.mrf.mxu0
  %v1401 = vadd.f32 %v1372, %v1400
  %v1402 = vpop.f32.mrf.mxu0
  %v1403 = vadd.f32 %v1374, %v1402
  %1404 = vdwg.mxu0
  %1405 = vmatpush.bf16.msra.mxu0 %v1014
  %1406 = vmatpush.bf16.msra.mxu0 %v1013
  %1407 = vmatpush.bf16.msra.mxu0 %v1012
  %1408 = vmatpush.bf16.msra.mxu0 %v1011
  %1409 = vmatpush.bf16.msra.mxu0 %v1010
  %1410 = vmatpush.bf16.msra.mxu0 %v1009
  %1411 = vmatpush.bf16.msra.mxu0 %v1008
  %1412 = vmatpush.bf16.msra.mxu0 %v1007
  %1413 = vmatmul.bf16.gmra.mxu0 %v452
  %v1414 = vpop.f32.mrf.mxu0
  %v1415 = vadd.f32 %v1386, %v1414
  %v1416 = vpop.f32.mrf.mxu0
  %v1417 = vadd.f32 %v1388, %v1416
  %1418 = vmatmul.bf16.gmra.mxu0 %v465
  %v1419 = vpop.f32.mrf.mxu0
  %v1420 = vadd.f32 %v1391, %v1419
  %v1421 = vpop.f32.mrf.mxu0
  %v1422 = vadd.f32 %v1393, %v1421
  %1423 = vmatmul.bf16.gmra.mxu0 %v478
  %v1424 = vpop.f32.mrf.mxu0
  %v1425 = vadd.f32 %v1396, %v1424
  %v1426 = vpop.f32.mrf.mxu0
  %v1427 = vadd.f32 %v1398, %v1426
  %1428 = vmatmul.bf16.gmra.mxu0 %v491
  %v1429 = vpop.f32.mrf.mxu0
  %v1430 = vadd.f32 %v1401, %v1429
  %v1431 = vpop.f32.mrf.mxu0
  %v1432 = vadd.f32 %v1403, %v1431
  %1433 = vdwg.mxu0
  %1434 = vmatpush.bf16.msra.mxu0 %v1022
  %1435 = vmatpush.bf16.msra.mxu0 %v1021
  %1436 = vmatpush.bf16.msra.mxu0 %v1020
  %1437 = vmatpush.bf16.msra.mxu0 %v1019
  %1438 = vmatpush.bf16.msra.mxu0 %v1018
  %1439 = vmatpush.bf16.msra.mxu0 %v1017
  %1440 = vmatpush.bf16.msra.mxu0 %v1016
  %1441 = vmatpush.bf16.msra.mxu0 %v1015
  %1442 = vmatmul.bf16.gmra.mxu0 %v453
  %v1443 = vpop.f32.mrf.mxu0
  %v1444 = vadd.f32 %v1415, %v1443
  %v1445 = vpop.f32.mrf.mxu0
  %v1446 = vadd.f32 %v1417, %v1445
  %1447 = vmatmul.bf16.gmra.mxu0 %v466
  %v1448 = vpop.f32.mrf.mxu0
  %v1449 = vadd.f32 %v1420, %v1448
  %v1450 = vpop.f32.mrf.mxu0
  %v1451 = vadd.f32 %v1422, %v1450
  %1452 = vmatmul.bf16.gmra.mxu0 %v479
  %v1453 = vpop.f32.mrf.mxu0
  %v1454 = vadd.f32 %v1425, %v1453
  %v1455 = vpop.f32.mrf.mxu0
  %v1456 = vadd.f32 %v1427, %v1455
  %1457 = vmatmul.bf16.gmra.mxu0 %v492
  %v1458 = vpop.f32.mrf.mxu0
  %v1459 = vadd.f32 %v1430, %v1458
  %v1460 = vpop.f32.mrf.mxu0
  %v1461 = vadd.f32 %v1432, %v1460
  %1462 = vdwg.mxu0
  %1463 = vmatpush.bf16.msra.mxu0 %v1030
  %1464 = vmatpush.bf16.msra.mxu0 %v1029
  %1465 = vmatpush.bf16.msra.mxu0 %v1028
  %1466 = vmatpush.bf16.msra.mxu0 %v1027
  %1467 = vmatpush.bf16.msra.mxu0 %v1026
  %1468 = vmatpush.bf16.msra.mxu0 %v1025
  %1469 = vmatpush.bf16.msra.mxu0 %v1024
  %1470 = vmatpush.bf16.msra.mxu0 %v1023
  %1471 = vmatmul.bf16.gmra.mxu0 %v454
  %v1472 = vpop.f32.mrf.mxu0
  %v1473 = vadd.f32 %v1444, %v1472
  %v1474 = vpop.f32.mrf.mxu0
  %v1475 = vadd.f32 %v1446, %v1474
  %1476 = vmatmul.bf16.gmra.mxu0 %v467
  %v1477 = vpop.f32.mrf.mxu0
  %v1478 = vadd.f32 %v1449, %v1477
  %v1479 = vpop.f32.mrf.mxu0
  %v1480 = vadd.f32 %v1451, %v1479
  %1481 = vmatmul.bf16.gmra.mxu0 %v480
  %v1482 = vpop.f32.mrf.mxu0
  %v1483 = vadd.f32 %v1454, %v1482
  %v1484 = vpop.f32.mrf.mxu0
  %v1485 = vadd.f32 %v1456, %v1484
  %1486 = vmatmul.bf16.gmra.mxu0 %v493
  %v1487 = vpop.f32.mrf.mxu0
  %v1488 = vadd.f32 %v1459, %v1487
  %v1489 = vpop.f32.mrf.mxu0
  %v1490 = vadd.f32 %v1461, %v1489
  %1491 = vdwg.mxu0
  %1492 = vmatpush.bf16.msra.mxu0 0
  %1493 = vmatpush.bf16.msra.mxu0 0
  %1494 = vmatpush.bf16.msra.mxu0 0
  %1495 = vmatpush.bf16.msra.mxu0 0
  %1496 = vmatpush.bf16.msra.mxu0 0
  %1497 = vmatpush.bf16.msra.mxu0 0
  %1498 = vmatpush.bf16.msra.mxu0 %v1032
  %1499 = vmatpush.bf16.msra.mxu0 %v1031
  %1500 = vmatmul.bf16.gmra.mxu0 %v1133
  %v1501 = vpop.f32.mrf.mxu0
  %v1502 = vadd.f32 %v1473, %v1501
  %v1503 = vpop.f32.mrf.mxu0
  %v1504 = vadd.f32 %v1475, %v1503
  %1505 = vmatmul.bf16.gmra.mxu0 %v1136
  %v1506 = vpop.f32.mrf.mxu0
  %v1507 = vadd.f32 %v1478, %v1506
  %v1508 = vpop.f32.mrf.mxu0
  %v1509 = vadd.f32 %v1480, %v1508
  %1510 = vmatmul.bf16.gmra.mxu0 %v1139
  %v1511 = vpop.f32.mrf.mxu0
  %v1512 = vadd.f32 %v1483, %v1511
  %v1513 = vpop.f32.mrf.mxu0
  %v1514 = vadd.f32 %v1485, %v1513
  %1515 = vmatmul.bf16.gmra.mxu0 %v1142
  %v1516 = vpop.f32.mrf.mxu0
  %v1517 = vadd.f32 %v1488, %v1516
  %v1518 = vpop.f32.mrf.mxu0
  %v1519 = vadd.f32 %v1490, %v1518
  %1520 = vdwg.mxu0
  %v1521 = vmax.f32 %v1502, 0.0
  %v1522 = vmax.f32 %v1504, 0.0
  %v1523 = vmax.f32 %v1507, 0.0
  %v1524 = vmax.f32 %v1509, 0.0
  %v1525 = vmax.f32 %v1512, 0.0
  %v1526 = vmax.f32 %v1514, 0.0
  %v1527 = vmax.f32 %v1517, 0.0
  %v1528 = vmax.f32 %v1519, 0.0
  %v1529 = vld [vmem:[%s3] sm:$0xf]
  %v1530 = vld [vmem:[%s3 + $0x4] sm:$0xf]
  %v1531 = vld [vmem:[%s3 + $0x8] sm:$0xf]
  %v1532 = vld [vmem:[%s3 + $0xc] sm:$0xf]
  %v1533 = vld [vmem:[%s3 + $0x10] sm:$0xf]
  %v1534 = vld [vmem:[%s3 + $0x14] sm:$0xf]
  %v1535 = vld [vmem:[%s3 + $0x18] sm:$0xf]
  %v1536 = vld [vmem:[%s3 + $0x1c] sm:$0xf]
  %v1537 = vld [vmem:[%s3 + $0x20] sm:$0xf]
  %v1538 = vld [vmem:[%s3 + $0x24] sm:$0xf]
  %v1539 = vld [vmem:[%s3 + $0x28] sm:$0xf]
  %v1540 = vld [vmem:[%s3 + $0x2c] sm:$0xf]
  %v1541 = vld [vmem:[%s3 + $0x30] sm:$0xf]
  %v1542 = vld [vmem:[%s3 + $0x34] sm:$0xf]
  %v1543 = vld [vmem:[%s3 + $0x38] sm:$0xf]
  %v1544 = vld [vmem:[%s3 + $0x3c] sm:$0xf]
  %v1545 = vld [vmem:[%s4] sm:$0x1]
  %v1546 = vpack.c.bf16 %v1522, %v1521
  %v1547 = vpack.c.bf16 %v1524, %v1523
  %v1548 = vpack.c.bf16 %v1526, %v1525
  %v1549 = vpack.c.bf16 %v1528, %v1527
  %v1551 = vperm.slane %v1545, 0
  %v1569 = vunpack.c.l.b16 %v1529
  %v1570 = vunpack.c.l.b16 %v1530
  %v1571 = vunpack.c.l.b16 %v1531
  %v1572 = vunpack.c.l.b16 %v1532
  %v1573 = vunpack.c.l.b16 %v1533
  %v1574 = vunpack.c.l.b16 %v1534
  %v1575 = vunpack.c.l.b16 %v1535
  %v1576 = vunpack.c.l.b16 %v1536
  %v1577 = vunpack.c.l.b16 %v1537
  %v1578 = vunpack.c.l.b16 %v1538
  %v1579 = vunpack.c.l.b16 %v1539
  %v1580 = vunpack.c.l.b16 %v1540
  %v1581 = vunpack.c.l.b16 %v1541
  %v1582 = vunpack.c.l.b16 %v1542
  %v1583 = vunpack.c.l.b16 %v1543
  %v1584 = vunpack.c.l.b16 %v1544
  %v1585 = vpack.c.b16 %v1570, %v1569
  %v1586 = vpack.c.b16 %v1572, %v1571
  %v1587 = vpack.c.b16 %v1574, %v1573
  %v1588 = vpack.c.b16 %v1576, %v1575
  %v1589 = vpack.c.b16 %v1578, %v1577
  %v1590 = vpack.c.b16 %v1580, %v1579
  %v1591 = vpack.c.b16 %v1582, %v1581
  %v1592 = vpack.c.b16 %v1584, %v1583
  %1601 = vmatpush.bf16.msra.mxu0 %v1592
  %1602 = vmatpush.bf16.msra.mxu0 %v1591
  %1603 = vmatpush.bf16.msra.mxu0 %v1590
  %1604 = vmatpush.bf16.msra.mxu0 %v1589
  %1605 = vmatpush.bf16.msra.mxu0 %v1588
  %1606 = vmatpush.bf16.msra.mxu0 %v1587
  %1607 = vmatpush.bf16.msra.mxu0 %v1586
  %1608 = vmatpush.bf16.msra.mxu0 %v1585
  %1609 = vmatmul.bf16.gmra.mxu0 %v1546
  %v1610 = vpop.f32.mrf.mxu0
  %v1611 = vadd.f32 %v1551, %v1610
  %v1612 = vpop.f32.mrf.mxu0
  %v1613 = vadd.f32 %v1551, %v1612
  %1614 = vmatmul.bf16.gmra.mxu0 %v1547
  %v1615 = vpop.f32.mrf.mxu0
  %v1616 = vadd.f32 %v1551, %v1615
  %v1617 = vpop.f32.mrf.mxu0
  %v1618 = vadd.f32 %v1551, %v1617
  %1619 = vmatmul.bf16.gmra.mxu0 %v1548
  %v1620 = vpop.f32.mrf.mxu0
  %v1621 = vadd.f32 %v1551, %v1620
  %v1622 = vpop.f32.mrf.mxu0
  %v1623 = vadd.f32 %v1551, %v1622
  %1624 = vmatmul.bf16.gmra.mxu0 %v1549
  %v1625 = vpop.f32.mrf.mxu0
  %v1626 = vadd.f32 %v1551, %v1625
  %v1627 = vpop.f32.mrf.mxu0
  %v1628 = vadd.f32 %v1551, %v1627
  %1629 = vdwg.mxu0
  %v1630 = vmax.f32 %v1611, 0.0
  %v1631 = vmax.f32 %v1613, 0.0
  %v1632 = vmax.f32 %v1616, 0.0
  %v1633 = vmax.f32 %v1618, 0.0
  %v1634 = vmax.f32 %v1621, 0.0
  %v1635 = vmax.f32 %v1623, 0.0
  %v1636 = vmax.f32 %v1626, 0.0
  %v1637 = vmax.f32 %v1628, 0.0
  %v1638 = vld [vmem:[%s5] sm:$0xf]
  %v1639 = vld [vmem:[%s5 + $0x4] sm:$0xf]
  %v1640 = vld [vmem:[%s5 + $0x8] sm:$0xf]
  %v1641 = vld [vmem:[%s5 + $0xc] sm:$0xf]
  %v1642 = vld [vmem:[%s5 + $0x10] sm:$0xf]
  %v1643 = vld [vmem:[%s5 + $0x14] sm:$0xf]
  %v1644 = vld [vmem:[%s5 + $0x18] sm:$0xf]
  %v1645 = vld [vmem:[%s5 + $0x1c] sm:$0xf]
  %v1646 = vld [vmem:[%s5 + $0x20] sm:$0xf]
  %v1647 = vld [vmem:[%s5 + $0x24] sm:$0xf]
  %v1648 = vld [vmem:[%s5 + $0x28] sm:$0xf]
  %v1649 = vld [vmem:[%s5 + $0x2c] sm:$0xf]
  %v1650 = vld [vmem:[%s5 + $0x30] sm:$0xf]
  %v1651 = vld [vmem:[%s5 + $0x34] sm:$0xf]
  %v1652 = vld [vmem:[%s5 + $0x38] sm:$0xf]
  %v1653 = vld [vmem:[%s5 + $0x3c] sm:$0xf]
  %v1654 = vld [vmem:[%s6] sm:$0x1]
  %v1655 = vpack.c.bf16 %v1631, %v1630
  %v1656 = vpack.c.bf16 %v1633, %v1632
  %v1657 = vpack.c.bf16 %v1635, %v1634
  %v1658 = vpack.c.bf16 %v1637, %v1636
  %v1660 = vperm.slane %v1654, 0
  %v1678 = vunpack.c.l.b16 %v1638
  %v1679 = vunpack.c.l.b16 %v1639
  %v1680 = vunpack.c.l.b16 %v1640
  %v1681 = vunpack.c.l.b16 %v1641
  %v1682 = vunpack.c.l.b16 %v1642
  %v1683 = vunpack.c.l.b16 %v1643
  %v1684 = vunpack.c.l.b16 %v1644
  %v1685 = vunpack.c.l.b16 %v1645
  %v1686 = vunpack.c.l.b16 %v1646
  %v1687 = vunpack.c.l.b16 %v1647
  %v1688 = vunpack.c.l.b16 %v1648
  %v1689 = vunpack.c.l.b16 %v1649
  %v1690 = vunpack.c.l.b16 %v1650
  %v1691 = vunpack.c.l.b16 %v1651
  %v1692 = vunpack.c.l.b16 %v1652
  %v1693 = vunpack.c.l.b16 %v1653
  %v1694 = vpack.c.b16 %v1679, %v1678
  %v1695 = vpack.c.b16 %v1681, %v1680
  %v1696 = vpack.c.b16 %v1683, %v1682
  %v1697 = vpack.c.b16 %v1685, %v1684
  %v1698 = vpack.c.b16 %v1687, %v1686
  %v1699 = vpack.c.b16 %v1689, %v1688
  %v1700 = vpack.c.b16 %v1691, %v1690
  %v1701 = vpack.c.b16 %v1693, %v1692
  %1710 = vmatpush.bf16.msra.mxu0 %v1701
  %1711 = vmatpush.bf16.msra.mxu0 %v1700
  %1712 = vmatpush.bf16.msra.mxu0 %v1699
  %1713 = vmatpush.bf16.msra.mxu0 %v1698
  %1714 = vmatpush.bf16.msra.mxu0 %v1697
  %1715 = vmatpush.bf16.msra.mxu0 %v1696
  %1716 = vmatpush.bf16.msra.mxu0 %v1695
  %1717 = vmatpush.bf16.msra.mxu0 %v1694
  %1718 = vmatmul.bf16.gmra.mxu0 %v1655
  %v1719 = vpop.f32.mrf.mxu0
  %v1720 = vadd.f32 %v1660, %v1719
  %v1721 = vpop.f32.mrf.mxu0
  %v1722 = vadd.f32 %v1660, %v1721
  %1723 = vmatmul.bf16.gmra.mxu0 %v1656
  %v1724 = vpop.f32.mrf.mxu0
  %v1725 = vadd.f32 %v1660, %v1724
  %v1726 = vpop.f32.mrf.mxu0
  %v1727 = vadd.f32 %v1660, %v1726
  %1728 = vmatmul.bf16.gmra.mxu0 %v1657
  %v1729 = vpop.f32.mrf.mxu0
  %v1730 = vadd.f32 %v1660, %v1729
  %v1731 = vpop.f32.mrf.mxu0
  %v1732 = vadd.f32 %v1660, %v1731
  %1733 = vmatmul.bf16.gmra.mxu0 %v1658
  %v1734 = vpop.f32.mrf.mxu0
  %v1735 = vadd.f32 %v1660, %v1734
  %v1736 = vpop.f32.mrf.mxu0
  %v1737 = vadd.f32 %v1660, %v1736
  %1738 = vdwg.mxu0
  %1739 = vst [vmem:[%s7] sm:$0xff] %v1720
  %1740 = vst [vmem:[%s7 + $0x8] sm:$0xff] %v1722
  %1741 = vst [vmem:[%s7 + $0x10] sm:$0xff] %v1725
  %1742 = vst [vmem:[%s7 + $0x18] sm:$0xff] %v1727
  %1743 = vst [vmem:[%s7 + $0x20] sm:$0xff] %v1730
  %1744 = vst [vmem:[%s7 + $0x28] sm:$0xff] %v1732
  %1745 = vst [vmem:[%s7 + $0x30] sm:$0xff] %v1735
  %1746 = vst [vmem:[%s7 + $0x38] sm:$0xff] %v1737
  // Predicated region
  $region30: #{faster_rcnn_forward.5} parent=0 // pred_check
    _
  $region31: #{faster_rcnn_forward.5} parent=0 // pred_check_branch
    %1748 = sbr.rel (0) target = $region33
  $region32: #{faster_rcnn_forward.5} parent=0 // pred_region
    _
  $region33: #{faster_rcnn_forward.5} parent=0 // pred_fallthru
    _
  // Predicated region
  $region34: #{faster_rcnn_forward.5} parent=0 // pred_check
    _
  $region35: #{faster_rcnn_forward.5} parent=0 // pred_check_branch
    %1750 = sbr.rel (0) target = $region37
  $region36: #{faster_rcnn_forward.5} parent=0 // pred_region
    _
  $region37: #{faster_rcnn_forward.5} parent=0 // pred_fallthru
    _

</llo_original>
